<compile_context>
chip_gen: v7x
topology: tpu7x:2x2x1
jax: 0.10.0
libtpu: 0.0.40
codegen_flags: <defaults>
</compile_context>

<pallas_src>
import functools

import jax
import jax.numpy as jnp
from jax.experimental import pallas as pl
from jax.experimental.pallas import tpu as pltpu

# ----------------------------- config ---------------------------------------
PAD_IDX = 1          # esm alphabet padding_idx
CLS_IDX = 0
EOS_IDX = 2
MASK_IDX = 32        # esm alphabet mask_idx (for the token-dropout rescale)
VOCAB = 33           # esm alphabet size
D_MODEL = 128        # lane-dense (real ESM-2 t30: 640 = 5*128)
N_HEADS = 4          # (real: 20), dh = 32
D_FFN = 256          # lane-dense (real: 2560)
N_LAYERS = 2         # (real: 30) — "representations[30]" == final hidden state
LN_EPS = 1e-5


# ----------------------------- kernel ----------------------------------------
def _layer_norm(x, g, b):
    mu = jnp.mean(x, axis=-1, keepdims=True)
    var = jnp.mean((x - mu) ** 2, axis=-1, keepdims=True)
    return (x - mu) * jax.lax.rsqrt(var + LN_EPS) * g + b


def encoder_stack_kernel(x_ref, bias_ref, fln_ref, vecd_ref, bqkv_ref, b1_ref,
                         wqkv_ref, wo_ref, w1_ref, w2_ref, out_ref,
                         *, num_heads):
    """One grid step == (one batch row, one transformer layer).  Hidden state
    lives in out_ref (resident across the layer axis); final LN fused into the
    last layer step."""
    layer = pl.program_id(1)
    n_layers = pl.num_programs(1)

    # layer 0 of each batch row: initialize the carried state from embeddings
    @pl.when(layer == 0)
    def _init():
        out_ref[...] = x_ref[...]

    x = out_ref[0]                         # (S, D) f32 carried hidden state
    S, D = x.shape
    H = num_heads
    dh = D // H

    # packed per-layer vectors (f32)
    vecd = vecd_ref[0]                     # (6, D)
    ln1_g, ln1_b = vecd[0], vecd[1]
    bo_v, ln2_g = vecd[2], vecd[3]
    ln2_b, b2_v = vecd[4], vecd[5]
    bqkv = bqkv_ref[0]                     # (1, 3D)
    b1_v = b1_ref[0]                       # (1, F)
    bias = bias_ref[0]                     # (1, S) additive key-padding mask

    # ---- multi-head self-attention (pre-LN) ----
    h = _layer_norm(x, ln1_g, ln1_b)                               # f32 (S, D)
    qkv = jnp.dot(h.astype(jnp.bfloat16), wqkv_ref[0],             # fused QKV
                  preferred_element_type=jnp.float32) + bqkv       # (S, 3D) f32
    # 128-lane-aligned slices; 1/sqrt(dh) is folded into the Q columns of wqkv.
    q2 = qkv[:, :D]
    k2 = qkv[:, D:2 * D]
    v2 = qkv[:, 2 * D:]
    # Head-major relayout using only 2D transposes / last-two-dim swaps /
    # reshapes (no 32-lane masked slicing or concatenation).
    qh = jnp.swapaxes(q2.T.reshape(H, dh, S), 1, 2)                # (H, S, dh)
    kT = k2.T.reshape(H, dh, S)                                    # (H, dh, S)
    vh = jnp.swapaxes(v2.T.reshape(H, dh, S), 1, 2)                # (H, S, dh)
    # TODO(synk): real ESM-2 applies rotary position embeddings (RoPE) to q/k here.

    # Head-batched attention: one scores einsum + one context einsum for all heads.
    s = jnp.einsum('hqd,hdk->hqk',
                   qh.astype(jnp.bfloat16), kT.astype(jnp.bfloat16),
                   preferred_element_type=jnp.float32)             # (H, S, S) f32
    s = s + bias[None]            # (1,1,S) broadcast — no (S,S) mask materialized
    s = s - jnp.max(s, axis=-1, keepdims=True)
    p = jnp.exp(s)
    p = p * pl.reciprocal(jnp.sum(p, axis=-1, keepdims=True), approx=True)
    # TODO(synk): at real ESM sizes (S>=512) replace the full (H,S,S) scores with
    # a KV-tiled online-softmax (flash-style) loop to bound VMEM (v7x: 64 MiB).
    ctx = jnp.einsum('hqk,hkd->hqd',
                     p.astype(jnp.bfloat16), vh.astype(jnp.bfloat16),
                     preferred_element_type=jnp.float32)           # (H, S, dh)
    ctx = jnp.swapaxes(ctx, 1, 2).reshape(D, S).T                  # (S, D) f32
    attn = jnp.dot(ctx.astype(jnp.bfloat16), wo_ref[0],            # full-D Wo
                   preferred_element_type=jnp.float32)
    x = x + attn + bo_v

    # ---- feed-forward (pre-LN) ----
    h2 = _layer_norm(x, ln2_g, ln2_b)
    ff = jnp.dot(h2.astype(jnp.bfloat16), w1_ref[0],
                 preferred_element_type=jnp.float32) + b1_v
    # TODO(synk): ESM uses exact erf-GELU; tanh-approx GELU kept for robust lowering.
    ff = jax.nn.gelu(ff)
    ff = jnp.dot(ff.astype(jnp.bfloat16), w2_ref[0],
                 preferred_element_type=jnp.float32)
    x = x + ff + b2_v

    # ---- writeback (final LN fused into the last layer) ----
    @pl.when(layer < n_layers - 1)
    def _store():
        out_ref[0] = x

    @pl.when(layer == n_layers - 1)
    def _store_final():
        out_ref[0] = _layer_norm(x, fln_ref[0], fln_ref[1])


# ----------------------------- wrapper ---------------------------------------
def _vmem_limit_bytes():
    # ~96 MiB on v5e/v6e (128 MiB physical VMEM), ~48 MiB on v7x (64 MiB).
    try:
        cap = int(pltpu.get_tpu_info().vmem_capacity_bytes)
    except Exception:
        cap = 64 * 1024 * 1024
    return min((cap // 4) * 3, 100 * 1024 * 1024)


def _maybe_single_buffered(shape, index_map, enable):
    """Constant-index inputs only need one VMEM buffer (feedback); fall back to
    the default spec if this Pallas version does not accept pipeline_mode."""
    if enable:
        try:
            return pl.BlockSpec(shape, index_map, pipeline_mode=pl.Buffered(1))
        except TypeError:
            pass
    return pl.BlockSpec(shape, index_map)


def esm_encoder_forward(tokens, params):
    """tokens: [B, S] int32 -> (representations [B,S,D] f32, batch_lens [B] i32)"""
    B, S = tokens.shape
    D, F, L, H = D_MODEL, D_FFN, N_LAYERS, N_HEADS

    # batch_lens = (tokens != padding_idx).sum(1) — plain XLA (no kernel overhead)
    valid = tokens != PAD_IDX
    batch_lens = jnp.sum(valid.astype(jnp.int32), axis=1)

    mask = valid.astype(jnp.float32)                          # (B, S)
    h = jnp.take(params['embed'], tokens, axis=0)             # (B, S, D) glue
    # ESM-2 token-dropout embedding rescale (eval path); no <mask> tokens here.
    mask_ratio_train = 0.15 * 0.8
    n_masked = jnp.sum((tokens == MASK_IDX).astype(jnp.float32), axis=1)
    mask_ratio_obs = n_masked / jnp.maximum(batch_lens.astype(jnp.float32), 1.0)
    h = h * ((1.0 - mask_ratio_train) / (1.0 - mask_ratio_obs))[:, None, None]
    h = h * mask[:, :, None]                                  # zero padded rows
    # additive key-padding mask, computed once in XLA (kept (B,1,S), never (B,S,S))
    attn_bias = ((mask - 1.0) * 1e9).reshape(B, 1, S)

    def run(single_buffer):
        sb = lambda shape, imap: _maybe_single_buffered(shape, imap, single_buffer)
        in_specs = [
            sb((1, S, D), lambda b, l: (b, 0, 0)),            # embeddings (const over l)
            sb((1, 1, S), lambda b, l: (b, 0, 0)),            # additive mask
            sb((2, D),    lambda b, l: (0, 0)),               # final LN (gamma, beta)
            pl.BlockSpec((1, 6, D), lambda b, l: (l, 0, 0)),      # packed D-vectors
            pl.BlockSpec((1, 1, 3 * D), lambda b, l: (l, 0, 0)),  # bqkv
            pl.BlockSpec((1, 1, F), lambda b, l: (l, 0, 0)),      # b1
            pl.BlockSpec((1, D, 3 * D), lambda b, l: (l, 0, 0)),  # wqkv (bf16)
            pl.BlockSpec((1, D, D), lambda b, l: (l, 0, 0)),      # wo   (bf16)
            pl.BlockSpec((1, D, F), lambda b, l: (l, 0, 0)),      # w1   (bf16)
            pl.BlockSpec((1, F, D), lambda b, l: (l, 0, 0)),      # w2   (bf16)
        ]
        out = pl.pallas_call(
            functools.partial(encoder_stack_kernel, num_heads=H),
            out_shape=jax.ShapeDtypeStruct((B, S, D), jnp.float32),
            grid=(B, L),                        # batch parallel, layers sequential
            in_specs=in_specs,
            out_specs=pl.BlockSpec((1, S, D), lambda b, l: (b, 0, 0)),  # resident carry
            compiler_params=pltpu.CompilerParams(
                dimension_semantics=("parallel", "arbitrary"),
                vmem_limit_bytes=_vmem_limit_bytes()),
        )(h, attn_bias, params['final_ln'], params['vecd'], params['bqkv'],
          params['b1'], params['wqkv'], params['wo'], params['w1'], params['w2'])
        return jax.block_until_ready(out)

    try:
        reps = run(single_buffer=True)
    except Exception:
        reps = run(single_buffer=False)

    return reps, batch_lens


# ----------------------------- parameters ------------------------------------
def init_params(key):
    def nxt():
        nonlocal key
        key, sub = jax.random.split(key)
        return sub

    L, D, F, H = N_LAYERS, D_MODEL, D_FFN, N_HEADS
    dh = D // H
    q_scale = float(dh) ** -0.5

    ones = jnp.ones((L, 1, D), jnp.float32)
    zeros = jnp.zeros((L, 1, D), jnp.float32)

    # fold attention 1/sqrt(dh) into the Q projection (feedback: no in-kernel q*scale)
    wqkv = 0.02 * jax.random.normal(nxt(), (L, D, 3 * D), jnp.float32)
    wqkv = wqkv.at[:, :, :D].multiply(q_scale)
    bqkv = jnp.zeros((L, 1, 3 * D), jnp.float32)
    bqkv = bqkv.at[:, :, :D].multiply(q_scale)

    def dense_bf16(shape):
        return (0.02 * jax.random.normal(nxt(), shape, jnp.float32)).astype(jnp.bfloat16)

    return {
        'embed': 0.1 * jax.random.normal(nxt(), (VOCAB, D), jnp.float32),
        # row 0: gamma, row 1: beta
        'final_ln': jnp.concatenate(
            [jnp.ones((1, D), jnp.float32), jnp.zeros((1, D), jnp.float32)], axis=0),
        # packed per-layer vectors: [ln1_g, ln1_b, bo, ln2_g, ln2_b, b2]
        'vecd': jnp.concatenate([ones, zeros, zeros, ones, zeros, zeros], axis=1),
        'bqkv': bqkv,
        'b1': jnp.zeros((L, 1, F), jnp.float32),
        # big weight matrices stored bf16 (halved DMA bytes, MXU-friendly)
        'wqkv': wqkv.astype(jnp.bfloat16),
        'wo': dense_bf16((L, D, D)),
        'w1': dense_bf16((L, D, F)),
        'w2': dense_bf16((L, F, D)),
    }


def tokenize(seqs):
    """Minimal stand-in for alphabet.get_batch_converter():
       [CLS] + residue ids + [EOS], PAD-padded to a multiple of 8 (sublane-friendly)."""
    max_len = max(len(s) for s in seqs) + 2
    max_len = ((max_len + 7) // 8) * 8
    rows = []
    for s in seqs:
        row = [CLS_IDX] + list(s) + [EOS_IDX]
        row = row + [PAD_IDX] * (max_len - len(row))
        rows.append(row)
    return jnp.array(rows, dtype=jnp.int32)


# ----------------------------- main -------------------------------------------
if __name__ == "__main__":
    key = jax.random.PRNGKey(0)
    params = init_params(key)

    # two synthetic "protein sequences" of different lengths (residue ids 4..23)
    seqs = [[5, 6, 7, 8, 9], [10, 11, 12]]
    batch_tokens = tokenize(seqs)          # (2, 8) int32

    reps, batch_lens = esm_encoder_forward(batch_tokens, params)
    jax.block_until_ready((reps, batch_lens))

    assert reps.shape == (2, 8, D_MODEL) and reps.dtype == jnp.float32
    assert bool(jnp.isfinite(reps).all())
    assert [int(v) for v in batch_lens] == [7, 5]   # len(seq) + CLS + EOS
    print("KERNEL_OK")
</pallas_src>

<mosaic_0001>
module attributes {stable_mosaic.version = 11 : i64} {
  func.func @encoder_stack_kernel(%arg0: i32, %arg1: i32, %arg2: memref<1x8x128xf32, #tpu.memory_space<vmem>>, %arg3: memref<1x1x8xf32, #tpu.memory_space<vmem>>, %arg4: memref<2x128xf32, #tpu.memory_space<vmem>>, %arg5: memref<1x6x128xf32, #tpu.memory_space<vmem>>, %arg6: memref<1x1x384xf32, #tpu.memory_space<vmem>>, %arg7: memref<1x1x256xf32, #tpu.memory_space<vmem>>, %arg8: memref<1x128x384xbf16, #tpu.memory_space<vmem>>, %arg9: memref<1x128x128xbf16, #tpu.memory_space<vmem>>, %arg10: memref<1x128x256xbf16, #tpu.memory_space<vmem>>, %arg11: memref<1x256x128xbf16, #tpu.memory_space<vmem>>, %arg12: memref<1x8x128xf32, #tpu.memory_space<vmem>>) attributes {dimension_semantics = [#tpu.dimension_semantics<parallel>, #tpu.dimension_semantics<arbitrary>], iteration_bounds = array<i64: 2, 2>, scalar_prefetch = 0 : i64, scratch_operands = 0 : i64, tpu.core_type = #tpu.core_type<tc>, window_params = [{pipeline_mode = #tpu.pipeline_mode<synchronous>, transform_indices = @transform_0, window_bounds = array<i64: 1, 8, 128>}, {pipeline_mode = #tpu.pipeline_mode<synchronous>, transform_indices = @transform_1, window_bounds = array<i64: 1, 1, 8>}, {pipeline_mode = #tpu.pipeline_mode<synchronous>, transform_indices = @transform_2, window_bounds = array<i64: 2, 128>}, {transform_indices = @transform_3, window_bounds = array<i64: 1, 6, 128>}, {transform_indices = @transform_4, window_bounds = array<i64: 1, 1, 384>}, {transform_indices = @transform_5, window_bounds = array<i64: 1, 1, 256>}, {transform_indices = @transform_6, window_bounds = array<i64: 1, 128, 384>}, {transform_indices = @transform_7, window_bounds = array<i64: 1, 128, 128>}, {transform_indices = @transform_8, window_bounds = array<i64: 1, 128, 256>}, {transform_indices = @transform_9, window_bounds = array<i64: 1, 256, 128>}, {transform_indices = @transform_10, window_bounds = array<i64: 1, 8, 128>}]} {
    %c0_i32 = arith.constant 0 : i32
    %0 = arith.cmpi eq, %arg1, %c0_i32 : i32
    %1 = arith.extui %0 : i1 to i32
    %c0_i32_0 = arith.constant 0 : i32
    %2 = arith.cmpi ne, %1, %c0_i32_0 : i32
    scf.if %2 {
      %c0_51 = arith.constant 0 : index
      %c0_52 = arith.constant 0 : index
      %c0_53 = arith.constant 0 : index
      %153 = vector.load %arg2[%c0_51, %c0_52, %c0_53] : memref<1x8x128xf32, #tpu.memory_space<vmem>>, vector<1x8x128xf32>
      %c0_54 = arith.constant 0 : index
      %c0_55 = arith.constant 0 : index
      %c0_56 = arith.constant 0 : index
      %154 = vector.load %arg12[%c0_54, %c0_55, %c0_56] : memref<1x8x128xf32, #tpu.memory_space<vmem>>, vector<1x8x128xf32>
      tpu.vector_store %arg12[%c0_54, %c0_55, %c0_56], %153 {strides = array<i32>} : memref<1x8x128xf32, #tpu.memory_space<vmem>>, vector<1x8x128xf32>,
    } else {
    }
    %c0 = arith.constant 0 : index
    %c0_1 = arith.constant 0 : index
    %c0_2 = arith.constant 0 : index
    %3 = vector.load %arg12[%c0, %c0_1, %c0_2] : memref<1x8x128xf32, #tpu.memory_space<vmem>>, vector<1x8x128xf32>
    %4 = vector.shape_cast %3 : vector<1x8x128xf32> to vector<8x128xf32>
    %c0_3 = arith.constant 0 : index
    %c0_4 = arith.constant 0 : index
    %c0_5 = arith.constant 0 : index
    %5 = vector.load %arg5[%c0_3, %c0_4, %c0_5] : memref<1x6x128xf32, #tpu.memory_space<vmem>>, vector<1x6x128xf32>
    %6 = vector.shape_cast %5 : vector<1x6x128xf32> to vector<6x128xf32>
    %7 = vector.extract_strided_slice %6 {offsets = [0, 0], sizes = [1, 128], strides = [1, 1]} : vector<6x128xf32> to vector<1x128xf32>
    %8 = vector.shape_cast %7 : vector<1x128xf32> to vector<128xf32>
    %9 = vector.extract_strided_slice %6 {offsets = [1, 0], sizes = [1, 128], strides = [1, 1]} : vector<6x128xf32> to vector<1x128xf32>
    %10 = vector.shape_cast %9 : vector<1x128xf32> to vector<128xf32>
    %11 = vector.extract_strided_slice %6 {offsets = [2, 0], sizes = [1, 128], strides = [1, 1]} : vector<6x128xf32> to vector<1x128xf32>
    %12 = vector.shape_cast %11 : vector<1x128xf32> to vector<128xf32>
    %13 = vector.extract_strided_slice %6 {offsets = [3, 0], sizes = [1, 128], strides = [1, 1]} : vector<6x128xf32> to vector<1x128xf32>
    %14 = vector.shape_cast %13 : vector<1x128xf32> to vector<128xf32>
    %15 = vector.extract_strided_slice %6 {offsets = [4, 0], sizes = [1, 128], strides = [1, 1]} : vector<6x128xf32> to vector<1x128xf32>
    %16 = vector.shape_cast %15 : vector<1x128xf32> to vector<128xf32>
    %17 = vector.extract_strided_slice %6 {offsets = [5, 0], sizes = [1, 128], strides = [1, 1]} : vector<6x128xf32> to vector<1x128xf32>
    %18 = vector.shape_cast %17 : vector<1x128xf32> to vector<128xf32>
    %c0_6 = arith.constant 0 : index
    %c0_7 = arith.constant 0 : index
    %c0_8 = arith.constant 0 : index
    %19 = vector.load %arg6[%c0_6, %c0_7, %c0_8] : memref<1x1x384xf32, #tpu.memory_space<vmem>>, vector<1x1x384xf32>
    %20 = vector.shape_cast %19 : vector<1x1x384xf32> to vector<1x384xf32>
    %c0_9 = arith.constant 0 : index
    %c0_10 = arith.constant 0 : index
    %c0_11 = arith.constant 0 : index
    %21 = vector.load %arg7[%c0_9, %c0_10, %c0_11] : memref<1x1x256xf32, #tpu.memory_space<vmem>>, vector<1x1x256xf32>
    %22 = vector.shape_cast %21 : vector<1x1x256xf32> to vector<1x256xf32>
    %c0_12 = arith.constant 0 : index
    %c0_13 = arith.constant 0 : index
    %c0_14 = arith.constant 0 : index
    %23 = vector.load %arg3[%c0_12, %c0_13, %c0_14] : memref<1x1x8xf32, #tpu.memory_space<vmem>>, vector<1x1x8xf32>
    %24 = vector.shape_cast %23 : vector<1x1x8xf32> to vector<1x8xf32>
    %cst = arith.constant dense<0.000000e+00> : vector<8xf32>
    %25 = vector.multi_reduction <add>, %4, %cst [1] : vector<8x128xf32> to vector<8xf32>
    %26 = vector.shape_cast %25 : vector<8xf32> to vector<8x1xf32>
    %cst_15 = arith.constant 1.280000e+02 : f32
    %27 = vector.broadcast %cst_15 : f32 to vector<8x1xf32>
    %28 = arith.divf %26, %27 : vector<8x1xf32>
    %29 = vector.broadcast %28 : vector<8x1xf32> to vector<8x128xf32>
    %30 = arith.subf %4, %29 : vector<8x128xf32>
    %31 = arith.mulf %30, %30 : vector<8x128xf32>
    %cst_16 = arith.constant dense<0.000000e+00> : vector<8xf32>
    %32 = vector.multi_reduction <add>, %31, %cst_16 [1] : vector<8x128xf32> to vector<8xf32>
    %33 = vector.shape_cast %32 : vector<8xf32> to vector<8x1xf32>
    %cst_17 = arith.constant 1.280000e+02 : f32
    %34 = vector.broadcast %cst_17 : f32 to vector<8x1xf32>
    %35 = arith.divf %33, %34 : vector<8x1xf32>
    %36 = vector.broadcast %28 : vector<8x1xf32> to vector<8x128xf32>
    %37 = arith.subf %4, %36 : vector<8x128xf32>
    %cst_18 = arith.constant 9.99999974E-6 : f32
    %38 = vector.broadcast %cst_18 : f32 to vector<8x1xf32>
    %39 = arith.addf %35, %38 : vector<8x1xf32>
    %40 = math.rsqrt %39 : vector<8x1xf32>
    %41 = vector.broadcast %40 : vector<8x1xf32> to vector<8x128xf32>
    %42 = arith.mulf %37, %41 : vector<8x128xf32>
    %43 = vector.shape_cast %8 : vector<128xf32> to vector<1x128xf32>
    %44 = vector.broadcast %43 : vector<1x128xf32> to vector<8x128xf32>
    %45 = arith.mulf %42, %44 : vector<8x128xf32>
    %46 = vector.shape_cast %10 : vector<128xf32> to vector<1x128xf32>
    %47 = vector.broadcast %46 : vector<1x128xf32> to vector<8x128xf32>
    %48 = arith.addf %45, %47 : vector<8x128xf32>
    %49 = arith.truncf %48 : vector<8x128xf32> to vector<8x128xbf16>
    %c0_19 = arith.constant 0 : index
    %c0_20 = arith.constant 0 : index
    %c0_21 = arith.constant 0 : index
    %50 = vector.load %arg8[%c0_19, %c0_20, %c0_21] : memref<1x128x384xbf16, #tpu.memory_space<vmem>>, vector<1x128x384xbf16>
    %51 = vector.shape_cast %50 : vector<1x128x384xbf16> to vector<128x384xbf16>
    %cst_22 = arith.constant dense<0.000000e+00> : vector<8x384xf32>
    %52 = tpu.matmul %49, %51, %cst_22 {dimension_numbers = #tpu.dot_dimension_numbers<[1], [0], [0], [1], [0, 0, 1, 1], [], []>} : vector<8x128xbf16>, vector<128x384xbf16>, vector<8x384xf32> -> vector<8x384xf32>
    %53 = vector.broadcast %20 : vector<1x384xf32> to vector<8x384xf32>
    %54 = arith.addf %52, %53 : vector<8x384xf32>
    %55 = vector.extract_strided_slice %54 {offsets = [0, 0], sizes = [8, 128], strides = [1, 1]} : vector<8x384xf32> to vector<8x128xf32>
    %56 = vector.extract_strided_slice %54 {offsets = [0, 128], sizes = [8, 128], strides = [1, 1]} : vector<8x384xf32> to vector<8x128xf32>
    %57 = vector.extract_strided_slice %54 {offsets = [0, 256], sizes = [8, 128], strides = [1, 1]} : vector<8x384xf32> to vector<8x128xf32>
    %58 = tpu.transpose %55, [1, 0] : vector<8x128xf32> -> vector<128x8xf32>
    %59 = vector.shape_cast %58 : vector<128x8xf32> to vector<4x32x8xf32>
    %60 = tpu.transpose %59, [0, 2, 1] : vector<4x32x8xf32> -> vector<4x8x32xf32>
    %61 = tpu.transpose %56, [1, 0] : vector<8x128xf32> -> vector<128x8xf32>
    %62 = vector.shape_cast %61 : vector<128x8xf32> to vector<4x32x8xf32>
    %63 = tpu.transpose %57, [1, 0] : vector<8x128xf32> -> vector<128x8xf32>
    %64 = vector.shape_cast %63 : vector<128x8xf32> to vector<4x32x8xf32>
    %65 = tpu.transpose %64, [0, 2, 1] : vector<4x32x8xf32> -> vector<4x8x32xf32>
    %66 = arith.truncf %60 : vector<4x8x32xf32> to vector<4x8x32xbf16>
    %67 = arith.truncf %62 : vector<4x32x8xf32> to vector<4x32x8xbf16>
    "tpu.trace_start"() <{level = 10 : i32, message = "hqd,hdk->hqk"}> : () -> ()
    %cst_23 = arith.constant dense<0.000000e+00> : vector<4x8x8xf32>
    %68 = tpu.matmul %66, %67, %cst_23 {dimension_numbers = #tpu.dot_dimension_numbers<[2], [1], [1], [2], [0, 0, 0, 1, 1, 2], [0], [0]>} : vector<4x8x32xbf16>, vector<4x32x8xbf16>, vector<4x8x8xf32> -> vector<4x8x8xf32>
    "tpu.trace_stop"() : () -> ()
    %69 = vector.shape_cast %24 : vector<1x8xf32> to vector<1x1x8xf32>
    %70 = vector.broadcast %69 : vector<1x1x8xf32> to vector<4x8x8xf32>
    %71 = arith.addf %68, %70 : vector<4x8x8xf32>
    %cst_24 = arith.constant dense<0xFF800000> : vector<4x8xf32>
    %72 = vector.multi_reduction <maximumf>, %71, %cst_24 [2] : vector<4x8x8xf32> to vector<4x8xf32>
    %73 = vector.shape_cast %72 : vector<4x8xf32> to vector<4x8x1xf32>
    %74 = vector.broadcast %73 : vector<4x8x1xf32> to vector<4x8x8xf32>
    %75 = arith.subf %71, %74 : vector<4x8x8xf32>
    %76 = math.exp %75 : vector<4x8x8xf32>
    %cst_25 = arith.constant dense<0.000000e+00> : vector<4x8xf32>
    %77 = vector.multi_reduction <add>, %76, %cst_25 [2] : vector<4x8x8xf32> to vector<4x8xf32>
    %78 = vector.shape_cast %77 : vector<4x8xf32> to vector<4x8x1xf32>
    %79 = tpu.reciprocal %78 {approx = true} : vector<4x8x1xf32> -> vector<4x8x1xf32>
    %80 = vector.broadcast %79 : vector<4x8x1xf32> to vector<4x8x8xf32>
    %81 = arith.mulf %76, %80 : vector<4x8x8xf32>
    %82 = arith.truncf %81 : vector<4x8x8xf32> to vector<4x8x8xbf16>
    %83 = arith.truncf %65 : vector<4x8x32xf32> to vector<4x8x32xbf16>
    "tpu.trace_start"() <{level = 10 : i32, message = "hqk,hkd->hqd"}> : () -> ()
    %cst_26 = arith.constant dense<0.000000e+00> : vector<4x8x32xf32>
    %84 = tpu.matmul %82, %83, %cst_26 {dimension_numbers = #tpu.dot_dimension_numbers<[2], [1], [1], [2], [0, 0, 0, 1, 1, 2], [0], [0]>} : vector<4x8x8xbf16>, vector<4x8x32xbf16>, vector<4x8x32xf32> -> vector<4x8x32xf32>
    "tpu.trace_stop"() : () -> ()
    %85 = tpu.transpose %84, [0, 2, 1] : vector<4x8x32xf32> -> vector<4x32x8xf32>
    %86 = vector.shape_cast %85 : vector<4x32x8xf32> to vector<128x8xf32>
    %87 = tpu.transpose %86, [1, 0] : vector<128x8xf32> -> vector<8x128xf32>
    %88 = arith.truncf %87 : vector<8x128xf32> to vector<8x128xbf16>
    %c0_27 = arith.constant 0 : index
    %c0_28 = arith.constant 0 : index
    %c0_29 = arith.constant 0 : index
    %89 = vector.load %arg9[%c0_27, %c0_28, %c0_29] : memref<1x128x128xbf16, #tpu.memory_space<vmem>>, vector<1x128x128xbf16>
    %90 = vector.shape_cast %89 : vector<1x128x128xbf16> to vector<128x128xbf16>
    %cst_30 = arith.constant dense<0.000000e+00> : vector<8x128xf32>
    %91 = tpu.matmul %88, %90, %cst_30 {dimension_numbers = #tpu.dot_dimension_numbers<[1], [0], [0], [1], [0, 0, 1, 1], [], []>} : vector<8x128xbf16>, vector<128x128xbf16>, vector<8x128xf32> -> vector<8x128xf32>
    %92 = arith.addf %4, %91 : vector<8x128xf32>
    %93 = vector.shape_cast %12 : vector<128xf32> to vector<1x128xf32>
    %94 = vector.broadcast %93 : vector<1x128xf32> to vector<8x128xf32>
    %95 = arith.addf %92, %94 : vector<8x128xf32>
    %cst_31 = arith.constant dense<0.000000e+00> : vector<8xf32>
    %96 = vector.multi_reduction <add>, %95, %cst_31 [1] : vector<8x128xf32> to vector<8xf32>
    %97 = vector.shape_cast %96 : vector<8xf32> to vector<8x1xf32>
    %cst_32 = arith.constant 1.280000e+02 : f32
    %98 = vector.broadcast %cst_32 : f32 to vector<8x1xf32>
    %99 = arith.divf %97, %98 : vector<8x1xf32>
    %100 = vector.broadcast %99 : vector<8x1xf32> to vector<8x128xf32>
    %101 = arith.subf %95, %100 : vector<8x128xf32>
    %102 = arith.mulf %101, %101 : vector<8x128xf32>
    %cst_33 = arith.constant dense<0.000000e+00> : vector<8xf32>
    %103 = vector.multi_reduction <add>, %102, %cst_33 [1] : vector<8x128xf32> to vector<8xf32>
    %104 = vector.shape_cast %103 : vector<8xf32> to vector<8x1xf32>
    %cst_34 = arith.constant 1.280000e+02 : f32
    %105 = vector.broadcast %cst_34 : f32 to vector<8x1xf32>
    %106 = arith.divf %104, %105 : vector<8x1xf32>
    %107 = vector.broadcast %99 : vector<8x1xf32> to vector<8x128xf32>
    %108 = arith.subf %95, %107 : vector<8x128xf32>
    %cst_35 = arith.constant 9.99999974E-6 : f32
    %109 = vector.broadcast %cst_35 : f32 to vector<8x1xf32>
    %110 = arith.addf %106, %109 : vector<8x1xf32>
    %111 = math.rsqrt %110 : vector<8x1xf32>
    %112 = vector.broadcast %111 : vector<8x1xf32> to vector<8x128xf32>
    %113 = arith.mulf %108, %112 : vector<8x128xf32>
    %114 = vector.shape_cast %14 : vector<128xf32> to vector<1x128xf32>
    %115 = vector.broadcast %114 : vector<1x128xf32> to vector<8x128xf32>
    %116 = arith.mulf %113, %115 : vector<8x128xf32>
    %117 = vector.shape_cast %16 : vector<128xf32> to vector<1x128xf32>
    %118 = vector.broadcast %117 : vector<1x128xf32> to vector<8x128xf32>
    %119 = arith.addf %116, %118 : vector<8x128xf32>
    %120 = arith.truncf %119 : vector<8x128xf32> to vector<8x128xbf16>
    %c0_36 = arith.constant 0 : index
    %c0_37 = arith.constant 0 : index
    %c0_38 = arith.constant 0 : index
    %121 = vector.load %arg10[%c0_36, %c0_37, %c0_38] : memref<1x128x256xbf16, #tpu.memory_space<vmem>>, vector<1x128x256xbf16>
    %122 = vector.shape_cast %121 : vector<1x128x256xbf16> to vector<128x256xbf16>
    %cst_39 = arith.constant dense<0.000000e+00> : vector<8x256xf32>
    %123 = tpu.matmul %120, %122, %cst_39 {dimension_numbers = #tpu.dot_dimension_numbers<[1], [0], [0], [1], [0, 0, 1, 1], [], []>} : vector<8x128xbf16>, vector<128x256xbf16>, vector<8x256xf32> -> vector<8x256xf32>
    %124 = vector.broadcast %22 : vector<1x256xf32> to vector<8x256xf32>
    %125 = arith.addf %123, %124 : vector<8x256xf32>
    %126 = arith.mulf %125, %125 : vector<8x256xf32>
    %127 = arith.mulf %125, %126 : vector<8x256xf32>
    %cst_40 = arith.constant 4.471500e-02 : f32
    %128 = vector.broadcast %cst_40 : f32 to vector<8x256xf32>
    %129 = arith.mulf %128, %127 : vector<8x256xf32>
    %130 = arith.addf %125, %129 : vector<8x256xf32>
    %cst_41 = arith.constant 0.797884583 : f32
    %131 = vector.broadcast %cst_41 : f32 to vector<8x256xf32>
    %132 = arith.mulf %131, %130 : vector<8x256xf32>
    %133 = math.tanh %132 : vector<8x256xf32>
    %cst_42 = arith.constant 1.000000e+00 : f32
    %134 = vector.broadcast %cst_42 : f32 to vector<8x256xf32>
    %135 = arith.addf %134, %133 : vector<8x256xf32>
    %cst_43 = arith.constant 5.000000e-01 : f32
    %136 = vector.broadcast %cst_43 : f32 to vector<8x256xf32>
    %137 = arith.mulf %136, %135 : vector<8x256xf32>
    %138 = arith.mulf %125, %137 : vector<8x256xf32>
    %139 = arith.truncf %138 : vector<8x256xf32> to vector<8x256xbf16>
    %c0_44 = arith.constant 0 : index
    %c0_45 = arith.constant 0 : index
    %c0_46 = arith.constant 0 : index
    %140 = vector.load %arg11[%c0_44, %c0_45, %c0_46] : memref<1x256x128xbf16, #tpu.memory_space<vmem>>, vector<1x256x128xbf16>
    %141 = vector.shape_cast %140 : vector<1x256x128xbf16> to vector<256x128xbf16>
    %cst_47 = arith.constant dense<0.000000e+00> : vector<8x128xf32>
    %142 = tpu.matmul %139, %141, %cst_47 {dimension_numbers = #tpu.dot_dimension_numbers<[1], [0], [0], [1], [0, 0, 1, 1], [], []>} : vector<8x256xbf16>, vector<256x128xbf16>, vector<8x128xf32> -> vector<8x128xf32>
    %143 = arith.addf %95, %142 : vector<8x128xf32>
    %144 = vector.shape_cast %18 : vector<128xf32> to vector<1x128xf32>
    %145 = vector.broadcast %144 : vector<1x128xf32> to vector<8x128xf32>
    %146 = arith.addf %143, %145 : vector<8x128xf32>
    %c1_i32 = arith.constant 1 : i32
    %147 = arith.cmpi slt, %arg1, %c1_i32 : i32
    %148 = arith.extui %147 : i1 to i32
    %c0_i32_48 = arith.constant 0 : i32
    %149 = arith.cmpi ne, %148, %c0_i32_48 : i32
    scf.if %149 {
      %c0_51 = arith.constant 0 : index
      %c0_52 = arith.constant 0 : index
      %c0_53 = arith.constant 0 : index
      %153 = vector.load %arg12[%c0_51, %c0_52, %c0_53] : memref<1x8x128xf32, #tpu.memory_space<vmem>>, vector<1x8x128xf32>
      %154 = vector.shape_cast %153 : vector<1x8x128xf32> to vector<8x128xf32>
      %155 = vector.shape_cast %146 : vector<8x128xf32> to vector<1x8x128xf32>
      tpu.vector_store %arg12[%c0_51, %c0_52, %c0_53], %155 {strides = array<i32>} : memref<1x8x128xf32, #tpu.memory_space<vmem>>, vector<1x8x128xf32>,
    } else {
    }
    %c1_i32_49 = arith.constant 1 : i32
    %150 = arith.cmpi eq, %arg1, %c1_i32_49 : i32
    %151 = arith.extui %150 : i1 to i32
    %c0_i32_50 = arith.constant 0 : i32
    %152 = arith.cmpi ne, %151, %c0_i32_50 : i32
    scf.if %152 {
      %c0_51 = arith.constant 0 : index
      %c0_52 = arith.constant 0 : index
      %153 = vector.load %arg4[%c0_51, %c0_52] : memref<2x128xf32, #tpu.memory_space<vmem>>, vector<1x128xf32>
      %154 = vector.shape_cast %153 : vector<1x128xf32> to vector<128xf32>
      %c1 = arith.constant 1 : index
      %c0_53 = arith.constant 0 : index
      %155 = vector.load %arg4[%c1, %c0_53] : memref<2x128xf32, #tpu.memory_space<vmem>>, vector<1x128xf32>
      %156 = vector.shape_cast %155 : vector<1x128xf32> to vector<128xf32>
      %cst_54 = arith.constant dense<0.000000e+00> : vector<8xf32>
      %157 = vector.multi_reduction <add>, %146, %cst_54 [1] : vector<8x128xf32> to vector<8xf32>
      %158 = vector.shape_cast %157 : vector<8xf32> to vector<8x1xf32>
      %cst_55 = arith.constant 1.280000e+02 : f32
      %159 = vector.broadcast %cst_55 : f32 to vector<8x1xf32>
      %160 = arith.divf %158, %159 : vector<8x1xf32>
      %161 = vector.broadcast %160 : vector<8x1xf32> to vector<8x128xf32>
      %162 = arith.subf %146, %161 : vector<8x128xf32>
      %163 = arith.mulf %162, %162 : vector<8x128xf32>
      %cst_56 = arith.constant dense<0.000000e+00> : vector<8xf32>
      %164 = vector.multi_reduction <add>, %163, %cst_56 [1] : vector<8x128xf32> to vector<8xf32>
      %165 = vector.shape_cast %164 : vector<8xf32> to vector<8x1xf32>
      %cst_57 = arith.constant 1.280000e+02 : f32
      %166 = vector.broadcast %cst_57 : f32 to vector<8x1xf32>
      %167 = arith.divf %165, %166 : vector<8x1xf32>
      %168 = vector.broadcast %160 : vector<8x1xf32> to vector<8x128xf32>
      %169 = arith.subf %146, %168 : vector<8x128xf32>
      %cst_58 = arith.constant 9.99999974E-6 : f32
      %170 = vector.broadcast %cst_58 : f32 to vector<8x1xf32>
      %171 = arith.addf %167, %170 : vector<8x1xf32>
      %172 = math.rsqrt %171 : vector<8x1xf32>
      %173 = vector.broadcast %172 : vector<8x1xf32> to vector<8x128xf32>
      %174 = arith.mulf %169, %173 : vector<8x128xf32>
      %175 = vector.shape_cast %154 : vector<128xf32> to vector<1x128xf32>
      %176 = vector.broadcast %175 : vector<1x128xf32> to vector<8x128xf32>
      %177 = arith.mulf %174, %176 : vector<8x128xf32>
      %178 = vector.shape_cast %156 : vector<128xf32> to vector<1x128xf32>
      %179 = vector.broadcast %178 : vector<1x128xf32> to vector<8x128xf32>
      %180 = arith.addf %177, %179 : vector<8x128xf32>
      %c0_59 = arith.constant 0 : index
      %c0_60 = arith.constant 0 : index
      %c0_61 = arith.constant 0 : index
      %181 = vector.load %arg12[%c0_59, %c0_60, %c0_61] : memref<1x8x128xf32, #tpu.memory_space<vmem>>, vector<1x8x128xf32>
      %182 = vector.shape_cast %181 : vector<1x8x128xf32> to vector<8x128xf32>
      %183 = vector.shape_cast %180 : vector<8x128xf32> to vector<1x8x128xf32>
      tpu.vector_store %arg12[%c0_59, %c0_60, %c0_61], %183 {strides = array<i32>} : memref<1x8x128xf32, #tpu.memory_space<vmem>>, vector<1x8x128xf32>,
    } else {
    }
    return
  }
  func.func @transform_0(%arg0: i32, %arg1: i32) -> (i32, i32, i32) {
    %c0_i32 = arith.constant 0 : i32
    %c0_i32_0 = arith.constant 0 : i32
    %c0_i32_1 = arith.constant 0 : i32
    return %arg0, %c0_i32, %c0_i32_0 : i32, i32, i32
  }
  func.func @transform_1(%arg0: i32, %arg1: i32) -> (i32, i32, i32) {
    %c0_i32 = arith.constant 0 : i32
    %c0_i32_0 = arith.constant 0 : i32
    %c0_i32_1 = arith.constant 0 : i32
    return %arg0, %c0_i32, %c0_i32_0 : i32, i32, i32
  }
  func.func @transform_2(%arg0: i32, %arg1: i32) -> (i32, i32) {
    %c0_i32 = arith.constant 0 : i32
    %c0_i32_0 = arith.constant 0 : i32
    %c0_i32_1 = arith.constant 0 : i32
    return %c0_i32, %c0_i32_0 : i32, i32
  }
  func.func @transform_3(%arg0: i32, %arg1: i32) -> (i32, i32, i32) {
    %c0_i32 = arith.constant 0 : i32
    %c0_i32_0 = arith.constant 0 : i32
    %c0_i32_1 = arith.constant 0 : i32
    return %arg1, %c0_i32, %c0_i32_0 : i32, i32, i32
  }
  func.func @transform_4(%arg0: i32, %arg1: i32) -> (i32, i32, i32) {
    %c0_i32 = arith.constant 0 : i32
    %c0_i32_0 = arith.constant 0 : i32
    %c0_i32_1 = arith.constant 0 : i32
    return %arg1, %c0_i32, %c0_i32_0 : i32, i32, i32
  }
  func.func @transform_5(%arg0: i32, %arg1: i32) -> (i32, i32, i32) {
    %c0_i32 = arith.constant 0 : i32
    %c0_i32_0 = arith.constant 0 : i32
    %c0_i32_1 = arith.constant 0 : i32
    return %arg1, %c0_i32, %c0_i32_0 : i32, i32, i32
  }
  func.func @transform_6(%arg0: i32, %arg1: i32) -> (i32, i32, i32) {
    %c0_i32 = arith.constant 0 : i32
    %c0_i32_0 = arith.constant 0 : i32
    %c0_i32_1 = arith.constant 0 : i32
    return %arg1, %c0_i32, %c0_i32_0 : i32, i32, i32
  }
  func.func @transform_7(%arg0: i32, %arg1: i32) -> (i32, i32, i32) {
    %c0_i32 = arith.constant 0 : i32
    %c0_i32_0 = arith.constant 0 : i32
    %c0_i32_1 = arith.constant 0 : i32
    return %arg1, %c0_i32, %c0_i32_0 : i32, i32, i32
  }
  func.func @transform_8(%arg0: i32, %arg1: i32) -> (i32, i32, i32) {
    %c0_i32 = arith.constant 0 : i32
    %c0_i32_0 = arith.constant 0 : i32
    %c0_i32_1 = arith.constant 0 : i32
    return %arg1, %c0_i32, %c0_i32_0 : i32, i32, i32
  }
  func.func @transform_9(%arg0: i32, %arg1: i32) -> (i32, i32, i32) {
    %c0_i32 = arith.constant 0 : i32
    %c0_i32_0 = arith.constant 0 : i32
    %c0_i32_1 = arith.constant 0 : i32
    return %arg1, %c0_i32, %c0_i32_0 : i32, i32, i32
  }
  func.func @transform_10(%arg0: i32, %arg1: i32) -> (i32, i32, i32) {
    %c0_i32 = arith.constant 0 : i32
    %c0_i32_0 = arith.constant 0 : i32
    %c0_i32_1 = arith.constant 0 : i32
    return %arg0, %c0_i32, %c0_i32_0 : i32, i32, i32
  }
}

module attributes {stable_mosaic.version = 11 : i64} {
  func.func @encoder_stack_kernel(%arg0: i32, %arg1: i32, %arg2: memref<1x8x128xf32, #tpu.memory_space<vmem>>, %arg3: memref<1x1x8xf32, #tpu.memory_space<vmem>>, %arg4: memref<2x128xf32, #tpu.memory_space<vmem>>, %arg5: memref<1x6x128xf32, #tpu.memory_space<vmem>>, %arg6: memref<1x1x384xf32, #tpu.memory_space<vmem>>, %arg7: memref<1x1x256xf32, #tpu.memory_space<vmem>>, %arg8: memref<1x128x384xbf16, #tpu.memory_space<vmem>>, %arg9: memref<1x128x128xbf16, #tpu.memory_space<vmem>>, %arg10: memref<1x128x256xbf16, #tpu.memory_space<vmem>>, %arg11: memref<1x256x128xbf16, #tpu.memory_space<vmem>>, %arg12: memref<1x8x128xf32, #tpu.memory_space<vmem>>) attributes {dimension_semantics = [#tpu.dimension_semantics<parallel>, #tpu.dimension_semantics<arbitrary>], iteration_bounds = array<i64: 2, 2>, scalar_prefetch = 0 : i64, scratch_operands = 0 : i64, tpu.core_type = #tpu.core_type<tc>, window_params = [{transform_indices = @transform_0, window_bounds = array<i64: 1, 8, 128>}, {transform_indices = @transform_1, window_bounds = array<i64: 1, 1, 8>}, {pipeline_mode = #tpu.pipeline_mode<synchronous>, transform_indices = @transform_2, window_bounds = array<i64: 2, 128>}, {transform_indices = @transform_3, window_bounds = array<i64: 1, 6, 128>}, {transform_indices = @transform_4, window_bounds = array<i64: 1, 1, 384>}, {transform_indices = @transform_5, window_bounds = array<i64: 1, 1, 256>}, {transform_indices = @transform_6, window_bounds = array<i64: 1, 128, 384>}, {transform_indices = @transform_7, window_bounds = array<i64: 1, 128, 128>}, {transform_indices = @transform_8, window_bounds = array<i64: 1, 128, 256>}, {transform_indices = @transform_9, window_bounds = array<i64: 1, 256, 128>}, {transform_indices = @transform_10, window_bounds = array<i64: 1, 8, 128>}]} {
    %c0_i32 = arith.constant 0 : i32
    %0 = arith.cmpi eq, %arg1, %c0_i32 : i32
    %1 = arith.extui %0 : i1 to i32
    %c0_i32_0 = arith.constant 0 : i32
    %2 = arith.cmpi ne, %1, %c0_i32_0 : i32
    scf.if %2 {
      %c0_51 = arith.constant 0 : index
      %c0_52 = arith.constant 0 : index
      %c0_53 = arith.constant 0 : index
      %153 = vector.load %arg2[%c0_51, %c0_52, %c0_53] : memref<1x8x128xf32, #tpu.memory_space<vmem>>, vector<1x8x128xf32>
      %c0_54 = arith.constant 0 : index
      %c0_55 = arith.constant 0 : index
      %c0_56 = arith.constant 0 : index
      %154 = vector.load %arg12[%c0_54, %c0_55, %c0_56] : memref<1x8x128xf32, #tpu.memory_space<vmem>>, vector<1x8x128xf32>
      tpu.vector_store %arg12[%c0_54, %c0_55, %c0_56], %153 {strides = array<i32>} : memref<1x8x128xf32, #tpu.memory_space<vmem>>, vector<1x8x128xf32>,
    } else {
    }
    %c0 = arith.constant 0 : index
    %c0_1 = arith.constant 0 : index
    %c0_2 = arith.constant 0 : index
    %3 = vector.load %arg12[%c0, %c0_1, %c0_2] : memref<1x8x128xf32, #tpu.memory_space<vmem>>, vector<1x8x128xf32>
    %4 = vector.shape_cast %3 : vector<1x8x128xf32> to vector<8x128xf32>
    %c0_3 = arith.constant 0 : index
    %c0_4 = arith.constant 0 : index
    %c0_5 = arith.constant 0 : index
    %5 = vector.load %arg5[%c0_3, %c0_4, %c0_5] : memref<1x6x128xf32, #tpu.memory_space<vmem>>, vector<1x6x128xf32>
    %6 = vector.shape_cast %5 : vector<1x6x128xf32> to vector<6x128xf32>
    %7 = vector.extract_strided_slice %6 {offsets = [0, 0], sizes = [1, 128], strides = [1, 1]} : vector<6x128xf32> to vector<1x128xf32>
    %8 = vector.shape_cast %7 : vector<1x128xf32> to vector<128xf32>
    %9 = vector.extract_strided_slice %6 {offsets = [1, 0], sizes = [1, 128], strides = [1, 1]} : vector<6x128xf32> to vector<1x128xf32>
    %10 = vector.shape_cast %9 : vector<1x128xf32> to vector<128xf32>
    %11 = vector.extract_strided_slice %6 {offsets = [2, 0], sizes = [1, 128], strides = [1, 1]} : vector<6x128xf32> to vector<1x128xf32>
    %12 = vector.shape_cast %11 : vector<1x128xf32> to vector<128xf32>
    %13 = vector.extract_strided_slice %6 {offsets = [3, 0], sizes = [1, 128], strides = [1, 1]} : vector<6x128xf32> to vector<1x128xf32>
    %14 = vector.shape_cast %13 : vector<1x128xf32> to vector<128xf32>
    %15 = vector.extract_strided_slice %6 {offsets = [4, 0], sizes = [1, 128], strides = [1, 1]} : vector<6x128xf32> to vector<1x128xf32>
    %16 = vector.shape_cast %15 : vector<1x128xf32> to vector<128xf32>
    %17 = vector.extract_strided_slice %6 {offsets = [5, 0], sizes = [1, 128], strides = [1, 1]} : vector<6x128xf32> to vector<1x128xf32>
    %18 = vector.shape_cast %17 : vector<1x128xf32> to vector<128xf32>
    %c0_6 = arith.constant 0 : index
    %c0_7 = arith.constant 0 : index
    %c0_8 = arith.constant 0 : index
    %19 = vector.load %arg6[%c0_6, %c0_7, %c0_8] : memref<1x1x384xf32, #tpu.memory_space<vmem>>, vector<1x1x384xf32>
    %20 = vector.shape_cast %19 : vector<1x1x384xf32> to vector<1x384xf32>
    %c0_9 = arith.constant 0 : index
    %c0_10 = arith.constant 0 : index
    %c0_11 = arith.constant 0 : index
    %21 = vector.load %arg7[%c0_9, %c0_10, %c0_11] : memref<1x1x256xf32, #tpu.memory_space<vmem>>, vector<1x1x256xf32>
    %22 = vector.shape_cast %21 : vector<1x1x256xf32> to vector<1x256xf32>
    %c0_12 = arith.constant 0 : index
    %c0_13 = arith.constant 0 : index
    %c0_14 = arith.constant 0 : index
    %23 = vector.load %arg3[%c0_12, %c0_13, %c0_14] : memref<1x1x8xf32, #tpu.memory_space<vmem>>, vector<1x1x8xf32>
    %24 = vector.shape_cast %23 : vector<1x1x8xf32> to vector<1x8xf32>
    %cst = arith.constant dense<0.000000e+00> : vector<8xf32>
    %25 = vector.multi_reduction <add>, %4, %cst [1] : vector<8x128xf32> to vector<8xf32>
    %26 = vector.shape_cast %25 : vector<8xf32> to vector<8x1xf32>
    %cst_15 = arith.constant 1.280000e+02 : f32
    %27 = vector.broadcast %cst_15 : f32 to vector<8x1xf32>
    %28 = arith.divf %26, %27 : vector<8x1xf32>
    %29 = vector.broadcast %28 : vector<8x1xf32> to vector<8x128xf32>
    %30 = arith.subf %4, %29 : vector<8x128xf32>
    %31 = arith.mulf %30, %30 : vector<8x128xf32>
    %cst_16 = arith.constant dense<0.000000e+00> : vector<8xf32>
    %32 = vector.multi_reduction <add>, %31, %cst_16 [1] : vector<8x128xf32> to vector<8xf32>
    %33 = vector.shape_cast %32 : vector<8xf32> to vector<8x1xf32>
    %cst_17 = arith.constant 1.280000e+02 : f32
    %34 = vector.broadcast %cst_17 : f32 to vector<8x1xf32>
    %35 = arith.divf %33, %34 : vector<8x1xf32>
    %36 = vector.broadcast %28 : vector<8x1xf32> to vector<8x128xf32>
    %37 = arith.subf %4, %36 : vector<8x128xf32>
    %cst_18 = arith.constant 9.99999974E-6 : f32
    %38 = vector.broadcast %cst_18 : f32 to vector<8x1xf32>
    %39 = arith.addf %35, %38 : vector<8x1xf32>
    %40 = math.rsqrt %39 : vector<8x1xf32>
    %41 = vector.broadcast %40 : vector<8x1xf32> to vector<8x128xf32>
    %42 = arith.mulf %37, %41 : vector<8x128xf32>
    %43 = vector.shape_cast %8 : vector<128xf32> to vector<1x128xf32>
    %44 = vector.broadcast %43 : vector<1x128xf32> to vector<8x128xf32>
    %45 = arith.mulf %42, %44 : vector<8x128xf32>
    %46 = vector.shape_cast %10 : vector<128xf32> to vector<1x128xf32>
    %47 = vector.broadcast %46 : vector<1x128xf32> to vector<8x128xf32>
    %48 = arith.addf %45, %47 : vector<8x128xf32>
    %49 = arith.truncf %48 : vector<8x128xf32> to vector<8x128xbf16>
    %c0_19 = arith.constant 0 : index
    %c0_20 = arith.constant 0 : index
    %c0_21 = arith.constant 0 : index
    %50 = vector.load %arg8[%c0_19, %c0_20, %c0_21] : memref<1x128x384xbf16, #tpu.memory_space<vmem>>, vector<1x128x384xbf16>
    %51 = vector.shape_cast %50 : vector<1x128x384xbf16> to vector<128x384xbf16>
    %cst_22 = arith.constant dense<0.000000e+00> : vector<8x384xf32>
    %52 = tpu.matmul %49, %51, %cst_22 {dimension_numbers = #tpu.dot_dimension_numbers<[1], [0], [0], [1], [0, 0, 1, 1], [], []>} : vector<8x128xbf16>, vector<128x384xbf16>, vector<8x384xf32> -> vector<8x384xf32>
    %53 = vector.broadcast %20 : vector<1x384xf32> to vector<8x384xf32>
    %54 = arith.addf %52, %53 : vector<8x384xf32>
    %55 = vector.extract_strided_slice %54 {offsets = [0, 0], sizes = [8, 128], strides = [1, 1]} : vector<8x384xf32> to vector<8x128xf32>
    %56 = vector.extract_strided_slice %54 {offsets = [0, 128], sizes = [8, 128], strides = [1, 1]} : vector<8x384xf32> to vector<8x128xf32>
    %57 = vector.extract_strided_slice %54 {offsets = [0, 256], sizes = [8, 128], strides = [1, 1]} : vector<8x384xf32> to vector<8x128xf32>
    %58 = tpu.transpose %55, [1, 0] : vector<8x128xf32> -> vector<128x8xf32>
    %59 = vector.shape_cast %58 : vector<128x8xf32> to vector<4x32x8xf32>
    %60 = tpu.transpose %59, [0, 2, 1] : vector<4x32x8xf32> -> vector<4x8x32xf32>
    %61 = tpu.transpose %56, [1, 0] : vector<8x128xf32> -> vector<128x8xf32>
    %62 = vector.shape_cast %61 : vector<128x8xf32> to vector<4x32x8xf32>
    %63 = tpu.transpose %57, [1, 0] : vector<8x128xf32> -> vector<128x8xf32>
    %64 = vector.shape_cast %63 : vector<128x8xf32> to vector<4x32x8xf32>
    %65 = tpu.transpose %64, [0, 2, 1] : vector<4x32x8xf32> -> vector<4x8x32xf32>
    %66 = arith.truncf %60 : vector<4x8x32xf32> to vector<4x8x32xbf16>
    %67 = arith.truncf %62 : vector<4x32x8xf32> to vector<4x32x8xbf16>
    "tpu.trace_start"() <{level = 10 : i32, message = "hqd,hdk->hqk"}> : () -> ()
    %cst_23 = arith.constant dense<0.000000e+00> : vector<4x8x8xf32>
    %68 = tpu.matmul %66, %67, %cst_23 {dimension_numbers = #tpu.dot_dimension_numbers<[2], [1], [1], [2], [0, 0, 0, 1, 1, 2], [0], [0]>} : vector<4x8x32xbf16>, vector<4x32x8xbf16>, vector<4x8x8xf32> -> vector<4x8x8xf32>
    "tpu.trace_stop"() : () -> ()
    %69 = vector.shape_cast %24 : vector<1x8xf32> to vector<1x1x8xf32>
    %70 = vector.broadcast %69 : vector<1x1x8xf32> to vector<4x8x8xf32>
    %71 = arith.addf %68, %70 : vector<4x8x8xf32>
    %cst_24 = arith.constant dense<0xFF800000> : vector<4x8xf32>
    %72 = vector.multi_reduction <maximumf>, %71, %cst_24 [2] : vector<4x8x8xf32> to vector<4x8xf32>
    %73 = vector.shape_cast %72 : vector<4x8xf32> to vector<4x8x1xf32>
    %74 = vector.broadcast %73 : vector<4x8x1xf32> to vector<4x8x8xf32>
    %75 = arith.subf %71, %74 : vector<4x8x8xf32>
    %76 = math.exp %75 : vector<4x8x8xf32>
    %cst_25 = arith.constant dense<0.000000e+00> : vector<4x8xf32>
    %77 = vector.multi_reduction <add>, %76, %cst_25 [2] : vector<4x8x8xf32> to vector<4x8xf32>
    %78 = vector.shape_cast %77 : vector<4x8xf32> to vector<4x8x1xf32>
    %79 = tpu.reciprocal %78 {approx = true} : vector<4x8x1xf32> -> vector<4x8x1xf32>
    %80 = vector.broadcast %79 : vector<4x8x1xf32> to vector<4x8x8xf32>
    %81 = arith.mulf %76, %80 : vector<4x8x8xf32>
    %82 = arith.truncf %81 : vector<4x8x8xf32> to vector<4x8x8xbf16>
    %83 = arith.truncf %65 : vector<4x8x32xf32> to vector<4x8x32xbf16>
    "tpu.trace_start"() <{level = 10 : i32, message = "hqk,hkd->hqd"}> : () -> ()
    %cst_26 = arith.constant dense<0.000000e+00> : vector<4x8x32xf32>
    %84 = tpu.matmul %82, %83, %cst_26 {dimension_numbers = #tpu.dot_dimension_numbers<[2], [1], [1], [2], [0, 0, 0, 1, 1, 2], [0], [0]>} : vector<4x8x8xbf16>, vector<4x8x32xbf16>, vector<4x8x32xf32> -> vector<4x8x32xf32>
    "tpu.trace_stop"() : () -> ()
    %85 = tpu.transpose %84, [0, 2, 1] : vector<4x8x32xf32> -> vector<4x32x8xf32>
    %86 = vector.shape_cast %85 : vector<4x32x8xf32> to vector<128x8xf32>
    %87 = tpu.transpose %86, [1, 0] : vector<128x8xf32> -> vector<8x128xf32>
    %88 = arith.truncf %87 : vector<8x128xf32> to vector<8x128xbf16>
    %c0_27 = arith.constant 0 : index
    %c0_28 = arith.constant 0 : index
    %c0_29 = arith.constant 0 : index
    %89 = vector.load %arg9[%c0_27, %c0_28, %c0_29] : memref<1x128x128xbf16, #tpu.memory_space<vmem>>, vector<1x128x128xbf16>
    %90 = vector.shape_cast %89 : vector<1x128x128xbf16> to vector<128x128xbf16>
    %cst_30 = arith.constant dense<0.000000e+00> : vector<8x128xf32>
    %91 = tpu.matmul %88, %90, %cst_30 {dimension_numbers = #tpu.dot_dimension_numbers<[1], [0], [0], [1], [0, 0, 1, 1], [], []>} : vector<8x128xbf16>, vector<128x128xbf16>, vector<8x128xf32> -> vector<8x128xf32>
    %92 = arith.addf %4, %91 : vector<8x128xf32>
    %93 = vector.shape_cast %12 : vector<128xf32> to vector<1x128xf32>
    %94 = vector.broadcast %93 : vector<1x128xf32> to vector<8x128xf32>
    %95 = arith.addf %92, %94 : vector<8x128xf32>
    %cst_31 = arith.constant dense<0.000000e+00> : vector<8xf32>
    %96 = vector.multi_reduction <add>, %95, %cst_31 [1] : vector<8x128xf32> to vector<8xf32>
    %97 = vector.shape_cast %96 : vector<8xf32> to vector<8x1xf32>
    %cst_32 = arith.constant 1.280000e+02 : f32
    %98 = vector.broadcast %cst_32 : f32 to vector<8x1xf32>
    %99 = arith.divf %97, %98 : vector<8x1xf32>
    %100 = vector.broadcast %99 : vector<8x1xf32> to vector<8x128xf32>
    %101 = arith.subf %95, %100 : vector<8x128xf32>
    %102 = arith.mulf %101, %101 : vector<8x128xf32>
    %cst_33 = arith.constant dense<0.000000e+00> : vector<8xf32>
    %103 = vector.multi_reduction <add>, %102, %cst_33 [1] : vector<8x128xf32> to vector<8xf32>
    %104 = vector.shape_cast %103 : vector<8xf32> to vector<8x1xf32>
    %cst_34 = arith.constant 1.280000e+02 : f32
    %105 = vector.broadcast %cst_34 : f32 to vector<8x1xf32>
    %106 = arith.divf %104, %105 : vector<8x1xf32>
    %107 = vector.broadcast %99 : vector<8x1xf32> to vector<8x128xf32>
    %108 = arith.subf %95, %107 : vector<8x128xf32>
    %cst_35 = arith.constant 9.99999974E-6 : f32
    %109 = vector.broadcast %cst_35 : f32 to vector<8x1xf32>
    %110 = arith.addf %106, %109 : vector<8x1xf32>
    %111 = math.rsqrt %110 : vector<8x1xf32>
    %112 = vector.broadcast %111 : vector<8x1xf32> to vector<8x128xf32>
    %113 = arith.mulf %108, %112 : vector<8x128xf32>
    %114 = vector.shape_cast %14 : vector<128xf32> to vector<1x128xf32>
    %115 = vector.broadcast %114 : vector<1x128xf32> to vector<8x128xf32>
    %116 = arith.mulf %113, %115 : vector<8x128xf32>
    %117 = vector.shape_cast %16 : vector<128xf32> to vector<1x128xf32>
    %118 = vector.broadcast %117 : vector<1x128xf32> to vector<8x128xf32>
    %119 = arith.addf %116, %118 : vector<8x128xf32>
    %120 = arith.truncf %119 : vector<8x128xf32> to vector<8x128xbf16>
    %c0_36 = arith.constant 0 : index
    %c0_37 = arith.constant 0 : index
    %c0_38 = arith.constant 0 : index
    %121 = vector.load %arg10[%c0_36, %c0_37, %c0_38] : memref<1x128x256xbf16, #tpu.memory_space<vmem>>, vector<1x128x256xbf16>
    %122 = vector.shape_cast %121 : vector<1x128x256xbf16> to vector<128x256xbf16>
    %cst_39 = arith.constant dense<0.000000e+00> : vector<8x256xf32>
    %123 = tpu.matmul %120, %122, %cst_39 {dimension_numbers = #tpu.dot_dimension_numbers<[1], [0], [0], [1], [0, 0, 1, 1], [], []>} : vector<8x128xbf16>, vector<128x256xbf16>, vector<8x256xf32> -> vector<8x256xf32>
    %124 = vector.broadcast %22 : vector<1x256xf32> to vector<8x256xf32>
    %125 = arith.addf %123, %124 : vector<8x256xf32>
    %126 = arith.mulf %125, %125 : vector<8x256xf32>
    %127 = arith.mulf %125, %126 : vector<8x256xf32>
    %cst_40 = arith.constant 4.471500e-02 : f32
    %128 = vector.broadcast %cst_40 : f32 to vector<8x256xf32>
    %129 = arith.mulf %128, %127 : vector<8x256xf32>
    %130 = arith.addf %125, %129 : vector<8x256xf32>
    %cst_41 = arith.constant 0.797884583 : f32
    %131 = vector.broadcast %cst_41 : f32 to vector<8x256xf32>
    %132 = arith.mulf %131, %130 : vector<8x256xf32>
    %133 = math.tanh %132 : vector<8x256xf32>
    %cst_42 = arith.constant 1.000000e+00 : f32
    %134 = vector.broadcast %cst_42 : f32 to vector<8x256xf32>
    %135 = arith.addf %134, %133 : vector<8x256xf32>
    %cst_43 = arith.constant 5.000000e-01 : f32
    %136 = vector.broadcast %cst_43 : f32 to vector<8x256xf32>
    %137 = arith.mulf %136, %135 : vector<8x256xf32>
    %138 = arith.mulf %125, %137 : vector<8x256xf32>
    %139 = arith.truncf %138 : vector<8x256xf32> to vector<8x256xbf16>
    %c0_44 = arith.constant 0 : index
    %c0_45 = arith.constant 0 : index
    %c0_46 = arith.constant 0 : index
    %140 = vector.load %arg11[%c0_44, %c0_45, %c0_46] : memref<1x256x128xbf16, #tpu.memory_space<vmem>>, vector<1x256x128xbf16>
    %141 = vector.shape_cast %140 : vector<1x256x128xbf16> to vector<256x128xbf16>
    %cst_47 = arith.constant dense<0.000000e+00> : vector<8x128xf32>
    %142 = tpu.matmul %139, %141, %cst_47 {dimension_numbers = #tpu.dot_dimension_numbers<[1], [0], [0], [1], [0, 0, 1, 1], [], []>} : vector<8x256xbf16>, vector<256x128xbf16>, vector<8x128xf32> -> vector<8x128xf32>
    %143 = arith.addf %95, %142 : vector<8x128xf32>
    %144 = vector.shape_cast %18 : vector<128xf32> to vector<1x128xf32>
    %145 = vector.broadcast %144 : vector<1x128xf32> to vector<8x128xf32>
    %146 = arith.addf %143, %145 : vector<8x128xf32>
    %c1_i32 = arith.constant 1 : i32
    %147 = arith.cmpi slt, %arg1, %c1_i32 : i32
    %148 = arith.extui %147 : i1 to i32
    %c0_i32_48 = arith.constant 0 : i32
    %149 = arith.cmpi ne, %148, %c0_i32_48 : i32
    scf.if %149 {
      %c0_51 = arith.constant 0 : index
      %c0_52 = arith.constant 0 : index
      %c0_53 = arith.constant 0 : index
      %153 = vector.load %arg12[%c0_51, %c0_52, %c0_53] : memref<1x8x128xf32, #tpu.memory_space<vmem>>, vector<1x8x128xf32>
      %154 = vector.shape_cast %153 : vector<1x8x128xf32> to vector<8x128xf32>
      %155 = vector.shape_cast %146 : vector<8x128xf32> to vector<1x8x128xf32>
      tpu.vector_store %arg12[%c0_51, %c0_52, %c0_53], %155 {strides = array<i32>} : memref<1x8x128xf32, #tpu.memory_space<vmem>>, vector<1x8x128xf32>,
    } else {
    }
    %c1_i32_49 = arith.constant 1 : i32
    %150 = arith.cmpi eq, %arg1, %c1_i32_49 : i32
    %151 = arith.extui %150 : i1 to i32
    %c0_i32_50 = arith.constant 0 : i32
    %152 = arith.cmpi ne, %151, %c0_i32_50 : i32
    scf.if %152 {
      %c0_51 = arith.constant 0 : index
      %c0_52 = arith.constant 0 : index
      %153 = vector.load %arg4[%c0_51, %c0_52] : memref<2x128xf32, #tpu.memory_space<vmem>>, vector<1x128xf32>
      %154 = vector.shape_cast %153 : vector<1x128xf32> to vector<128xf32>
      %c1 = arith.constant 1 : index
      %c0_53 = arith.constant 0 : index
      %155 = vector.load %arg4[%c1, %c0_53] : memref<2x128xf32, #tpu.memory_space<vmem>>, vector<1x128xf32>
      %156 = vector.shape_cast %155 : vector<1x128xf32> to vector<128xf32>
      %cst_54 = arith.constant dense<0.000000e+00> : vector<8xf32>
      %157 = vector.multi_reduction <add>, %146, %cst_54 [1] : vector<8x128xf32> to vector<8xf32>
      %158 = vector.shape_cast %157 : vector<8xf32> to vector<8x1xf32>
      %cst_55 = arith.constant 1.280000e+02 : f32
      %159 = vector.broadcast %cst_55 : f32 to vector<8x1xf32>
      %160 = arith.divf %158, %159 : vector<8x1xf32>
      %161 = vector.broadcast %160 : vector<8x1xf32> to vector<8x128xf32>
      %162 = arith.subf %146, %161 : vector<8x128xf32>
      %163 = arith.mulf %162, %162 : vector<8x128xf32>
      %cst_56 = arith.constant dense<0.000000e+00> : vector<8xf32>
      %164 = vector.multi_reduction <add>, %163, %cst_56 [1] : vector<8x128xf32> to vector<8xf32>
      %165 = vector.shape_cast %164 : vector<8xf32> to vector<8x1xf32>
      %cst_57 = arith.constant 1.280000e+02 : f32
      %166 = vector.broadcast %cst_57 : f32 to vector<8x1xf32>
      %167 = arith.divf %165, %166 : vector<8x1xf32>
      %168 = vector.broadcast %160 : vector<8x1xf32> to vector<8x128xf32>
      %169 = arith.subf %146, %168 : vector<8x128xf32>
      %cst_58 = arith.constant 9.99999974E-6 : f32
      %170 = vector.broadcast %cst_58 : f32 to vector<8x1xf32>
      %171 = arith.addf %167, %170 : vector<8x1xf32>
      %172 = math.rsqrt %171 : vector<8x1xf32>
      %173 = vector.broadcast %172 : vector<8x1xf32> to vector<8x128xf32>
      %174 = arith.mulf %169, %173 : vector<8x128xf32>
      %175 = vector.shape_cast %154 : vector<128xf32> to vector<1x128xf32>
      %176 = vector.broadcast %175 : vector<1x128xf32> to vector<8x128xf32>
      %177 = arith.mulf %174, %176 : vector<8x128xf32>
      %178 = vector.shape_cast %156 : vector<128xf32> to vector<1x128xf32>
      %179 = vector.broadcast %178 : vector<1x128xf32> to vector<8x128xf32>
      %180 = arith.addf %177, %179 : vector<8x128xf32>
      %c0_59 = arith.constant 0 : index
      %c0_60 = arith.constant 0 : index
      %c0_61 = arith.constant 0 : index
      %181 = vector.load %arg12[%c0_59, %c0_60, %c0_61] : memref<1x8x128xf32, #tpu.memory_space<vmem>>, vector<1x8x128xf32>
      %182 = vector.shape_cast %181 : vector<1x8x128xf32> to vector<8x128xf32>
      %183 = vector.shape_cast %180 : vector<8x128xf32> to vector<1x8x128xf32>
      tpu.vector_store %arg12[%c0_59, %c0_60, %c0_61], %183 {strides = array<i32>} : memref<1x8x128xf32, #tpu.memory_space<vmem>>, vector<1x8x128xf32>,
    } else {
    }
    return
  }
  func.func @transform_0(%arg0: i32, %arg1: i32) -> (i32, i32, i32) {
    %c0_i32 = arith.constant 0 : i32
    %c0_i32_0 = arith.constant 0 : i32
    %c0_i32_1 = arith.constant 0 : i32
    return %arg0, %c0_i32, %c0_i32_0 : i32, i32, i32
  }
  func.func @transform_1(%arg0: i32, %arg1: i32) -> (i32, i32, i32) {
    %c0_i32 = arith.constant 0 : i32
    %c0_i32_0 = arith.constant 0 : i32
    %c0_i32_1 = arith.constant 0 : i32
    return %arg0, %c0_i32, %c0_i32_0 : i32, i32, i32
  }
  func.func @transform_2(%arg0: i32, %arg1: i32) -> (i32, i32) {
    %c0_i32 = arith.constant 0 : i32
    %c0_i32_0 = arith.constant 0 : i32
    %c0_i32_1 = arith.constant 0 : i32
    return %c0_i32, %c0_i32_0 : i32, i32
  }
  func.func @transform_3(%arg0: i32, %arg1: i32) -> (i32, i32, i32) {
    %c0_i32 = arith.constant 0 : i32
    %c0_i32_0 = arith.constant 0 : i32
    %c0_i32_1 = arith.constant 0 : i32
    return %arg1, %c0_i32, %c0_i32_0 : i32, i32, i32
  }
  func.func @transform_4(%arg0: i32, %arg1: i32) -> (i32, i32, i32) {
    %c0_i32 = arith.constant 0 : i32
    %c0_i32_0 = arith.constant 0 : i32
    %c0_i32_1 = arith.constant 0 : i32
    return %arg1, %c0_i32, %c0_i32_0 : i32, i32, i32
  }
  func.func @transform_5(%arg0: i32, %arg1: i32) -> (i32, i32, i32) {
    %c0_i32 = arith.constant 0 : i32
    %c0_i32_0 = arith.constant 0 : i32
    %c0_i32_1 = arith.constant 0 : i32
    return %arg1, %c0_i32, %c0_i32_0 : i32, i32, i32
  }
  func.func @transform_6(%arg0: i32, %arg1: i32) -> (i32, i32, i32) {
    %c0_i32 = arith.constant 0 : i32
    %c0_i32_0 = arith.constant 0 : i32
    %c0_i32_1 = arith.constant 0 : i32
    return %arg1, %c0_i32, %c0_i32_0 : i32, i32, i32
  }
  func.func @transform_7(%arg0: i32, %arg1: i32) -> (i32, i32, i32) {
    %c0_i32 = arith.constant 0 : i32
    %c0_i32_0 = arith.constant 0 : i32
    %c0_i32_1 = arith.constant 0 : i32
    return %arg1, %c0_i32, %c0_i32_0 : i32, i32, i32
  }
  func.func @transform_8(%arg0: i32, %arg1: i32) -> (i32, i32, i32) {
    %c0_i32 = arith.constant 0 : i32
    %c0_i32_0 = arith.constant 0 : i32
    %c0_i32_1 = arith.constant 0 : i32
    return %arg1, %c0_i32, %c0_i32_0 : i32, i32, i32
  }
  func.func @transform_9(%arg0: i32, %arg1: i32) -> (i32, i32, i32) {
    %c0_i32 = arith.constant 0 : i32
    %c0_i32_0 = arith.constant 0 : i32
    %c0_i32_1 = arith.constant 0 : i32
    return %arg1, %c0_i32, %c0_i32_0 : i32, i32, i32
  }
  func.func @transform_10(%arg0: i32, %arg1: i32) -> (i32, i32, i32) {
    %c0_i32 = arith.constant 0 : i32
    %c0_i32_0 = arith.constant 0 : i32
    %c0_i32_1 = arith.constant 0 : i32
    return %arg0, %c0_i32, %c0_i32_0 : i32, i32, i32
  }
}

</mosaic_0001>

<llo_original>
// kernel: tpu_custom_call.1
$region0: #{tpu_custom_call.1}
  #allocation0 [shape = 'u32[]', space=smem, size = 0x4, offset = 0x4, fixed_abs, tag = 'smem constant byte address 0x4 - core index']
  #allocation1 [shape = 'u32[144,128]{1,0:T(1,128)}', space=vmem, size = 0x12000, scoped, tag = 'internal scratch']
  %s0 = inlined_call_operand.vmem [shape: f32[2,8,128], index: 0, kind: input, shape index: {}]
  %s1 = inlined_call_operand.vmem [shape: f32[2,1,8], index: 1, kind: input, shape index: {}]
  %s2 = inlined_call_operand.vmem [shape: f32[2,128], index: 2, kind: input, shape index: {}]
  %s3 = inlined_call_operand.vmem [shape: f32[2,6,128], index: 3, kind: input, shape index: {}]
  %s4 = inlined_call_operand.vmem [shape: f32[2,1,384], index: 4, kind: input, shape index: {}]
  %s5 = inlined_call_operand.vmem [shape: f32[2,1,256], index: 5, kind: input, shape index: {}]
  %s6 = inlined_call_operand.hbm [shape: bf16[2,128,384], index: 6, kind: input, shape index: {}]
  %s7 = inlined_call_operand.hbm [shape: bf16[2,128,128], index: 7, kind: input, shape index: {}]
  %s8 = inlined_call_operand.hbm [shape: bf16[2,128,256], index: 8, kind: input, shape index: {}]
  %s9 = inlined_call_operand.hbm [shape: bf16[2,256,128], index: 9, kind: input, shape index: {}]
  %s10 = inlined_call_operand.hbm [shape: f32[2,8,128], index: 10, kind: output, shape index: {}]
  %s11 = sld [smem:[#allocation0]]
  $region101: #{tpu_custom_call.1} parent=0
    _
  %s13 = ssub.s32 1, %s11
  %s14 = scalar_select 0, %s13, %s11
  $region1: #{tpu_custom_call.1} parent=0
    #allocation2 [shape = 'u8[196608]{0}', space=vmem, size = 0x30000, scoped, tag = 'input window, operand 6']
    #allocation3 [shape = 's32[2]{0}', space=sflag, size = 0x8, scoped, tag = 'scoped memory for tpu_custom_call.1']
    #allocation4 [shape = 's32[2]{0}', space=sflag, size = 0x8, scoped, tag = 'scoped memory for tpu_custom_call.1']
    #allocation5 [shape = 'u8[65536]{0}', space=vmem, size = 0x10000, scoped, tag = 'input window, operand 7']
    #allocation6 [shape = 's32[2]{0}', space=sflag, size = 0x8, scoped, tag = 'scoped memory for tpu_custom_call.1']
    #allocation7 [shape = 'u8[131072]{0}', space=vmem, size = 0x20000, scoped, tag = 'input window, operand 8']
    #allocation8 [shape = 'u8[131072]{0}', space=vmem, size = 0x20000, scoped, tag = 'input window, operand 9']
    #allocation9 [shape = 's32[2]{0}', space=sflag, size = 0x8, scoped, tag = 'scoped memory for tpu_custom_call.1']
    #allocation10 [shape = 'u8[8192]{0}', space=vmem, size = 0x2000, scoped, tag = 'output window, operand 0']
    %15 = vsyncpa [#allocation3], 0
    %s16 = scalar_lea.sflag [#allocation3], 1
    %17 = vsyncpa %s16, 0
    %18 = vsyncpa [#allocation6], 0
    %s19 = scalar_lea.sflag [#allocation6], 1
    %20 = vsyncpa %s19, 0
    %21 = vsyncpa [#allocation9], 0
    %s22 = scalar_lea.sflag [#allocation9], 1
    %23 = vsyncpa %s22, 0
    %24 = vsyncpa [#allocation4], 0
    %s25 = scalar_lea.sflag [#allocation4], 1
    %26 = vsyncpa %s25, 0
    loop: start=0, step=1, limit=6
    $region2: #{tpu_custom_call.1} parent=1 // loop_pre_header
      _
    $region3: #{tpu_custom_call.1} parent=1 // loop_header
      %s28 = sphi 0, %s32
      %p29 = scmp.ge.s32.totalorder %s28, 6
      %s35 = sphi 0, %s47
      %s36 = sphi 0, %s43
      %s37 = sphi 0, %s35
      %s38 = sphi 0, %s36
      %s39 = sphi 0, %s37
      %s40 = sphi 0, %s38
      %s50 = sphi 0, %s52
      %s53 = sphi 0, %s50
      %s54 = sphi 0, %s53
      %s70 = sphi 0, %s54
      %s76 = sphi 0, %s78
      %s79 = sphi 0, %s76
      %s80 = sphi 0, %s79
      %s96 = sphi 0, %s80
      %s100 = sphi 0, %s100
      %s102 = sphi 0, %s100
      %s103 = sphi 0, %s102
      %s117 = sphi 0, %s103
      %s123 = sphi 0, %s125
      %s126 = sphi 0, %s123
      %s127 = sphi 0, %s126
      %s143 = sphi 0, %s127
      %s149 = sphi 0, %s151
      %s152 = sphi 0, %s149
      %s153 = sphi 0, %s152
      %s169 = sphi 0, %s153
      %s175 = sphi 0, %s177
      %s178 = sphi 0, %s175
      %s179 = sphi 0, %s178
      %s195 = sphi 0, %s179
      %s201 = sphi 0, %s203
      %s204 = sphi 0, %s201
      %s205 = sphi 0, %s204
      %s221 = sphi 0, %s205
      %s227 = sphi 0, %s229
      %s230 = sphi 0, %s227
      %s231 = sphi 0, %s230
      %s247 = sphi 0, %s231
      %s253 = sphi 0, %s255
      %s256 = sphi 0, %s253
      %s257 = sphi 0, %s256
      %s273 = sphi 0, %s257
      %s279 = sphi 0, %s281
      %s282 = sphi 0, %s279
      %s283 = sphi 0, %s282
      %s299 = sphi 0, %s283
      %s305 = sphi 0, %s307
      %s308 = sphi 0, %s305
      %s309 = sphi 0, %s308
      %s325 = sphi 0, %s309
    $region4: #{tpu_custom_call.1} parent=1 // loop_header_branch
      %31 = sbr.rel (%p29) target = $region8
    $region5: #{tpu_custom_call.1} parent=1 // loop_body
      %s33 = ssub.s32 %s28, 1
      %s34 = ssub.s32 %s28, 2
      %s41 = sadd.s32 1, %s36
      %p42 = scmp.ge.s32.totalorder %s41, 2
      %s43 = scalar_select %p42, 0, %s41
      %s44 = sadd.s32 1, %s35
      %s45 = scalar_select %p42, %s44, %s35
      %p46 = scmp.ge.s32.totalorder %s45, 2
      %s47 = scalar_select %p46, 0, %s45
      %s48 = ssub.s32 %s35, %s47
      %p49 = scmp.eq.s32.totalorder %s48, 0
      %s51 = sadd.s32 %s50, 1
      %s52 = scalar_select %p49, %s50, %s51
      %p55 = pneg %p49
      %p56 = scmp.eq.s32.totalorder %s28, 3
      %p57 = por %p55, %p56
      %p58 = scmp.ne.s32.totalorder %s50, %s53
      %p59 = scmp.eq.s32.totalorder %s28, 0
      %p60 = por %p58, %p59
      %p61 = scmp.ne.s32.totalorder %s50, %s53
      %p62 = scmp.eq.s32.totalorder %s33, 3
      %p63 = por %p61, %p62
      %p64 = scmp.ne.s32.totalorder %s53, %s54
      %p65 = scmp.eq.s32.totalorder %s33, 0
      %p66 = por %p64, %p65
      %p67 = scmp.ne.s32.totalorder %s53, %s54
      %p68 = scmp.eq.s32.totalorder %s34, 3
      %p69 = por %p67, %p68
      %p71 = scmp.ne.s32.totalorder %s54, %s70
      %p72 = scmp.eq.s32.totalorder %s34, 0
      %p73 = por %p71, %p72
      %s74 = ssub.s32 %s35, %s47
      %p75 = scmp.eq.s32.totalorder %s74, 0
      %s77 = sadd.s32 %s76, 1
      %s78 = scalar_select %p75, %s76, %s77
      %p81 = pneg %p75
      %p82 = scmp.eq.s32.totalorder %s28, 3
      %p83 = por %p81, %p82
      %p84 = scmp.ne.s32.totalorder %s76, %s79
      %p85 = scmp.eq.s32.totalorder %s28, 0
      %p86 = por %p84, %p85
      %p87 = scmp.ne.s32.totalorder %s76, %s79
      %p88 = scmp.eq.s32.totalorder %s33, 3
      %p89 = por %p87, %p88
      %p90 = scmp.ne.s32.totalorder %s79, %s80
      %p91 = scmp.eq.s32.totalorder %s33, 0
      %p92 = por %p90, %p91
      %p93 = scmp.ne.s32.totalorder %s79, %s80
      %p94 = scmp.eq.s32.totalorder %s34, 3
      %p95 = por %p93, %p94
      %p97 = scmp.ne.s32.totalorder %s80, %s96
      %p98 = scmp.eq.s32.totalorder %s34, 0
      %p99 = por %p97, %p98
      %s101 = sadd.s32 %s100, 1
      %p104 = scmp.eq.s32.totalorder %s28, 3
      %p105 = scmp.ne.s32.totalorder %s100, %s102
      %p106 = scmp.eq.s32.totalorder %s28, 0
      %p107 = por %p105, %p106
      %p108 = scmp.ne.s32.totalorder %s100, %s102
      %p109 = scmp.eq.s32.totalorder %s33, 3
      %p110 = por %p108, %p109
      %p111 = scmp.ne.s32.totalorder %s102, %s103
      %p112 = scmp.eq.s32.totalorder %s33, 0
      %p113 = por %p111, %p112
      %p114 = scmp.ne.s32.totalorder %s102, %s103
      %p115 = scmp.eq.s32.totalorder %s34, 3
      %p116 = por %p114, %p115
      %p118 = scmp.ne.s32.totalorder %s103, %s117
      %p119 = scmp.eq.s32.totalorder %s34, 0
      %p120 = por %p118, %p119
      %s121 = ssub.s32 %s36, %s43
      %p122 = scmp.eq.s32.totalorder %s121, 0
      %s124 = sadd.s32 %s123, 1
      %s125 = scalar_select %p122, %s123, %s124
      %p128 = pneg %p122
      %p129 = scmp.eq.s32.totalorder %s28, 3
      %p130 = por %p128, %p129
      %p131 = scmp.ne.s32.totalorder %s123, %s126
      %p132 = scmp.eq.s32.totalorder %s28, 0
      %p133 = por %p131, %p132
      %p134 = scmp.ne.s32.totalorder %s123, %s126
      %p135 = scmp.eq.s32.totalorder %s33, 3
      %p136 = por %p134, %p135
      %p137 = scmp.ne.s32.totalorder %s126, %s127
      %p138 = scmp.eq.s32.totalorder %s33, 0
      %p139 = por %p137, %p138
      %p140 = scmp.ne.s32.totalorder %s126, %s127
      %p141 = scmp.eq.s32.totalorder %s34, 3
      %p142 = por %p140, %p141
      %p144 = scmp.ne.s32.totalorder %s127, %s143
      %p145 = scmp.eq.s32.totalorder %s34, 0
      %p146 = por %p144, %p145
      %s147 = ssub.s32 %s36, %s43
      %p148 = scmp.eq.s32.totalorder %s147, 0
      %s150 = sadd.s32 %s149, 1
      %s151 = scalar_select %p148, %s149, %s150
      %p154 = pneg %p148
      %p155 = scmp.eq.s32.totalorder %s28, 3
      %p156 = por %p154, %p155
      %p157 = scmp.ne.s32.totalorder %s149, %s152
      %p158 = scmp.eq.s32.totalorder %s28, 0
      %p159 = por %p157, %p158
      %p160 = scmp.ne.s32.totalorder %s149, %s152
      %p161 = scmp.eq.s32.totalorder %s33, 3
      %p162 = por %p160, %p161
      %p163 = scmp.ne.s32.totalorder %s152, %s153
      %p164 = scmp.eq.s32.totalorder %s33, 0
      %p165 = por %p163, %p164
      %p166 = scmp.ne.s32.totalorder %s152, %s153
      %p167 = scmp.eq.s32.totalorder %s34, 3
      %p168 = por %p166, %p167
      %p170 = scmp.ne.s32.totalorder %s153, %s169
      %p171 = scmp.eq.s32.totalorder %s34, 0
      %p172 = por %p170, %p171
      %s173 = ssub.s32 %s36, %s43
      %p174 = scmp.eq.s32.totalorder %s173, 0
      %s176 = sadd.s32 %s175, 1
      %s177 = scalar_select %p174, %s175, %s176
      %p180 = pneg %p174
      %p181 = scmp.eq.s32.totalorder %s28, 3
      %p182 = por %p180, %p181
      %p183 = scmp.ne.s32.totalorder %s175, %s178
      %p184 = scmp.eq.s32.totalorder %s28, 0
      %p185 = por %p183, %p184
      %p186 = scmp.ne.s32.totalorder %s175, %s178
      %p187 = scmp.eq.s32.totalorder %s33, 3
      %p188 = por %p186, %p187
      %p189 = scmp.ne.s32.totalorder %s178, %s179
      %p190 = scmp.eq.s32.totalorder %s33, 0
      %p191 = por %p189, %p190
      %p192 = scmp.ne.s32.totalorder %s178, %s179
      %p193 = scmp.eq.s32.totalorder %s34, 3
      %p194 = por %p192, %p193
      %p196 = scmp.ne.s32.totalorder %s179, %s195
      %p197 = scmp.eq.s32.totalorder %s34, 0
      %p198 = por %p196, %p197
      %s199 = ssub.s32 %s36, %s43
      %p200 = scmp.eq.s32.totalorder %s199, 0
      %s202 = sadd.s32 %s201, 1
      %s203 = scalar_select %p200, %s201, %s202
      %p206 = pneg %p200
      %p207 = scmp.eq.s32.totalorder %s28, 3
      %p208 = por %p206, %p207
      %p209 = scmp.ne.s32.totalorder %s201, %s204
      %p210 = scmp.eq.s32.totalorder %s28, 0
      %p211 = por %p209, %p210
      %p212 = scmp.ne.s32.totalorder %s201, %s204
      %p213 = scmp.eq.s32.totalorder %s33, 3
      %p214 = por %p212, %p213
      %p215 = scmp.ne.s32.totalorder %s204, %s205
      %p216 = scmp.eq.s32.totalorder %s33, 0
      %p217 = por %p215, %p216
      %p218 = scmp.ne.s32.totalorder %s204, %s205
      %p219 = scmp.eq.s32.totalorder %s34, 3
      %p220 = por %p218, %p219
      %p222 = scmp.ne.s32.totalorder %s205, %s221
      %p223 = scmp.eq.s32.totalorder %s34, 0
      %p224 = por %p222, %p223
      %s225 = ssub.s32 %s36, %s43
      %p226 = scmp.eq.s32.totalorder %s225, 0
      %s228 = sadd.s32 %s227, 1
      %s229 = scalar_select %p226, %s227, %s228
      %p232 = pneg %p226
      %p233 = scmp.eq.s32.totalorder %s28, 3
      %p234 = por %p232, %p233
      %p235 = scmp.ne.s32.totalorder %s227, %s230
      %p236 = scmp.eq.s32.totalorder %s28, 0
      %p237 = por %p235, %p236
      %p238 = scmp.ne.s32.totalorder %s227, %s230
      %p239 = scmp.eq.s32.totalorder %s33, 3
      %p240 = por %p238, %p239
      %p241 = scmp.ne.s32.totalorder %s230, %s231
      %p242 = scmp.eq.s32.totalorder %s33, 0
      %p243 = por %p241, %p242
      %p244 = scmp.ne.s32.totalorder %s230, %s231
      %p245 = scmp.eq.s32.totalorder %s34, 3
      %p246 = por %p244, %p245
      %p248 = scmp.ne.s32.totalorder %s231, %s247
      %p249 = scmp.eq.s32.totalorder %s34, 0
      %p250 = por %p248, %p249
      %s251 = ssub.s32 %s36, %s43
      %p252 = scmp.eq.s32.totalorder %s251, 0
      %s254 = sadd.s32 %s253, 1
      %s255 = scalar_select %p252, %s253, %s254
      %p258 = pneg %p252
      %p259 = scmp.eq.s32.totalorder %s28, 3
      %p260 = por %p258, %p259
      %p261 = scmp.ne.s32.totalorder %s253, %s256
      %p262 = scmp.eq.s32.totalorder %s28, 0
      %p263 = por %p261, %p262
      %p264 = scmp.ne.s32.totalorder %s253, %s256
      %p265 = scmp.eq.s32.totalorder %s33, 3
      %p266 = por %p264, %p265
      %p267 = scmp.ne.s32.totalorder %s256, %s257
      %p268 = scmp.eq.s32.totalorder %s33, 0
      %p269 = por %p267, %p268
      %p270 = scmp.ne.s32.totalorder %s256, %s257
      %p271 = scmp.eq.s32.totalorder %s34, 3
      %p272 = por %p270, %p271
      %p274 = scmp.ne.s32.totalorder %s257, %s273
      %p275 = scmp.eq.s32.totalorder %s34, 0
      %p276 = por %p274, %p275
      %s277 = ssub.s32 %s36, %s43
      %p278 = scmp.eq.s32.totalorder %s277, 0
      %s280 = sadd.s32 %s279, 1
      %s281 = scalar_select %p278, %s279, %s280
      %p284 = pneg %p278
      %p285 = scmp.eq.s32.totalorder %s28, 3
      %p286 = por %p284, %p285
      %p287 = scmp.ne.s32.totalorder %s279, %s282
      %p288 = scmp.eq.s32.totalorder %s28, 0
      %p289 = por %p287, %p288
      %p290 = scmp.ne.s32.totalorder %s279, %s282
      %p291 = scmp.eq.s32.totalorder %s33, 3
      %p292 = por %p290, %p291
      %p293 = scmp.ne.s32.totalorder %s282, %s283
      %p294 = scmp.eq.s32.totalorder %s33, 0
      %p295 = por %p293, %p294
      %p296 = scmp.ne.s32.totalorder %s282, %s283
      %p297 = scmp.eq.s32.totalorder %s34, 3
      %p298 = por %p296, %p297
      %p300 = scmp.ne.s32.totalorder %s283, %s299
      %p301 = scmp.eq.s32.totalorder %s34, 0
      %p302 = por %p300, %p301
      %s303 = ssub.s32 %s35, %s47
      %p304 = scmp.eq.s32.totalorder %s303, 0
      %s306 = sadd.s32 %s305, 1
      %s307 = scalar_select %p304, %s305, %s306
      %p310 = pneg %p304
      %p311 = scmp.eq.s32.totalorder %s28, 3
      %p312 = por %p310, %p311
      %p313 = scmp.ne.s32.totalorder %s305, %s308
      %p314 = scmp.eq.s32.totalorder %s28, 0
      %p315 = por %p313, %p314
      %p316 = scmp.ne.s32.totalorder %s305, %s308
      %p317 = scmp.eq.s32.totalorder %s33, 3
      %p318 = por %p316, %p317
      %p319 = scmp.ne.s32.totalorder %s308, %s309
      %p320 = scmp.eq.s32.totalorder %s33, 0
      %p321 = por %p319, %p320
      %p322 = scmp.ne.s32.totalorder %s308, %s309
      %p323 = scmp.eq.s32.totalorder %s34, 3
      %p324 = por %p322, %p323
      %p326 = scmp.ne.s32.totalorder %s309, %s325
      %p327 = scmp.eq.s32.totalorder %s34, 0
      %p328 = por %p326, %p327
      %p329 = scmp.le.s32.totalorder 1, %s28
      %p330 = scmp.lt.s32.totalorder %s28, 5
      %p331 = pnand %p329, %p330
      %p332 = pneg %p331
      // Predicated region
      $region9: #{tpu_custom_call.1} parent=5 // pred_check
        _
      $region10: #{tpu_custom_call.1} parent=5 // pred_check_branch
        %334 = sbr.rel (%p331) target = $region12
      $region11: #{tpu_custom_call.1} parent=5 // pred_region
        %s335 = ssub.s32 %s28, 1
        // Predicated region
        $region13: #{tpu_custom_call.1} parent=11 // pred_check
          %p336 = pneg %p66
        $region14: #{tpu_custom_call.1} parent=11 // pred_check_branch
          %338 = sbr.rel (%p336) target = $region16
        $region15: #{tpu_custom_call.1} parent=11 // pred_region
          %p339 = scmp.lt.s32.totalorder %s37, 1
          %s340 = scalar_select %p339, %s37, 1
          %s341 = smul.addr %s340, 8
          %s342 = scalar_lea.vmem %s0, %s341
        $region16: #{tpu_custom_call.1} parent=11 // pred_fallthru
          _
        // Predicated region
        $region17: #{tpu_custom_call.1} parent=11 // pred_check
          %p343 = pneg %p92
        $region18: #{tpu_custom_call.1} parent=11 // pred_check_branch
          %345 = sbr.rel (%p343) target = $region20
        $region19: #{tpu_custom_call.1} parent=11 // pred_region
          %p346 = scmp.lt.s32.totalorder %s37, 1
          %s347 = scalar_select %p346, %s37, 1
          %s348 = scalar_lea.vmem %s1, %s347
        $region20: #{tpu_custom_call.1} parent=11 // pred_fallthru
          _
        // Predicated region
        $region21: #{tpu_custom_call.1} parent=11 // pred_check
          %p349 = pneg %p113
        $region22: #{tpu_custom_call.1} parent=11 // pred_check_branch
          %351 = sbr.rel (%p349) target = $region24
        $region23: #{tpu_custom_call.1} parent=11 // pred_region
          _
        $region24: #{tpu_custom_call.1} parent=11 // pred_fallthru
          _
      $region12: #{tpu_custom_call.1} parent=5 // pred_fallthru
        _
      %p352 = scmp.lt.s32.totalorder %s28, 4
      // Predicated region
      $region25: #{tpu_custom_call.1} parent=5 // pred_check
        %p353 = pneg %p352
      $region26: #{tpu_custom_call.1} parent=5 // pred_check_branch
        %355 = sbr.rel (%p353) target = $region28
      $region27: #{tpu_custom_call.1} parent=5 // pred_region
        // Predicated region
        $region29: #{tpu_custom_call.1} parent=27 // pred_check
          %p356 = pneg %p133
        $region30: #{tpu_custom_call.1} parent=27 // pred_check_branch
          %358 = sbr.rel (%p356) target = $region32
        $region31: #{tpu_custom_call.1} parent=27 // pred_region
          %p359 = scmp.lt.s32.totalorder %s36, 1
          %s360 = scalar_select %p359, %s36, 1
          %s361 = smul.addr %s360, 8
          %s362 = scalar_lea.vmem %s3, %s361
        $region32: #{tpu_custom_call.1} parent=27 // pred_fallthru
          _
        // Predicated region
        $region33: #{tpu_custom_call.1} parent=27 // pred_check
          %p363 = pneg %p159
        $region34: #{tpu_custom_call.1} parent=27 // pred_check_branch
          %365 = sbr.rel (%p363) target = $region36
        $region35: #{tpu_custom_call.1} parent=27 // pred_region
          %p366 = scmp.lt.s32.totalorder %s36, 1
          %s367 = scalar_select %p366, %s36, 1
          %s368 = smul.addr %s367, 3
          %s369 = scalar_lea.vmem %s4, %s368
        $region36: #{tpu_custom_call.1} parent=27 // pred_fallthru
          _
        // Predicated region
        $region37: #{tpu_custom_call.1} parent=27 // pred_check
          %p370 = pneg %p185
        $region38: #{tpu_custom_call.1} parent=27 // pred_check_branch
          %372 = sbr.rel (%p370) target = $region40
        $region39: #{tpu_custom_call.1} parent=27 // pred_region
          %p373 = scmp.lt.s32.totalorder %s36, 1
          %s374 = scalar_select %p373, %s36, 1
          %s375 = smul.addr %s374, 2
          %s376 = scalar_lea.vmem %s5, %s375
        $region40: #{tpu_custom_call.1} parent=27 // pred_fallthru
          _
        // Predicated region
        $region41: #{tpu_custom_call.1} parent=27 // pred_check
          %p377 = pneg %p211
        $region42: #{tpu_custom_call.1} parent=27 // pred_check_branch
          %379 = sbr.rel (%p377) target = $region44
        $region43: #{tpu_custom_call.1} parent=27 // pred_region
          %s380 = sand.u32 %s201, 1
          %s381 = scalar_lea.sflag [#allocation3], %s380
          %s382 = sand.u32 %s201, 1
          %s383 = smul.addr %s382, 192
          %s384 = scalar_lea.vmem [#allocation2], %s383
          %s386 = ssub.s32 3072, 3072
          %387 = vsyncadd %s381, %s386
          %s388 = smul.addr %s36, 48
          %s389 = smul.addr %s388, 64
          %s390 = scalar_lea.hbm %s6, %s389
          %s391 = sshll.u32 %s384, 4
          %s392 = int_to_ptr.vmem [resolvable:$true] %s391
          %397 = dma.hbm_to_vmem [thread:$0]  %s390, 3072, %s392, %s381, 192, 192, 12
        $region44: #{tpu_custom_call.1} parent=27 // pred_fallthru
          _
        // Predicated region
        $region45: #{tpu_custom_call.1} parent=27 // pred_check
          %p398 = pneg %p237
        $region46: #{tpu_custom_call.1} parent=27 // pred_check_branch
          %400 = sbr.rel (%p398) target = $region48
        $region47: #{tpu_custom_call.1} parent=27 // pred_region
          %s401 = sand.u32 %s28, 1
          %s402 = scalar_lea.sflag [#allocation6], %s401
          %s403 = sand.u32 %s227, 1
          %s404 = smul.addr %s403, 64
          %s405 = scalar_lea.vmem [#allocation5], %s404
          %s407 = ssub.s32 1024, 1024
          %408 = vsyncadd %s402, %s407
          %s409 = smul.addr %s36, 16
          %s410 = smul.addr %s409, 64
          %s411 = scalar_lea.hbm %s7, %s410
          %s412 = sshll.u32 %s405, 4
          %s413 = int_to_ptr.vmem [resolvable:$true] %s412
          %418 = dma.hbm_to_vmem [thread:$0]  %s411, 1024, %s413, %s402, 64, 64, 4
        $region48: #{tpu_custom_call.1} parent=27 // pred_fallthru
          _
        // Predicated region
        $region49: #{tpu_custom_call.1} parent=27 // pred_check
          %p419 = pneg %p263
        $region50: #{tpu_custom_call.1} parent=27 // pred_check_branch
          %421 = sbr.rel (%p419) target = $region52
        $region51: #{tpu_custom_call.1} parent=27 // pred_region
          %s422 = sand.u32 %s28, 1
          %s423 = scalar_lea.sflag [#allocation6], %s422
          %s424 = sand.u32 %s253, 1
          %s425 = smul.addr %s424, 128
          %s426 = scalar_lea.vmem [#allocation7], %s425
          %s428 = ssub.s32 2048, 2048
          %429 = vsyncadd %s423, %s428
          %s430 = smul.addr %s36, 32
          %s431 = smul.addr %s430, 64
          %s432 = scalar_lea.hbm %s8, %s431
          %s433 = sshll.u32 %s426, 4
          %s434 = int_to_ptr.vmem [resolvable:$true] %s433
          %439 = dma.hbm_to_vmem [thread:$0]  %s432, 2048, %s434, %s423, 128, 128, 8
        $region52: #{tpu_custom_call.1} parent=27 // pred_fallthru
          _
        // Predicated region
        $region53: #{tpu_custom_call.1} parent=27 // pred_check
          %p440 = pneg %p289
        $region54: #{tpu_custom_call.1} parent=27 // pred_check_branch
          %442 = sbr.rel (%p440) target = $region56
        $region55: #{tpu_custom_call.1} parent=27 // pred_region
          %s443 = sand.u32 %s279, 1
          %s444 = scalar_lea.sflag [#allocation9], %s443
          %s445 = sand.u32 %s279, 1
          %s446 = smul.addr %s445, 128
          %s447 = scalar_lea.vmem [#allocation8], %s446
          %s449 = ssub.s32 2048, 2048
          %450 = vsyncadd %s444, %s449
          %s451 = smul.addr %s36, 32
          %s452 = smul.addr %s451, 64
          %s453 = scalar_lea.hbm %s9, %s452
          %s454 = sshll.u32 %s447, 4
          %s455 = int_to_ptr.vmem [resolvable:$true] %s454
          %460 = dma.hbm_to_vmem [thread:$0]  %s453, 2048, %s455, %s444, 64, 64, 4
        $region56: #{tpu_custom_call.1} parent=27 // pred_fallthru
          _
      $region28: #{tpu_custom_call.1} parent=5 // pred_fallthru
        _
      %p461 = scmp.le.s32.totalorder 1, %s28
      %p462 = scmp.lt.s32.totalorder %s28, 5
      %p463 = pnand %p461, %p462
      %p464 = pneg %p463
      // Predicated region
      $region57: #{tpu_custom_call.1} parent=5 // pred_check
        _
      $region58: #{tpu_custom_call.1} parent=5 // pred_check_branch
        %466 = sbr.rel (%p463) target = $region60
      $region59: #{tpu_custom_call.1} parent=5 // pred_region
        %s467 = ssub.s32 %s28, 1
        %s468 = sand.u32 %s204, 1
        %s469 = scalar_lea.sflag [#allocation3], %s468
        %s470 = sand.u32 %s204, 1
        %s471 = smul.addr %s470, 192
        %s472 = scalar_lea.vmem [#allocation2], %s471
        // Predicated region
        $region61: #{tpu_custom_call.1} parent=59 // pred_check
          %p473 = pneg %p217
        $region62: #{tpu_custom_call.1} parent=59 // pred_check_branch
          %475 = sbr.rel (%p473) target = $region64
        $region63: #{tpu_custom_call.1} parent=59 // pred_region
          %476 = dma.done %s469, 3072
        $region64: #{tpu_custom_call.1} parent=59 // pred_fallthru
          _
        %s477 = sand.u32 %s33, 1
        %s478 = scalar_lea.sflag [#allocation6], %s477
        %s479 = sand.u32 %s230, 1
        %s480 = smul.addr %s479, 64
        %s481 = scalar_lea.vmem [#allocation5], %s480
        // Predicated region
        $region65: #{tpu_custom_call.1} parent=59 // pred_check
          %p482 = pneg %p243
        $region66: #{tpu_custom_call.1} parent=59 // pred_check_branch
          %484 = sbr.rel (%p482) target = $region68
        $region67: #{tpu_custom_call.1} parent=59 // pred_region
          %485 = dma.done %s478, 1024
        $region68: #{tpu_custom_call.1} parent=59 // pred_fallthru
          _
        %s486 = sand.u32 %s33, 1
        %s487 = scalar_lea.sflag [#allocation6], %s486
        %s488 = sand.u32 %s256, 1
        %s489 = smul.addr %s488, 128
        %s490 = scalar_lea.vmem [#allocation7], %s489
        // Predicated region
        $region69: #{tpu_custom_call.1} parent=59 // pred_check
          %p491 = pneg %p269
        $region70: #{tpu_custom_call.1} parent=59 // pred_check_branch
          %493 = sbr.rel (%p491) target = $region72
        $region71: #{tpu_custom_call.1} parent=59 // pred_region
          %494 = dma.done %s487, 2048
        $region72: #{tpu_custom_call.1} parent=59 // pred_fallthru
          _
        %s495 = sand.u32 %s282, 1
        %s496 = scalar_lea.sflag [#allocation9], %s495
        %s497 = sand.u32 %s282, 1
        %s498 = smul.addr %s497, 128
        %s499 = scalar_lea.vmem [#allocation8], %s498
        // Predicated region
        $region73: #{tpu_custom_call.1} parent=59 // pred_check
          %p500 = pneg %p295
        $region74: #{tpu_custom_call.1} parent=59 // pred_check_branch
          %502 = sbr.rel (%p500) target = $region76
        $region75: #{tpu_custom_call.1} parent=59 // pred_region
          %503 = dma.done %s496, 2048
        $region76: #{tpu_custom_call.1} parent=59 // pred_fallthru
          _
        %p504 = scmp.lt.s32.totalorder %s37, 1
        %s505 = scalar_select %p504, %s37, 1
        %s506 = smul.addr %s505, 8
        %s507 = scalar_lea.vmem %s0, %s506
        %p508 = pneg %p66
        %p509 = pneg %p63
        %p510 = scmp.lt.s32.totalorder %s37, 1
        %s511 = scalar_select %p510, %s37, 1
        %s512 = scalar_lea.vmem %s1, %s511
        %p513 = pneg %p92
        %p514 = pneg %p89
        %p515 = pneg %p113
        %p516 = pneg %p110
        %p517 = scmp.lt.s32.totalorder %s38, 1
        %s518 = scalar_select %p517, %s38, 1
        %s519 = smul.addr %s518, 8
        %s520 = scalar_lea.vmem %s3, %s519
        %p521 = pneg %p139
        %p522 = pneg %p136
        %p523 = scmp.lt.s32.totalorder %s38, 1
        %s524 = scalar_select %p523, %s38, 1
        %s525 = smul.addr %s524, 3
        %s526 = scalar_lea.vmem %s4, %s525
        %p527 = pneg %p165
        %p528 = pneg %p162
        %p529 = scmp.lt.s32.totalorder %s38, 1
        %s530 = scalar_select %p529, %s38, 1
        %s531 = smul.addr %s530, 2
        %s532 = scalar_lea.vmem %s5, %s531
        %p533 = pneg %p191
        %p534 = pneg %p188
        %s535 = sand.u32 %s204, 1
        %s536 = scalar_lea.sflag [#allocation3], %s535
        %s537 = sand.u32 %s204, 1
        %s538 = smul.addr %s537, 192
        %s539 = scalar_lea.vmem [#allocation2], %s538
        %p540 = pneg %p217
        %p541 = pneg %p214
        %s542 = sand.u32 %s33, 1
        %s543 = scalar_lea.sflag [#allocation6], %s542
        %s544 = sand.u32 %s230, 1
        %s545 = smul.addr %s544, 64
        %s546 = scalar_lea.vmem [#allocation5], %s545
        %p547 = pneg %p243
        %p548 = pneg %p240
        %s549 = sand.u32 %s33, 1
        %s550 = scalar_lea.sflag [#allocation6], %s549
        %s551 = sand.u32 %s256, 1
        %s552 = smul.addr %s551, 128
        %s553 = scalar_lea.vmem [#allocation7], %s552
        %p554 = pneg %p269
        %p555 = pneg %p266
        %s556 = sand.u32 %s282, 1
        %s557 = scalar_lea.sflag [#allocation9], %s556
        %s558 = sand.u32 %s282, 1
        %s559 = smul.addr %s558, 128
        %s560 = scalar_lea.vmem [#allocation8], %s559
        %p561 = pneg %p295
        %p562 = pneg %p292
        %p563 = pneg %p321
        %p564 = pneg %p318
        %s565 = sand.u32 %s308, 1
        %s566 = scalar_lea.sflag [#allocation4], %s565
        %s567 = sand.u32 %s308, 1
        %s568 = smul.addr %s567, 8
        %s569 = scalar_lea.vmem [#allocation10], %s568
        %p570 = scmp.lt.s32.totalorder %s37, 1
        %s571 = scalar_select %p570, %s37, 1
        %s572 = smul.addr %s571, 8
        %s573 = scalar_lea.vmem %s0, %s572
        %p574 = scmp.lt.s32.totalorder %s37, 1
        %s575 = scalar_select %p574, %s37, 1
        %s576 = scalar_lea.vmem %s1, %s575
        %p577 = scmp.lt.s32.totalorder %s38, 1
        %s578 = scalar_select %p577, %s38, 1
        %s579 = smul.addr %s578, 8
        %s580 = scalar_lea.vmem %s3, %s579
        %p581 = scmp.lt.s32.totalorder %s38, 1
        %s582 = scalar_select %p581, %s38, 1
        %s583 = smul.addr %s582, 3
        %s584 = scalar_lea.vmem %s4, %s583
        %p585 = scmp.lt.s32.totalorder %s38, 1
        %s586 = scalar_select %p585, %s38, 1
        %s587 = smul.addr %s586, 2
        %s588 = scalar_lea.vmem %s5, %s587
        %p590 = scmp.eq.s32.totalorder %s38, 0
        // Predicated region
        $region77: #{tpu_custom_call.1} parent=59 // pred_check
          %p591 = pneg %p590
        $region78: #{tpu_custom_call.1} parent=59 // pred_check_branch
          %593 = sbr.rel (%p591) target = $region80
        $region79: #{tpu_custom_call.1} parent=59 // pred_region
          %v594 = vld [vmem:[%s573] sm:$0xff]
          %595 = vst [vmem:[%s569] sm:$0xff] %v594
        $region80: #{tpu_custom_call.1} parent=59 // pred_fallthru
          _
        %v596 = vld [vmem:[%s569] sm:$0xff]
        %v597 = vld [vmem:[%s580] sm:$0x3f]
        %v598 = vld [vmem:[%s584] sm:$0x7]
        %v599 = vld [vmem:[%s588] sm:$0x3]
        %v600 = vld [vmem:[%s576] sm:$0x1]
        %601 = vadd.xlane.f32.xlu0 %v596
        %v602 = vpop.xlane.xlu0 %601
        %v603 = vrcp.pop 128.0
        %v604 = vmul.f32 %v602, %v603
        %v605 = vsub.f32 %v596, %v604
        %v606 = vmul.f32 %v605, %v605
        %607 = vadd.xlane.f32.xlu0 %v606
        %v608 = vpop.xlane.xlu0 %607
        %v609 = vmul.f32 %v608, %v603
        %v610 = vadd.f32 %v609, 1e-05
        %v611 = vrsqrt.pop %v610
        %v612 = vmul.f32 %v605, %v611
        %v613 = vlaneseq
        %v614 = vshrl.u32 %v613, 7
        %v615 = vsub.s32 0, %v614
        %v616 = vrot.slane %v597, %v615
        %v617 = vmul.f32 %v612, %v616
        %v618 = vlaneseq
        %v619 = vshrl.u32 %v618, 7
        %v620 = vsub.s32 1, %v619
        %v621 = vrot.slane %v597, %v620
        %v622 = vadd.f32 %v617, %v621
        %v623 = vpack.c.bf16 %v622, %v622
        %v624 = vld [vmem:[%s472] sm:$0xff]
        %v625 = vld [vmem:[%s472 + $0x8] sm:$0xf]
        %v626 = vld [vmem:[%s472 + $0xc] sm:$0xff]
        %v627 = vld [vmem:[%s472 + $0x14] sm:$0xf]
        %v628 = vld [vmem:[%s472 + $0x18] sm:$0xff]
        %v629 = vld [vmem:[%s472 + $0x20] sm:$0xf]
        %v630 = vld [vmem:[%s472 + $0x24] sm:$0xff]
        %v631 = vld [vmem:[%s472 + $0x2c] sm:$0xf]
        %v632 = vld [vmem:[%s472 + $0x30] sm:$0xff]
        %v633 = vld [vmem:[%s472 + $0x38] sm:$0xf]
        %v634 = vld [vmem:[%s472 + $0x3c] sm:$0xff]
        %v635 = vld [vmem:[%s472 + $0x44] sm:$0xf]
        %v636 = vld [vmem:[%s472 + $0x48] sm:$0xff]
        %v637 = vld [vmem:[%s472 + $0x50] sm:$0xf]
        %v638 = vld [vmem:[%s472 + $0x54] sm:$0xff]
        %v639 = vld [vmem:[%s472 + $0x5c] sm:$0xf]
        %v640 = vld [vmem:[%s472 + $0x60] sm:$0xff]
        %v641 = vld [vmem:[%s472 + $0x68] sm:$0xf]
        %v642 = vld [vmem:[%s472 + $0x6c] sm:$0xff]
        %v643 = vld [vmem:[%s472 + $0x74] sm:$0xf]
        %v644 = vld [vmem:[%s472 + $0x78] sm:$0xff]
        %v645 = vld [vmem:[%s472 + $0x80] sm:$0xf]
        %v646 = vld [vmem:[%s472 + $0x84] sm:$0xff]
        %v647 = vld [vmem:[%s472 + $0x8c] sm:$0xf]
        %v648 = vld [vmem:[%s472 + $0x90] sm:$0xff]
        %v649 = vld [vmem:[%s472 + $0x98] sm:$0xf]
        %v650 = vld [vmem:[%s472 + $0x9c] sm:$0xff]
        %v651 = vld [vmem:[%s472 + $0xa4] sm:$0xf]
        %v652 = vld [vmem:[%s472 + $0xa8] sm:$0xff]
        %v653 = vld [vmem:[%s472 + $0xb0] sm:$0xf]
        %v654 = vld [vmem:[%s472 + $0xb4] sm:$0xff]
        %v655 = vld [vmem:[%s472 + $0xbc] sm:$0xf]
        %v657 = vlaneseq
        %v658 = vshrl.u32 %v657, 7
        %v659 = vsub.s32 0, %v658
        %v660 = vrot.slane %v598, %v659
        %v661 = vlaneseq
        %v662 = vshrl.u32 %v661, 7
        %v663 = vsub.s32 1, %v662
        %v664 = vrot.slane %v598, %v663
        %v665 = vlaneseq
        %v666 = vshrl.u32 %v665, 7
        %v667 = vsub.s32 2, %v666
        %v668 = vrot.slane %v598, %v667
        %v704 = vunpack.c.l.b16 %v624
        %v705 = vunpack.c.h.b16 %v624
        %v706 = vunpack.c.l.b16 %v625
        %v707 = vunpack.c.l.b16 %v626
        %v708 = vunpack.c.h.b16 %v626
        %v709 = vunpack.c.l.b16 %v627
        %v710 = vunpack.c.l.b16 %v628
        %v711 = vunpack.c.h.b16 %v628
        %v712 = vunpack.c.l.b16 %v629
        %v713 = vunpack.c.l.b16 %v630
        %v714 = vunpack.c.h.b16 %v630
        %v715 = vunpack.c.l.b16 %v631
        %v716 = vunpack.c.l.b16 %v632
        %v717 = vunpack.c.h.b16 %v632
        %v718 = vunpack.c.l.b16 %v633
        %v719 = vunpack.c.l.b16 %v634
        %v720 = vunpack.c.h.b16 %v634
        %v721 = vunpack.c.l.b16 %v635
        %v722 = vunpack.c.l.b16 %v636
        %v723 = vunpack.c.h.b16 %v636
        %v724 = vunpack.c.l.b16 %v637
        %v725 = vunpack.c.l.b16 %v638
        %v726 = vunpack.c.h.b16 %v638
        %v727 = vunpack.c.l.b16 %v639
        %v728 = vunpack.c.l.b16 %v640
        %v729 = vunpack.c.h.b16 %v640
        %v730 = vunpack.c.l.b16 %v641
        %v731 = vunpack.c.l.b16 %v642
        %v732 = vunpack.c.h.b16 %v642
        %v733 = vunpack.c.l.b16 %v643
        %v734 = vunpack.c.l.b16 %v644
        %v735 = vunpack.c.h.b16 %v644
        %v736 = vunpack.c.l.b16 %v645
        %v737 = vunpack.c.l.b16 %v646
        %v738 = vunpack.c.h.b16 %v646
        %v739 = vunpack.c.l.b16 %v647
        %v740 = vunpack.c.l.b16 %v648
        %v741 = vunpack.c.h.b16 %v648
        %v742 = vunpack.c.l.b16 %v649
        %v743 = vunpack.c.l.b16 %v650
        %v744 = vunpack.c.h.b16 %v650
        %v745 = vunpack.c.l.b16 %v651
        %v746 = vunpack.c.l.b16 %v652
        %v747 = vunpack.c.h.b16 %v652
        %v748 = vunpack.c.l.b16 %v653
        %v749 = vunpack.c.l.b16 %v654
        %v750 = vunpack.c.h.b16 %v654
        %v751 = vunpack.c.l.b16 %v655
        %v752 = vpack.c.b16 %v707, %v704
        %v753 = vpack.c.b16 %v708, %v705
        %v754 = vpack.c.b16 %v709, %v706
        %v755 = vpack.c.b16 %v713, %v710
        %v756 = vpack.c.b16 %v714, %v711
        %v757 = vpack.c.b16 %v715, %v712
        %v758 = vpack.c.b16 %v719, %v716
        %v759 = vpack.c.b16 %v720, %v717
        %v760 = vpack.c.b16 %v721, %v718
        %v761 = vpack.c.b16 %v725, %v722
        %v762 = vpack.c.b16 %v726, %v723
        %v763 = vpack.c.b16 %v727, %v724
        %v764 = vpack.c.b16 %v731, %v728
        %v765 = vpack.c.b16 %v732, %v729
        %v766 = vpack.c.b16 %v733, %v730
        %v767 = vpack.c.b16 %v737, %v734
        %v768 = vpack.c.b16 %v738, %v735
        %v769 = vpack.c.b16 %v739, %v736
        %v770 = vpack.c.b16 %v743, %v740
        %v771 = vpack.c.b16 %v744, %v741
        %v772 = vpack.c.b16 %v745, %v742
        %v773 = vpack.c.b16 %v749, %v746
        %v774 = vpack.c.b16 %v750, %v747
        %v775 = vpack.c.b16 %v751, %v748
        %800 = vmatprep.subr.bf16.mxu0 %v753
        %801 = vmatpush1.bf16.msra.mxu0 %v752
        %802 = vmatprep.subr.bf16.mxu0 %v756
        %803 = vmatpush1.bf16.msra.mxu0 %v755
        %804 = vmatprep.subr.bf16.mxu0 %v759
        %805 = vmatpush1.bf16.msra.mxu0 %v758
        %806 = vmatprep.subr.bf16.mxu0 %v762
        %807 = vmatpush1.bf16.msra.mxu0 %v761
        %808 = vmatprep.subr.bf16.mxu0 %v765
        %809 = vmatpush1.bf16.msra.mxu0 %v764
        %810 = vmatprep.subr.bf16.mxu0 %v768
        %811 = vmatpush1.bf16.msra.mxu0 %v767
        %812 = vmatprep.subr.bf16.mxu0 %v771
        %813 = vmatpush1.bf16.msra.mxu0 %v770
        %814 = vmatprep.subr.bf16.mxu0 %v774
        %815 = vmatpush1.bf16.msra.mxu0 %v773
        %816 = vmatprep.subr.bf16.mxu0 0
        %817 = vmatpush1.bf16.msra.mxu0 0
        %818 = vmatprep.subr.bf16.mxu0 0
        %819 = vmatpush1.bf16.msra.mxu0 0
        %820 = vmatprep.subr.bf16.mxu0 0
        %821 = vmatpush1.bf16.msra.mxu0 0
        %822 = vmatprep.subr.bf16.mxu0 0
        %823 = vmatpush1.bf16.msra.mxu0 0
        %824 = vmatprep.subr.bf16.mxu0 0
        %825 = vmatpush1.bf16.msra.mxu0 0
        %826 = vmatprep.subr.bf16.mxu0 0
        %827 = vmatpush1.bf16.msra.mxu0 0
        %828 = vmatprep.subr.bf16.mxu0 0
        %829 = vmatpush1.bf16.msra.mxu0 0
        %830 = vmatprep.subr.bf16.mxu0 0
        %831 = vmatpush1.bf16.msra.mxu0 0
        %832 = vmatprep.mubr.bf16.mxu0 0
        %833 = vmatmul.mubr.bf16.gmra.mrb[0].mxu0 %v623
        %v834 = vpop.f32.mrb[0].mxu0
        %v835 = vadd.f32 %v660, %v834
        %v836 = vpop.f32.mrb[0].mxu0
        %v837 = vadd.f32 %v664, %v836
        %v838 = vpop.f32.mrb[0].mxu0
        %v839 = vpop.f32.mrb[0].mxu0
        %840 = vdwg.mxu0
        %841 = vmatprep.subr.bf16.mxu0 0
        %842 = vmatpush1.bf16.msra.mxu0 %v754
        %843 = vmatprep.subr.bf16.mxu0 0
        %844 = vmatpush1.bf16.msra.mxu0 %v757
        %845 = vmatprep.subr.bf16.mxu0 0
        %846 = vmatpush1.bf16.msra.mxu0 %v760
        %847 = vmatprep.subr.bf16.mxu0 0
        %848 = vmatpush1.bf16.msra.mxu0 %v763
        %849 = vmatprep.subr.bf16.mxu0 0
        %850 = vmatpush1.bf16.msra.mxu0 %v766
        %851 = vmatprep.subr.bf16.mxu0 0
        %852 = vmatpush1.bf16.msra.mxu0 %v769
        %853 = vmatprep.subr.bf16.mxu0 0
        %854 = vmatpush1.bf16.msra.mxu0 %v772
        %855 = vmatprep.subr.bf16.mxu0 0
        %856 = vmatpush1.bf16.msra.mxu0 %v775
        %857 = vmatprep.subr.bf16.mxu0 0
        %858 = vmatpush1.bf16.msra.mxu0 0
        %859 = vmatprep.subr.bf16.mxu0 0
        %860 = vmatpush1.bf16.msra.mxu0 0
        %861 = vmatprep.subr.bf16.mxu0 0
        %862 = vmatpush1.bf16.msra.mxu0 0
        %863 = vmatprep.subr.bf16.mxu0 0
        %864 = vmatpush1.bf16.msra.mxu0 0
        %865 = vmatprep.subr.bf16.mxu0 0
        %866 = vmatpush1.bf16.msra.mxu0 0
        %867 = vmatprep.subr.bf16.mxu0 0
        %868 = vmatpush1.bf16.msra.mxu0 0
        %869 = vmatprep.subr.bf16.mxu0 0
        %870 = vmatpush1.bf16.msra.mxu0 0
        %871 = vmatprep.subr.bf16.mxu0 0
        %872 = vmatpush1.bf16.msra.mxu0 0
        %873 = vmatprep.mubr.bf16.mxu0 0
        %874 = vmatmul.mubr.bf16.gmra.mrb[0].mxu0 %v623
        %v875 = vpop.f32.mrb[0].mxu0
        %v876 = vadd.f32 %v668, %v875
        %v877 = vpop.f32.mrb[0].mxu0
        %v878 = vpop.f32.mrb[0].mxu0
        %v879 = vpop.f32.mrb[0].mxu0
        %880 = vdwg.mxu0
        %881 = vxpose.xlu0.b32.start [1/16] %v835, 128
        %882 = vxpose.xlu0.b32.cont [2/16] 0.0, 128
        %883 = vxpose.xlu0.b32.cont [3/16] 0.0, 128
        %884 = vxpose.xlu0.b32.cont [4/16] 0.0, 128
        %885 = vxpose.xlu0.b32.cont [5/16] 0.0, 128
        %886 = vxpose.xlu0.b32.cont [6/16] 0.0, 128
        %887 = vxpose.xlu0.b32.cont [7/16] 0.0, 128
        %888 = vxpose.xlu0.b32.cont [8/16] 0.0, 128
        %889 = vxpose.xlu0.b32.cont [9/16] 0.0, 128
        %890 = vxpose.xlu0.b32.cont [10/16] 0.0, 128
        %891 = vxpose.xlu0.b32.cont [11/16] 0.0, 128
        %892 = vxpose.xlu0.b32.cont [12/16] 0.0, 128
        %893 = vxpose.xlu0.b32.cont [13/16] 0.0, 128
        %894 = vxpose.xlu0.b32.cont [14/16] 0.0, 128
        %895 = vxpose.xlu0.b32.cont [15/16] 0.0, 128
        %896 = vxpose.xlu0.b32.end [16/16] 0.0, 128
        %v897 = vpop.trf.xlu0
        %v898 = vpop.trf.xlu0
        %v899 = vpop.trf.xlu0
        %v900 = vpop.trf.xlu0
        %v901 = vpop.trf.xlu0
        %v902 = vpop.trf.xlu0
        %v903 = vpop.trf.xlu0
        %v904 = vpop.trf.xlu0
        %v905 = vpop.trf.xlu0
        %v906 = vpop.trf.xlu0
        %v907 = vpop.trf.xlu0
        %v908 = vpop.trf.xlu0
        %v909 = vpop.trf.xlu0
        %v910 = vpop.trf.xlu0
        %v911 = vpop.trf.xlu0
        %v912 = vpop.trf.xlu0
        %913 = vxpose.xlu0.b32.start [1/16] %v897, 128
        %914 = vxpose.xlu0.b32.cont [2/16] %v898, 128
        %915 = vxpose.xlu0.b32.cont [3/16] %v899, 128
        %916 = vxpose.xlu0.b32.cont [4/16] %v900, 128
        %917 = vxpose.xlu0.b32.cont [5/16] 0.0, 128
        %918 = vxpose.xlu0.b32.cont [6/16] 0.0, 128
        %919 = vxpose.xlu0.b32.cont [7/16] 0.0, 128
        %920 = vxpose.xlu0.b32.cont [8/16] 0.0, 128
        %921 = vxpose.xlu0.b32.cont [9/16] 0.0, 128
        %922 = vxpose.xlu0.b32.cont [10/16] 0.0, 128
        %923 = vxpose.xlu0.b32.cont [11/16] 0.0, 128
        %924 = vxpose.xlu0.b32.cont [12/16] 0.0, 128
        %925 = vxpose.xlu0.b32.cont [13/16] 0.0, 128
        %926 = vxpose.xlu0.b32.cont [14/16] 0.0, 128
        %927 = vxpose.xlu0.b32.cont [15/16] 0.0, 128
        %928 = vxpose.xlu0.b32.end [16/16] 0.0, 128
        %v929 = vpop.trf.xlu0
        %v930 = vpop.trf.xlu0
        %v931 = vpop.trf.xlu0
        %v932 = vpop.trf.xlu0
        %v933 = vpop.trf.xlu0
        %v934 = vpop.trf.xlu0
        %v935 = vpop.trf.xlu0
        %v936 = vpop.trf.xlu0
        %v937 = vpop.trf.xlu0
        %v938 = vpop.trf.xlu0
        %v939 = vpop.trf.xlu0
        %v940 = vpop.trf.xlu0
        %v941 = vpop.trf.xlu0
        %v942 = vpop.trf.xlu0
        %v943 = vpop.trf.xlu0
        %v944 = vpop.trf.xlu0
        %945 = vxpose.xlu0.b32.start [1/16] %v901, 128
        %946 = vxpose.xlu0.b32.cont [2/16] %v902, 128
        %947 = vxpose.xlu0.b32.cont [3/16] %v903, 128
        %948 = vxpose.xlu0.b32.cont [4/16] %v904, 128
        %949 = vxpose.xlu0.b32.cont [5/16] 0.0, 128
        %950 = vxpose.xlu0.b32.cont [6/16] 0.0, 128
        %951 = vxpose.xlu0.b32.cont [7/16] 0.0, 128
        %952 = vxpose.xlu0.b32.cont [8/16] 0.0, 128
        %953 = vxpose.xlu0.b32.cont [9/16] 0.0, 128
        %954 = vxpose.xlu0.b32.cont [10/16] 0.0, 128
        %955 = vxpose.xlu0.b32.cont [11/16] 0.0, 128
        %956 = vxpose.xlu0.b32.cont [12/16] 0.0, 128
        %957 = vxpose.xlu0.b32.cont [13/16] 0.0, 128
        %958 = vxpose.xlu0.b32.cont [14/16] 0.0, 128
        %959 = vxpose.xlu0.b32.cont [15/16] 0.0, 128
        %960 = vxpose.xlu0.b32.end [16/16] 0.0, 128
        %v961 = vpop.trf.xlu0
        %v962 = vpop.trf.xlu0
        %v963 = vpop.trf.xlu0
        %v964 = vpop.trf.xlu0
        %v965 = vpop.trf.xlu0
        %v966 = vpop.trf.xlu0
        %v967 = vpop.trf.xlu0
        %v968 = vpop.trf.xlu0
        %v969 = vpop.trf.xlu0
        %v970 = vpop.trf.xlu0
        %v971 = vpop.trf.xlu0
        %v972 = vpop.trf.xlu0
        %v973 = vpop.trf.xlu0
        %v974 = vpop.trf.xlu0
        %v975 = vpop.trf.xlu0
        %v976 = vpop.trf.xlu0
        %977 = vxpose.xlu0.b32.start [1/16] %v905, 128
        %978 = vxpose.xlu0.b32.cont [2/16] %v906, 128
        %979 = vxpose.xlu0.b32.cont [3/16] %v907, 128
        %980 = vxpose.xlu0.b32.cont [4/16] %v908, 128
        %981 = vxpose.xlu0.b32.cont [5/16] 0.0, 128
        %982 = vxpose.xlu0.b32.cont [6/16] 0.0, 128
        %983 = vxpose.xlu0.b32.cont [7/16] 0.0, 128
        %984 = vxpose.xlu0.b32.cont [8/16] 0.0, 128
        %985 = vxpose.xlu0.b32.cont [9/16] 0.0, 128
        %986 = vxpose.xlu0.b32.cont [10/16] 0.0, 128
        %987 = vxpose.xlu0.b32.cont [11/16] 0.0, 128
        %988 = vxpose.xlu0.b32.cont [12/16] 0.0, 128
        %989 = vxpose.xlu0.b32.cont [13/16] 0.0, 128
        %990 = vxpose.xlu0.b32.cont [14/16] 0.0, 128
        %991 = vxpose.xlu0.b32.cont [15/16] 0.0, 128
        %992 = vxpose.xlu0.b32.end [16/16] 0.0, 128
        %v993 = vpop.trf.xlu0
        %v994 = vpop.trf.xlu0
        %v995 = vpop.trf.xlu0
        %v996 = vpop.trf.xlu0
        %v997 = vpop.trf.xlu0
        %v998 = vpop.trf.xlu0
        %v999 = vpop.trf.xlu0
        %v1000 = vpop.trf.xlu0
        %v1001 = vpop.trf.xlu0
        %v1002 = vpop.trf.xlu0
        %v1003 = vpop.trf.xlu0
        %v1004 = vpop.trf.xlu0
        %v1005 = vpop.trf.xlu0
        %v1006 = vpop.trf.xlu0
        %v1007 = vpop.trf.xlu0
        %v1008 = vpop.trf.xlu0
        %1009 = vxpose.xlu0.b32.start [1/16] %v909, 128
        %1010 = vxpose.xlu0.b32.cont [2/16] %v910, 128
        %1011 = vxpose.xlu0.b32.cont [3/16] %v911, 128
        %1012 = vxpose.xlu0.b32.cont [4/16] %v912, 128
        %1013 = vxpose.xlu0.b32.cont [5/16] 0.0, 128
        %1014 = vxpose.xlu0.b32.cont [6/16] 0.0, 128
        %1015 = vxpose.xlu0.b32.cont [7/16] 0.0, 128
        %1016 = vxpose.xlu0.b32.cont [8/16] 0.0, 128
        %1017 = vxpose.xlu0.b32.cont [9/16] 0.0, 128
        %1018 = vxpose.xlu0.b32.cont [10/16] 0.0, 128
        %1019 = vxpose.xlu0.b32.cont [11/16] 0.0, 128
        %1020 = vxpose.xlu0.b32.cont [12/16] 0.0, 128
        %1021 = vxpose.xlu0.b32.cont [13/16] 0.0, 128
        %1022 = vxpose.xlu0.b32.cont [14/16] 0.0, 128
        %1023 = vxpose.xlu0.b32.cont [15/16] 0.0, 128
        %1024 = vxpose.xlu0.b32.end [16/16] 0.0, 128
        %v1025 = vpop.trf.xlu0
        %v1026 = vpop.trf.xlu0
        %v1027 = vpop.trf.xlu0
        %v1028 = vpop.trf.xlu0
        %v1029 = vpop.trf.xlu0
        %v1030 = vpop.trf.xlu0
        %v1031 = vpop.trf.xlu0
        %v1032 = vpop.trf.xlu0
        %v1033 = vpop.trf.xlu0
        %v1034 = vpop.trf.xlu0
        %v1035 = vpop.trf.xlu0
        %v1036 = vpop.trf.xlu0
        %v1037 = vpop.trf.xlu0
        %v1038 = vpop.trf.xlu0
        %v1039 = vpop.trf.xlu0
        %v1040 = vpop.trf.xlu0
        %1041 = vxpose.xlu0.b32.start [1/16] %v837, 128
        %1042 = vxpose.xlu0.b32.cont [2/16] 0.0, 128
        %1043 = vxpose.xlu0.b32.cont [3/16] 0.0, 128
        %1044 = vxpose.xlu0.b32.cont [4/16] 0.0, 128
        %1045 = vxpose.xlu0.b32.cont [5/16] 0.0, 128
        %1046 = vxpose.xlu0.b32.cont [6/16] 0.0, 128
        %1047 = vxpose.xlu0.b32.cont [7/16] 0.0, 128
        %1048 = vxpose.xlu0.b32.cont [8/16] 0.0, 128
        %1049 = vxpose.xlu0.b32.cont [9/16] 0.0, 128
        %1050 = vxpose.xlu0.b32.cont [10/16] 0.0, 128
        %1051 = vxpose.xlu0.b32.cont [11/16] 0.0, 128
        %1052 = vxpose.xlu0.b32.cont [12/16] 0.0, 128
        %1053 = vxpose.xlu0.b32.cont [13/16] 0.0, 128
        %1054 = vxpose.xlu0.b32.cont [14/16] 0.0, 128
        %1055 = vxpose.xlu0.b32.cont [15/16] 0.0, 128
        %1056 = vxpose.xlu0.b32.end [16/16] 0.0, 128
        %v1057 = vpop.trf.xlu0
        %v1058 = vpop.trf.xlu0
        %v1059 = vpop.trf.xlu0
        %v1060 = vpop.trf.xlu0
        %v1061 = vpop.trf.xlu0
        %v1062 = vpop.trf.xlu0
        %v1063 = vpop.trf.xlu0
        %v1064 = vpop.trf.xlu0
        %v1065 = vpop.trf.xlu0
        %v1066 = vpop.trf.xlu0
        %v1067 = vpop.trf.xlu0
        %v1068 = vpop.trf.xlu0
        %v1069 = vpop.trf.xlu0
        %v1070 = vpop.trf.xlu0
        %v1071 = vpop.trf.xlu0
        %v1072 = vpop.trf.xlu0
        %1073 = vxpose.xlu0.b32.start [1/16] %v876, 128
        %1074 = vxpose.xlu0.b32.cont [2/16] 0.0, 128
        %1075 = vxpose.xlu0.b32.cont [3/16] 0.0, 128
        %1076 = vxpose.xlu0.b32.cont [4/16] 0.0, 128
        %1077 = vxpose.xlu0.b32.cont [5/16] 0.0, 128
        %1078 = vxpose.xlu0.b32.cont [6/16] 0.0, 128
        %1079 = vxpose.xlu0.b32.cont [7/16] 0.0, 128
        %1080 = vxpose.xlu0.b32.cont [8/16] 0.0, 128
        %1081 = vxpose.xlu0.b32.cont [9/16] 0.0, 128
        %1082 = vxpose.xlu0.b32.cont [10/16] 0.0, 128
        %1083 = vxpose.xlu0.b32.cont [11/16] 0.0, 128
        %1084 = vxpose.xlu0.b32.cont [12/16] 0.0, 128
        %1085 = vxpose.xlu0.b32.cont [13/16] 0.0, 128
        %1086 = vxpose.xlu0.b32.cont [14/16] 0.0, 128
        %1087 = vxpose.xlu0.b32.cont [15/16] 0.0, 128
        %1088 = vxpose.xlu0.b32.end [16/16] 0.0, 128
        %v1089 = vpop.trf.xlu0
        %v1090 = vpop.trf.xlu0
        %v1091 = vpop.trf.xlu0
        %v1092 = vpop.trf.xlu0
        %v1093 = vpop.trf.xlu0
        %v1094 = vpop.trf.xlu0
        %v1095 = vpop.trf.xlu0
        %v1096 = vpop.trf.xlu0
        %v1097 = vpop.trf.xlu0
        %v1098 = vpop.trf.xlu0
        %v1099 = vpop.trf.xlu0
        %v1100 = vpop.trf.xlu0
        %v1101 = vpop.trf.xlu0
        %v1102 = vpop.trf.xlu0
        %v1103 = vpop.trf.xlu0
        %v1104 = vpop.trf.xlu0
        %1105 = vxpose.xlu0.b32.start [1/16] %v1089, 128
        %1106 = vxpose.xlu0.b32.cont [2/16] %v1090, 128
        %1107 = vxpose.xlu0.b32.cont [3/16] %v1091, 128
        %1108 = vxpose.xlu0.b32.cont [4/16] %v1092, 128
        %1109 = vxpose.xlu0.b32.cont [5/16] 0.0, 128
        %1110 = vxpose.xlu0.b32.cont [6/16] 0.0, 128
        %1111 = vxpose.xlu0.b32.cont [7/16] 0.0, 128
        %1112 = vxpose.xlu0.b32.cont [8/16] 0.0, 128
        %1113 = vxpose.xlu0.b32.cont [9/16] 0.0, 128
        %1114 = vxpose.xlu0.b32.cont [10/16] 0.0, 128
        %1115 = vxpose.xlu0.b32.cont [11/16] 0.0, 128
        %1116 = vxpose.xlu0.b32.cont [12/16] 0.0, 128
        %1117 = vxpose.xlu0.b32.cont [13/16] 0.0, 128
        %1118 = vxpose.xlu0.b32.cont [14/16] 0.0, 128
        %1119 = vxpose.xlu0.b32.cont [15/16] 0.0, 128
        %1120 = vxpose.xlu0.b32.end [16/16] 0.0, 128
        %v1121 = vpop.trf.xlu0
        %v1122 = vpop.trf.xlu0
        %v1123 = vpop.trf.xlu0
        %v1124 = vpop.trf.xlu0
        %v1125 = vpop.trf.xlu0
        %v1126 = vpop.trf.xlu0
        %v1127 = vpop.trf.xlu0
        %v1128 = vpop.trf.xlu0
        %v1129 = vpop.trf.xlu0
        %v1130 = vpop.trf.xlu0
        %v1131 = vpop.trf.xlu0
        %v1132 = vpop.trf.xlu0
        %v1133 = vpop.trf.xlu0
        %v1134 = vpop.trf.xlu0
        %v1135 = vpop.trf.xlu0
        %v1136 = vpop.trf.xlu0
        %1137 = vxpose.xlu0.b32.start [1/16] %v1093, 128
        %1138 = vxpose.xlu0.b32.cont [2/16] %v1094, 128
        %1139 = vxpose.xlu0.b32.cont [3/16] %v1095, 128
        %1140 = vxpose.xlu0.b32.cont [4/16] %v1096, 128
        %1141 = vxpose.xlu0.b32.cont [5/16] 0.0, 128
        %1142 = vxpose.xlu0.b32.cont [6/16] 0.0, 128
        %1143 = vxpose.xlu0.b32.cont [7/16] 0.0, 128
        %1144 = vxpose.xlu0.b32.cont [8/16] 0.0, 128
        %1145 = vxpose.xlu0.b32.cont [9/16] 0.0, 128
        %1146 = vxpose.xlu0.b32.cont [10/16] 0.0, 128
        %1147 = vxpose.xlu0.b32.cont [11/16] 0.0, 128
        %1148 = vxpose.xlu0.b32.cont [12/16] 0.0, 128
        %1149 = vxpose.xlu0.b32.cont [13/16] 0.0, 128
        %1150 = vxpose.xlu0.b32.cont [14/16] 0.0, 128
        %1151 = vxpose.xlu0.b32.cont [15/16] 0.0, 128
        %1152 = vxpose.xlu0.b32.end [16/16] 0.0, 128
        %v1153 = vpop.trf.xlu0
        %v1154 = vpop.trf.xlu0
        %v1155 = vpop.trf.xlu0
        %v1156 = vpop.trf.xlu0
        %v1157 = vpop.trf.xlu0
        %v1158 = vpop.trf.xlu0
        %v1159 = vpop.trf.xlu0
        %v1160 = vpop.trf.xlu0
        %v1161 = vpop.trf.xlu0
        %v1162 = vpop.trf.xlu0
        %v1163 = vpop.trf.xlu0
        %v1164 = vpop.trf.xlu0
        %v1165 = vpop.trf.xlu0
        %v1166 = vpop.trf.xlu0
        %v1167 = vpop.trf.xlu0
        %v1168 = vpop.trf.xlu0
        %1169 = vxpose.xlu0.b32.start [1/16] %v1097, 128
        %1170 = vxpose.xlu0.b32.cont [2/16] %v1098, 128
        %1171 = vxpose.xlu0.b32.cont [3/16] %v1099, 128
        %1172 = vxpose.xlu0.b32.cont [4/16] %v1100, 128
        %1173 = vxpose.xlu0.b32.cont [5/16] 0.0, 128
        %1174 = vxpose.xlu0.b32.cont [6/16] 0.0, 128
        %1175 = vxpose.xlu0.b32.cont [7/16] 0.0, 128
        %1176 = vxpose.xlu0.b32.cont [8/16] 0.0, 128
        %1177 = vxpose.xlu0.b32.cont [9/16] 0.0, 128
        %1178 = vxpose.xlu0.b32.cont [10/16] 0.0, 128
        %1179 = vxpose.xlu0.b32.cont [11/16] 0.0, 128
        %1180 = vxpose.xlu0.b32.cont [12/16] 0.0, 128
        %1181 = vxpose.xlu0.b32.cont [13/16] 0.0, 128
        %1182 = vxpose.xlu0.b32.cont [14/16] 0.0, 128
        %1183 = vxpose.xlu0.b32.cont [15/16] 0.0, 128
        %1184 = vxpose.xlu0.b32.end [16/16] 0.0, 128
        %v1185 = vpop.trf.xlu0
        %v1186 = vpop.trf.xlu0
        %v1187 = vpop.trf.xlu0
        %v1188 = vpop.trf.xlu0
        %v1189 = vpop.trf.xlu0
        %v1190 = vpop.trf.xlu0
        %v1191 = vpop.trf.xlu0
        %v1192 = vpop.trf.xlu0
        %v1193 = vpop.trf.xlu0
        %v1194 = vpop.trf.xlu0
        %v1195 = vpop.trf.xlu0
        %v1196 = vpop.trf.xlu0
        %v1197 = vpop.trf.xlu0
        %v1198 = vpop.trf.xlu0
        %v1199 = vpop.trf.xlu0
        %v1200 = vpop.trf.xlu0
        %1201 = vxpose.xlu0.b32.start [1/16] %v1101, 128
        %1202 = vxpose.xlu0.b32.cont [2/16] %v1102, 128
        %1203 = vxpose.xlu0.b32.cont [3/16] %v1103, 128
        %1204 = vxpose.xlu0.b32.cont [4/16] %v1104, 128
        %1205 = vxpose.xlu0.b32.cont [5/16] 0.0, 128
        %1206 = vxpose.xlu0.b32.cont [6/16] 0.0, 128
        %1207 = vxpose.xlu0.b32.cont [7/16] 0.0, 128
        %1208 = vxpose.xlu0.b32.cont [8/16] 0.0, 128
        %1209 = vxpose.xlu0.b32.cont [9/16] 0.0, 128
        %1210 = vxpose.xlu0.b32.cont [10/16] 0.0, 128
        %1211 = vxpose.xlu0.b32.cont [11/16] 0.0, 128
        %1212 = vxpose.xlu0.b32.cont [12/16] 0.0, 128
        %1213 = vxpose.xlu0.b32.cont [13/16] 0.0, 128
        %1214 = vxpose.xlu0.b32.cont [14/16] 0.0, 128
        %1215 = vxpose.xlu0.b32.cont [15/16] 0.0, 128
        %1216 = vxpose.xlu0.b32.end [16/16] 0.0, 128
        %v1217 = vpop.trf.xlu0
        %v1218 = vpop.trf.xlu0
        %v1219 = vpop.trf.xlu0
        %v1220 = vpop.trf.xlu0
        %v1221 = vpop.trf.xlu0
        %v1222 = vpop.trf.xlu0
        %v1223 = vpop.trf.xlu0
        %v1224 = vpop.trf.xlu0
        %v1225 = vpop.trf.xlu0
        %v1226 = vpop.trf.xlu0
        %v1227 = vpop.trf.xlu0
        %v1228 = vpop.trf.xlu0
        %v1229 = vpop.trf.xlu0
        %v1230 = vpop.trf.xlu0
        %v1231 = vpop.trf.xlu0
        %v1232 = vpop.trf.xlu0
        %v1233 = vpack.c.bf16 %v929, %v929
        %v1234 = vpack.c.bf16 %v961, %v961
        %v1235 = vpack.c.bf16 %v993, %v993
        %v1236 = vpack.c.bf16 %v1025, %v1025
        %v1237 = vpack.c.bf16 %v1058, %v1057
        %v1238 = vpack.c.bf16 %v1060, %v1059
        %v1239 = vpack.c.bf16 %v1062, %v1061
        %v1240 = vpack.c.bf16 %v1064, %v1063
        %v1241 = vpack.c.bf16 %v1066, %v1065
        %v1242 = vpack.c.bf16 %v1068, %v1067
        %v1243 = vpack.c.bf16 %v1070, %v1069
        %v1244 = vpack.c.bf16 %v1072, %v1071
        %v1246 = vlaneseq
        %v1247 = vshrl.u32 %v1246, 7
        %v1248 = vsub.s32 0, %v1247
        %v1249 = vrot.slane %v600, %v1248
        %vm1251 = vcmask 261120
        %v1253 = vsel %vm1251, %v1233, 0
        %1255 = vmatprep.subr.bf16.mxu0 0
        %1256 = vmatpush1.bf16.msra.mxu0 %v1237
        %1257 = vmatprep.subr.bf16.mxu0 0
        %1258 = vmatpush1.bf16.msra.mxu0 %v1238
        %1259 = vmatprep.subr.bf16.mxu0 0
        %1260 = vmatpush1.bf16.msra.mxu0 0
        %1261 = vmatprep.subr.bf16.mxu0 0
        %1262 = vmatpush1.bf16.msra.mxu0 0
        %1263 = vmatprep.subr.bf16.mxu0 0
        %1264 = vmatpush1.bf16.msra.mxu0 0
        %1265 = vmatprep.subr.bf16.mxu0 0
        %1266 = vmatpush1.bf16.msra.mxu0 0
        %1267 = vmatprep.subr.bf16.mxu0 0
        %1268 = vmatpush1.bf16.msra.mxu0 0
        %1269 = vmatprep.subr.bf16.mxu0 0
        %1270 = vmatpush1.bf16.msra.mxu0 0
        %1271 = vmatprep.subr.bf16.mxu0 0
        %1272 = vmatpush1.bf16.msra.mxu0 0
        %1273 = vmatprep.subr.bf16.mxu0 0
        %1274 = vmatpush1.bf16.msra.mxu0 0
        %1275 = vmatprep.subr.bf16.mxu0 0
        %1276 = vmatpush1.bf16.msra.mxu0 0
        %1277 = vmatprep.subr.bf16.mxu0 0
        %1278 = vmatpush1.bf16.msra.mxu0 0
        %1279 = vmatprep.subr.bf16.mxu0 0
        %1280 = vmatpush1.bf16.msra.mxu0 0
        %1281 = vmatprep.subr.bf16.mxu0 0
        %1282 = vmatpush1.bf16.msra.mxu0 0
        %1283 = vmatprep.subr.bf16.mxu0 0
        %1284 = vmatpush1.bf16.msra.mxu0 0
        %1285 = vmatprep.subr.bf16.mxu0 0
        %1286 = vmatpush1.bf16.msra.mxu0 0
        %1287 = vmatprep.mubr.bf16.mxu0 0
        %1288 = vmatmul.mubr.bf16.gmra.mrb[0].mxu0 %v1253
        %v1289 = vpop.f32.mrb[0].mxu0
        %v1290 = vadd.f32 %v1249, %v1289
        %v1291 = vpop.f32.mrb[0].mxu0
        %v1292 = vpop.f32.mrb[0].mxu0
        %v1293 = vpop.f32.mrb[0].mxu0
        %1294 = vdwg.mxu0
        %v1296 = vsel %vm1251, %v1234, 0
        %1298 = vmatprep.subr.bf16.mxu0 0
        %1299 = vmatpush1.bf16.msra.mxu0 %v1239
        %1300 = vmatprep.subr.bf16.mxu0 0
        %1301 = vmatpush1.bf16.msra.mxu0 %v1240
        %1302 = vmatprep.subr.bf16.mxu0 0
        %1303 = vmatpush1.bf16.msra.mxu0 0
        %1304 = vmatprep.subr.bf16.mxu0 0
        %1305 = vmatpush1.bf16.msra.mxu0 0
        %1306 = vmatprep.subr.bf16.mxu0 0
        %1307 = vmatpush1.bf16.msra.mxu0 0
        %1308 = vmatprep.subr.bf16.mxu0 0
        %1309 = vmatpush1.bf16.msra.mxu0 0
        %1310 = vmatprep.subr.bf16.mxu0 0
        %1311 = vmatpush1.bf16.msra.mxu0 0
        %1312 = vmatprep.subr.bf16.mxu0 0
        %1313 = vmatpush1.bf16.msra.mxu0 0
        %1314 = vmatprep.subr.bf16.mxu0 0
        %1315 = vmatpush1.bf16.msra.mxu0 0
        %1316 = vmatprep.subr.bf16.mxu0 0
        %1317 = vmatpush1.bf16.msra.mxu0 0
        %1318 = vmatprep.subr.bf16.mxu0 0
        %1319 = vmatpush1.bf16.msra.mxu0 0
        %1320 = vmatprep.subr.bf16.mxu0 0
        %1321 = vmatpush1.bf16.msra.mxu0 0
        %1322 = vmatprep.subr.bf16.mxu0 0
        %1323 = vmatpush1.bf16.msra.mxu0 0
        %1324 = vmatprep.subr.bf16.mxu0 0
        %1325 = vmatpush1.bf16.msra.mxu0 0
        %1326 = vmatprep.subr.bf16.mxu0 0
        %1327 = vmatpush1.bf16.msra.mxu0 0
        %1328 = vmatprep.subr.bf16.mxu0 0
        %1329 = vmatpush1.bf16.msra.mxu0 0
        %1330 = vmatprep.mubr.bf16.mxu0 0
        %1331 = vmatmul.mubr.bf16.gmra.mrb[0].mxu0 %v1296
        %v1332 = vpop.f32.mrb[0].mxu0
        %v1333 = vadd.f32 %v1249, %v1332
        %v1334 = vpop.f32.mrb[0].mxu0
        %v1335 = vpop.f32.mrb[0].mxu0
        %v1336 = vpop.f32.mrb[0].mxu0
        %1337 = vdwg.mxu0
        %v1339 = vsel %vm1251, %v1235, 0
        %1341 = vmatprep.subr.bf16.mxu0 0
        %1342 = vmatpush1.bf16.msra.mxu0 %v1241
        %1343 = vmatprep.subr.bf16.mxu0 0
        %1344 = vmatpush1.bf16.msra.mxu0 %v1242
        %1345 = vmatprep.subr.bf16.mxu0 0
        %1346 = vmatpush1.bf16.msra.mxu0 0
        %1347 = vmatprep.subr.bf16.mxu0 0
        %1348 = vmatpush1.bf16.msra.mxu0 0
        %1349 = vmatprep.subr.bf16.mxu0 0
        %1350 = vmatpush1.bf16.msra.mxu0 0
        %1351 = vmatprep.subr.bf16.mxu0 0
        %1352 = vmatpush1.bf16.msra.mxu0 0
        %1353 = vmatprep.subr.bf16.mxu0 0
        %1354 = vmatpush1.bf16.msra.mxu0 0
        %1355 = vmatprep.subr.bf16.mxu0 0
        %1356 = vmatpush1.bf16.msra.mxu0 0
        %1357 = vmatprep.subr.bf16.mxu0 0
        %1358 = vmatpush1.bf16.msra.mxu0 0
        %1359 = vmatprep.subr.bf16.mxu0 0
        %1360 = vmatpush1.bf16.msra.mxu0 0
        %1361 = vmatprep.subr.bf16.mxu0 0
        %1362 = vmatpush1.bf16.msra.mxu0 0
        %1363 = vmatprep.subr.bf16.mxu0 0
        %1364 = vmatpush1.bf16.msra.mxu0 0
        %1365 = vmatprep.subr.bf16.mxu0 0
        %1366 = vmatpush1.bf16.msra.mxu0 0
        %1367 = vmatprep.subr.bf16.mxu0 0
        %1368 = vmatpush1.bf16.msra.mxu0 0
        %1369 = vmatprep.subr.bf16.mxu0 0
        %1370 = vmatpush1.bf16.msra.mxu0 0
        %1371 = vmatprep.subr.bf16.mxu0 0
        %1372 = vmatpush1.bf16.msra.mxu0 0
        %1373 = vmatprep.mubr.bf16.mxu0 0
        %1374 = vmatmul.mubr.bf16.gmra.mrb[0].mxu0 %v1339
        %v1375 = vpop.f32.mrb[0].mxu0
        %v1376 = vadd.f32 %v1249, %v1375
        %v1377 = vpop.f32.mrb[0].mxu0
        %v1378 = vpop.f32.mrb[0].mxu0
        %v1379 = vpop.f32.mrb[0].mxu0
        %1380 = vdwg.mxu0
        %v1382 = vsel %vm1251, %v1236, 0
        %1384 = vmatprep.subr.bf16.mxu0 0
        %1385 = vmatpush1.bf16.msra.mxu0 %v1243
        %1386 = vmatprep.subr.bf16.mxu0 0
        %1387 = vmatpush1.bf16.msra.mxu0 %v1244
        %1388 = vmatprep.subr.bf16.mxu0 0
        %1389 = vmatpush1.bf16.msra.mxu0 0
        %1390 = vmatprep.subr.bf16.mxu0 0
        %1391 = vmatpush1.bf16.msra.mxu0 0
        %1392 = vmatprep.subr.bf16.mxu0 0
        %1393 = vmatpush1.bf16.msra.mxu0 0
        %1394 = vmatprep.subr.bf16.mxu0 0
        %1395 = vmatpush1.bf16.msra.mxu0 0
        %1396 = vmatprep.subr.bf16.mxu0 0
        %1397 = vmatpush1.bf16.msra.mxu0 0
        %1398 = vmatprep.subr.bf16.mxu0 0
        %1399 = vmatpush1.bf16.msra.mxu0 0
        %1400 = vmatprep.subr.bf16.mxu0 0
        %1401 = vmatpush1.bf16.msra.mxu0 0
        %1402 = vmatprep.subr.bf16.mxu0 0
        %1403 = vmatpush1.bf16.msra.mxu0 0
        %1404 = vmatprep.subr.bf16.mxu0 0
        %1405 = vmatpush1.bf16.msra.mxu0 0
        %1406 = vmatprep.subr.bf16.mxu0 0
        %1407 = vmatpush1.bf16.msra.mxu0 0
        %1408 = vmatprep.subr.bf16.mxu0 0
        %1409 = vmatpush1.bf16.msra.mxu0 0
        %1410 = vmatprep.subr.bf16.mxu0 0
        %1411 = vmatpush1.bf16.msra.mxu0 0
        %1412 = vmatprep.subr.bf16.mxu0 0
        %1413 = vmatpush1.bf16.msra.mxu0 0
        %1414 = vmatprep.subr.bf16.mxu0 0
        %1415 = vmatpush1.bf16.msra.mxu0 0
        %1416 = vmatprep.mubr.bf16.mxu0 0
        %1417 = vmatmul.mubr.bf16.gmra.mrb[0].mxu0 %v1382
        %v1418 = vpop.f32.mrb[0].mxu0
        %v1419 = vadd.f32 %v1249, %v1418
        %v1420 = vpop.f32.mrb[0].mxu0
        %v1421 = vpop.f32.mrb[0].mxu0
        %v1422 = vpop.f32.mrb[0].mxu0
        %1423 = vdwg.mxu0
        %vm1424 = vcmask 64512
        %v1425 = vsel %vm1424, %v1290, -inf
        %1426 = vmax.xlane.f32.xlu0 %v1425
        %v1427 = vpop.xlane.xlu0 %1426
        %v1428 = vsel %vm1424, %v1333, -inf
        %1429 = vmax.xlane.f32.xlu0 %v1428
        %v1430 = vpop.xlane.xlu0 %1429
        %v1431 = vsel %vm1424, %v1376, -inf
        %1432 = vmax.xlane.f32.xlu0 %v1431
        %v1433 = vpop.xlane.xlu0 %1432
        %v1434 = vsel %vm1424, %v1419, -inf
        %1435 = vmax.xlane.f32.xlu0 %v1434
        %v1436 = vpop.xlane.xlu0 %1435
        %v1437 = vsub.f32 %v1290, %v1427
        %v1438 = vsub.f32 %v1333, %v1430
        %v1439 = vsub.f32 %v1376, %v1433
        %v1440 = vsub.f32 %v1419, %v1436
        %v1441 = vmul.f32 %v1437, 1.442695
        %v1442 = vpow.pop %v1441
        %v1443 = vmul.f32 %v1438, 1.442695
        %v1444 = vpow.pop %v1443
        %v1445 = vmul.f32 %v1439, 1.442695
        %v1446 = vpow.pop %v1445
        %v1447 = vmul.f32 %v1440, 1.442695
        %v1448 = vpow.pop %v1447
        %v1449 = vsel %vm1424, %v1442, 0.0
        %1450 = vadd.xlane.f32.xlu0 %v1449
        %v1451 = vpop.xlane.xlu0 %1450
        %v1452 = vsel %vm1424, %v1444, 0.0
        %1453 = vadd.xlane.f32.xlu0 %v1452
        %v1454 = vpop.xlane.xlu0 %1453
        %v1455 = vsel %vm1424, %v1446, 0.0
        %1456 = vadd.xlane.f32.xlu0 %v1455
        %v1457 = vpop.xlane.xlu0 %1456
        %v1458 = vsel %vm1424, %v1448, 0.0
        %1459 = vadd.xlane.f32.xlu0 %v1458
        %v1460 = vpop.xlane.xlu0 %1459
        %v1461 = vrcp.pop %v1451
        %v1462 = vrcp.pop %v1454
        %v1463 = vrcp.pop %v1457
        %v1464 = vrcp.pop %v1460
        %v1465 = vmul.f32 %v1442, %v1461
        %v1466 = vmul.f32 %v1444, %v1462
        %v1467 = vmul.f32 %v1446, %v1463
        %v1468 = vmul.f32 %v1448, %v1464
        %v1469 = vpack.c.bf16 %v1465, %v1465
        %v1470 = vpack.c.bf16 %v1466, %v1466
        %v1471 = vpack.c.bf16 %v1467, %v1467
        %v1472 = vpack.c.bf16 %v1468, %v1468
        %v1473 = vpack.c.bf16 %v1121, %v1121
        %v1474 = vpack.c.bf16 %v1153, %v1153
        %v1475 = vpack.c.bf16 %v1185, %v1185
        %v1476 = vpack.c.bf16 %v1217, %v1217
        %v1478 = vsel %vm1424, %v1469, 0
        %vm1480 = vcmask 1043456
        %v1482 = vsel %vm1480, %v1473, 0
        %1484 = vmatprep.subr.bf16.mxu0 0
        %1485 = vmatpush1.bf16.msra.mxu0 %v1482
        %1486 = vmatprep.subr.bf16.mxu0 0
        %1487 = vmatpush1.bf16.msra.mxu0 0
        %1488 = vmatprep.subr.bf16.mxu0 0
        %1489 = vmatpush1.bf16.msra.mxu0 0
        %1490 = vmatprep.subr.bf16.mxu0 0
        %1491 = vmatpush1.bf16.msra.mxu0 0
        %1492 = vmatprep.subr.bf16.mxu0 0
        %1493 = vmatpush1.bf16.msra.mxu0 0
        %1494 = vmatprep.subr.bf16.mxu0 0
        %1495 = vmatpush1.bf16.msra.mxu0 0
        %1496 = vmatprep.subr.bf16.mxu0 0
        %1497 = vmatpush1.bf16.msra.mxu0 0
        %1498 = vmatprep.subr.bf16.mxu0 0
        %1499 = vmatpush1.bf16.msra.mxu0 0
        %1500 = vmatprep.subr.bf16.mxu0 0
        %1501 = vmatpush1.bf16.msra.mxu0 0
        %1502 = vmatprep.subr.bf16.mxu0 0
        %1503 = vmatpush1.bf16.msra.mxu0 0
        %1504 = vmatprep.subr.bf16.mxu0 0
        %1505 = vmatpush1.bf16.msra.mxu0 0
        %1506 = vmatprep.subr.bf16.mxu0 0
        %1507 = vmatpush1.bf16.msra.mxu0 0
        %1508 = vmatprep.subr.bf16.mxu0 0
        %1509 = vmatpush1.bf16.msra.mxu0 0
        %1510 = vmatprep.subr.bf16.mxu0 0
        %1511 = vmatpush1.bf16.msra.mxu0 0
        %1512 = vmatprep.subr.bf16.mxu0 0
        %1513 = vmatpush1.bf16.msra.mxu0 0
        %1514 = vmatprep.subr.bf16.mxu0 0
        %1515 = vmatpush1.bf16.msra.mxu0 0
        %1516 = vmatprep.mubr.bf16.mxu0 0
        %1517 = vmatmul.mubr.bf16.gmra.mrb[0].mxu0 %v1478
        %v1518 = vpop.f32.mrb[0].mxu0
        %v1519 = vadd.f32 0.0, %v1518
        %v1520 = vpop.f32.mrb[0].mxu0
        %v1521 = vpop.f32.mrb[0].mxu0
        %v1522 = vpop.f32.mrb[0].mxu0
        %1523 = vdwg.mxu0
        %v1525 = vsel %vm1424, %v1470, 0
        %v1528 = vsel %vm1480, %v1474, 0
        %1530 = vmatprep.subr.bf16.mxu0 0
        %1531 = vmatpush1.bf16.msra.mxu0 %v1528
        %1532 = vmatprep.subr.bf16.mxu0 0
        %1533 = vmatpush1.bf16.msra.mxu0 0
        %1534 = vmatprep.subr.bf16.mxu0 0
        %1535 = vmatpush1.bf16.msra.mxu0 0
        %1536 = vmatprep.subr.bf16.mxu0 0
        %1537 = vmatpush1.bf16.msra.mxu0 0
        %1538 = vmatprep.subr.bf16.mxu0 0
        %1539 = vmatpush1.bf16.msra.mxu0 0
        %1540 = vmatprep.subr.bf16.mxu0 0
        %1541 = vmatpush1.bf16.msra.mxu0 0
        %1542 = vmatprep.subr.bf16.mxu0 0
        %1543 = vmatpush1.bf16.msra.mxu0 0
        %1544 = vmatprep.subr.bf16.mxu0 0
        %1545 = vmatpush1.bf16.msra.mxu0 0
        %1546 = vmatprep.subr.bf16.mxu0 0
        %1547 = vmatpush1.bf16.msra.mxu0 0
        %1548 = vmatprep.subr.bf16.mxu0 0
        %1549 = vmatpush1.bf16.msra.mxu0 0
        %1550 = vmatprep.subr.bf16.mxu0 0
        %1551 = vmatpush1.bf16.msra.mxu0 0
        %1552 = vmatprep.subr.bf16.mxu0 0
        %1553 = vmatpush1.bf16.msra.mxu0 0
        %1554 = vmatprep.subr.bf16.mxu0 0
        %1555 = vmatpush1.bf16.msra.mxu0 0
        %1556 = vmatprep.subr.bf16.mxu0 0
        %1557 = vmatpush1.bf16.msra.mxu0 0
        %1558 = vmatprep.subr.bf16.mxu0 0
        %1559 = vmatpush1.bf16.msra.mxu0 0
        %1560 = vmatprep.subr.bf16.mxu0 0
        %1561 = vmatpush1.bf16.msra.mxu0 0
        %1562 = vmatprep.mubr.bf16.mxu0 0
        %1563 = vmatmul.mubr.bf16.gmra.mrb[0].mxu0 %v1525
        %v1564 = vpop.f32.mrb[0].mxu0
        %v1565 = vadd.f32 0.0, %v1564
        %v1566 = vpop.f32.mrb[0].mxu0
        %v1567 = vpop.f32.mrb[0].mxu0
        %v1568 = vpop.f32.mrb[0].mxu0
        %1569 = vdwg.mxu0
        %v1571 = vsel %vm1424, %v1471, 0
        %v1574 = vsel %vm1480, %v1475, 0
        %1576 = vmatprep.subr.bf16.mxu0 0
        %1577 = vmatpush1.bf16.msra.mxu0 %v1574
        %1578 = vmatprep.subr.bf16.mxu0 0
        %1579 = vmatpush1.bf16.msra.mxu0 0
        %1580 = vmatprep.subr.bf16.mxu0 0
        %1581 = vmatpush1.bf16.msra.mxu0 0
        %1582 = vmatprep.subr.bf16.mxu0 0
        %1583 = vmatpush1.bf16.msra.mxu0 0
        %1584 = vmatprep.subr.bf16.mxu0 0
        %1585 = vmatpush1.bf16.msra.mxu0 0
        %1586 = vmatprep.subr.bf16.mxu0 0
        %1587 = vmatpush1.bf16.msra.mxu0 0
        %1588 = vmatprep.subr.bf16.mxu0 0
        %1589 = vmatpush1.bf16.msra.mxu0 0
        %1590 = vmatprep.subr.bf16.mxu0 0
        %1591 = vmatpush1.bf16.msra.mxu0 0
        %1592 = vmatprep.subr.bf16.mxu0 0
        %1593 = vmatpush1.bf16.msra.mxu0 0
        %1594 = vmatprep.subr.bf16.mxu0 0
        %1595 = vmatpush1.bf16.msra.mxu0 0
        %1596 = vmatprep.subr.bf16.mxu0 0
        %1597 = vmatpush1.bf16.msra.mxu0 0
        %1598 = vmatprep.subr.bf16.mxu0 0
        %1599 = vmatpush1.bf16.msra.mxu0 0
        %1600 = vmatprep.subr.bf16.mxu0 0
        %1601 = vmatpush1.bf16.msra.mxu0 0
        %1602 = vmatprep.subr.bf16.mxu0 0
        %1603 = vmatpush1.bf16.msra.mxu0 0
        %1604 = vmatprep.subr.bf16.mxu0 0
        %1605 = vmatpush1.bf16.msra.mxu0 0
        %1606 = vmatprep.subr.bf16.mxu0 0
        %1607 = vmatpush1.bf16.msra.mxu0 0
        %1608 = vmatprep.mubr.bf16.mxu0 0
        %1609 = vmatmul.mubr.bf16.gmra.mrb[0].mxu0 %v1571
        %v1610 = vpop.f32.mrb[0].mxu0
        %v1611 = vadd.f32 0.0, %v1610
        %v1612 = vpop.f32.mrb[0].mxu0
        %v1613 = vpop.f32.mrb[0].mxu0
        %v1614 = vpop.f32.mrb[0].mxu0
        %1615 = vdwg.mxu0
        %v1617 = vsel %vm1424, %v1472, 0
        %v1620 = vsel %vm1480, %v1476, 0
        %1622 = vmatprep.subr.bf16.mxu0 0
        %1623 = vmatpush1.bf16.msra.mxu0 %v1620
        %1624 = vmatprep.subr.bf16.mxu0 0
        %1625 = vmatpush1.bf16.msra.mxu0 0
        %1626 = vmatprep.subr.bf16.mxu0 0
        %1627 = vmatpush1.bf16.msra.mxu0 0
        %1628 = vmatprep.subr.bf16.mxu0 0
        %1629 = vmatpush1.bf16.msra.mxu0 0
        %1630 = vmatprep.subr.bf16.mxu0 0
        %1631 = vmatpush1.bf16.msra.mxu0 0
        %1632 = vmatprep.subr.bf16.mxu0 0
        %1633 = vmatpush1.bf16.msra.mxu0 0
        %1634 = vmatprep.subr.bf16.mxu0 0
        %1635 = vmatpush1.bf16.msra.mxu0 0
        %1636 = vmatprep.subr.bf16.mxu0 0
        %1637 = vmatpush1.bf16.msra.mxu0 0
        %1638 = vmatprep.subr.bf16.mxu0 0
        %1639 = vmatpush1.bf16.msra.mxu0 0
        %1640 = vmatprep.subr.bf16.mxu0 0
        %1641 = vmatpush1.bf16.msra.mxu0 0
        %1642 = vmatprep.subr.bf16.mxu0 0
        %1643 = vmatpush1.bf16.msra.mxu0 0
        %1644 = vmatprep.subr.bf16.mxu0 0
        %1645 = vmatpush1.bf16.msra.mxu0 0
        %1646 = vmatprep.subr.bf16.mxu0 0
        %1647 = vmatpush1.bf16.msra.mxu0 0
        %1648 = vmatprep.subr.bf16.mxu0 0
        %1649 = vmatpush1.bf16.msra.mxu0 0
        %1650 = vmatprep.subr.bf16.mxu0 0
        %1651 = vmatpush1.bf16.msra.mxu0 0
        %1652 = vmatprep.subr.bf16.mxu0 0
        %1653 = vmatpush1.bf16.msra.mxu0 0
        %1654 = vmatprep.mubr.bf16.mxu0 0
        %1655 = vmatmul.mubr.bf16.gmra.mrb[0].mxu0 %v1617
        %v1656 = vpop.f32.mrb[0].mxu0
        %v1657 = vadd.f32 0.0, %v1656
        %v1658 = vpop.f32.mrb[0].mxu0
        %v1659 = vpop.f32.mrb[0].mxu0
        %v1660 = vpop.f32.mrb[0].mxu0
        %1661 = vdwg.mxu0
        %1662 = vxpose.xlu0.b32.start [1/16] %v1519, 128
        %1663 = vxpose.xlu0.b32.cont [2/16] 0.0, 128
        %1664 = vxpose.xlu0.b32.cont [3/16] 0.0, 128
        %1665 = vxpose.xlu0.b32.cont [4/16] 0.0, 128
        %1666 = vxpose.xlu0.b32.cont [5/16] 0.0, 128
        %1667 = vxpose.xlu0.b32.cont [6/16] 0.0, 128
        %1668 = vxpose.xlu0.b32.cont [7/16] 0.0, 128
        %1669 = vxpose.xlu0.b32.cont [8/16] 0.0, 128
        %1670 = vxpose.xlu0.b32.cont [9/16] 0.0, 128
        %1671 = vxpose.xlu0.b32.cont [10/16] 0.0, 128
        %1672 = vxpose.xlu0.b32.cont [11/16] 0.0, 128
        %1673 = vxpose.xlu0.b32.cont [12/16] 0.0, 128
        %1674 = vxpose.xlu0.b32.cont [13/16] 0.0, 128
        %1675 = vxpose.xlu0.b32.cont [14/16] 0.0, 128
        %1676 = vxpose.xlu0.b32.cont [15/16] 0.0, 128
        %1677 = vxpose.xlu0.b32.end [16/16] 0.0, 128
        %v1678 = vpop.trf.xlu0
        %v1679 = vpop.trf.xlu0
        %v1680 = vpop.trf.xlu0
        %v1681 = vpop.trf.xlu0
        %v1682 = vpop.trf.xlu0
        %v1683 = vpop.trf.xlu0
        %v1684 = vpop.trf.xlu0
        %v1685 = vpop.trf.xlu0
        %v1686 = vpop.trf.xlu0
        %v1687 = vpop.trf.xlu0
        %v1688 = vpop.trf.xlu0
        %v1689 = vpop.trf.xlu0
        %v1690 = vpop.trf.xlu0
        %v1691 = vpop.trf.xlu0
        %v1692 = vpop.trf.xlu0
        %v1693 = vpop.trf.xlu0
        %1694 = vxpose.xlu0.b32.start [1/16] %v1565, 128
        %1695 = vxpose.xlu0.b32.cont [2/16] 0.0, 128
        %1696 = vxpose.xlu0.b32.cont [3/16] 0.0, 128
        %1697 = vxpose.xlu0.b32.cont [4/16] 0.0, 128
        %1698 = vxpose.xlu0.b32.cont [5/16] 0.0, 128
        %1699 = vxpose.xlu0.b32.cont [6/16] 0.0, 128
        %1700 = vxpose.xlu0.b32.cont [7/16] 0.0, 128
        %1701 = vxpose.xlu0.b32.cont [8/16] 0.0, 128
        %1702 = vxpose.xlu0.b32.cont [9/16] 0.0, 128
        %1703 = vxpose.xlu0.b32.cont [10/16] 0.0, 128
        %1704 = vxpose.xlu0.b32.cont [11/16] 0.0, 128
        %1705 = vxpose.xlu0.b32.cont [12/16] 0.0, 128
        %1706 = vxpose.xlu0.b32.cont [13/16] 0.0, 128
        %1707 = vxpose.xlu0.b32.cont [14/16] 0.0, 128
        %1708 = vxpose.xlu0.b32.cont [15/16] 0.0, 128
        %1709 = vxpose.xlu0.b32.end [16/16] 0.0, 128
        %v1710 = vpop.trf.xlu0
        %v1711 = vpop.trf.xlu0
        %v1712 = vpop.trf.xlu0
        %v1713 = vpop.trf.xlu0
        %v1714 = vpop.trf.xlu0
        %v1715 = vpop.trf.xlu0
        %v1716 = vpop.trf.xlu0
        %v1717 = vpop.trf.xlu0
        %v1718 = vpop.trf.xlu0
        %v1719 = vpop.trf.xlu0
        %v1720 = vpop.trf.xlu0
        %v1721 = vpop.trf.xlu0
        %v1722 = vpop.trf.xlu0
        %v1723 = vpop.trf.xlu0
        %v1724 = vpop.trf.xlu0
        %v1725 = vpop.trf.xlu0
        %1726 = vxpose.xlu0.b32.start [1/16] %v1611, 128
        %1727 = vxpose.xlu0.b32.cont [2/16] 0.0, 128
        %1728 = vxpose.xlu0.b32.cont [3/16] 0.0, 128
        %1729 = vxpose.xlu0.b32.cont [4/16] 0.0, 128
        %1730 = vxpose.xlu0.b32.cont [5/16] 0.0, 128
        %1731 = vxpose.xlu0.b32.cont [6/16] 0.0, 128
        %1732 = vxpose.xlu0.b32.cont [7/16] 0.0, 128
        %1733 = vxpose.xlu0.b32.cont [8/16] 0.0, 128
        %1734 = vxpose.xlu0.b32.cont [9/16] 0.0, 128
        %1735 = vxpose.xlu0.b32.cont [10/16] 0.0, 128
        %1736 = vxpose.xlu0.b32.cont [11/16] 0.0, 128
        %1737 = vxpose.xlu0.b32.cont [12/16] 0.0, 128
        %1738 = vxpose.xlu0.b32.cont [13/16] 0.0, 128
        %1739 = vxpose.xlu0.b32.cont [14/16] 0.0, 128
        %1740 = vxpose.xlu0.b32.cont [15/16] 0.0, 128
        %1741 = vxpose.xlu0.b32.end [16/16] 0.0, 128
        %v1742 = vpop.trf.xlu0
        %v1743 = vpop.trf.xlu0
        %v1744 = vpop.trf.xlu0
        %v1745 = vpop.trf.xlu0
        %v1746 = vpop.trf.xlu0
        %v1747 = vpop.trf.xlu0
        %v1748 = vpop.trf.xlu0
        %v1749 = vpop.trf.xlu0
        %v1750 = vpop.trf.xlu0
        %v1751 = vpop.trf.xlu0
        %v1752 = vpop.trf.xlu0
        %v1753 = vpop.trf.xlu0
        %v1754 = vpop.trf.xlu0
        %v1755 = vpop.trf.xlu0
        %v1756 = vpop.trf.xlu0
        %v1757 = vpop.trf.xlu0
        %1758 = vxpose.xlu0.b32.start [1/16] %v1657, 128
        %1759 = vxpose.xlu0.b32.cont [2/16] 0.0, 128
        %1760 = vxpose.xlu0.b32.cont [3/16] 0.0, 128
        %1761 = vxpose.xlu0.b32.cont [4/16] 0.0, 128
        %1762 = vxpose.xlu0.b32.cont [5/16] 0.0, 128
        %1763 = vxpose.xlu0.b32.cont [6/16] 0.0, 128
        %1764 = vxpose.xlu0.b32.cont [7/16] 0.0, 128
        %1765 = vxpose.xlu0.b32.cont [8/16] 0.0, 128
        %1766 = vxpose.xlu0.b32.cont [9/16] 0.0, 128
        %1767 = vxpose.xlu0.b32.cont [10/16] 0.0, 128
        %1768 = vxpose.xlu0.b32.cont [11/16] 0.0, 128
        %1769 = vxpose.xlu0.b32.cont [12/16] 0.0, 128
        %1770 = vxpose.xlu0.b32.cont [13/16] 0.0, 128
        %1771 = vxpose.xlu0.b32.cont [14/16] 0.0, 128
        %1772 = vxpose.xlu0.b32.cont [15/16] 0.0, 128
        %1773 = vxpose.xlu0.b32.end [16/16] 0.0, 128
        %v1774 = vpop.trf.xlu0
        %v1775 = vpop.trf.xlu0
        %v1776 = vpop.trf.xlu0
        %v1777 = vpop.trf.xlu0
        %v1778 = vpop.trf.xlu0
        %v1779 = vpop.trf.xlu0
        %v1780 = vpop.trf.xlu0
        %v1781 = vpop.trf.xlu0
        %v1782 = vpop.trf.xlu0
        %v1783 = vpop.trf.xlu0
        %v1784 = vpop.trf.xlu0
        %v1785 = vpop.trf.xlu0
        %v1786 = vpop.trf.xlu0
        %v1787 = vpop.trf.xlu0
        %v1788 = vpop.trf.xlu0
        %v1789 = vpop.trf.xlu0
        %1790 = vxpose.xlu0.b32.start [1/16] %v1678, 128
        %1791 = vxpose.xlu0.b32.cont [2/16] %v1679, 128
        %1792 = vxpose.xlu0.b32.cont [3/16] %v1680, 128
        %1793 = vxpose.xlu0.b32.cont [4/16] %v1681, 128
        %1794 = vxpose.xlu0.b32.cont [5/16] %v1710, 128
        %1795 = vxpose.xlu0.b32.cont [6/16] %v1711, 128
        %1796 = vxpose.xlu0.b32.cont [7/16] %v1712, 128
        %1797 = vxpose.xlu0.b32.cont [8/16] %v1713, 128
        %1798 = vxpose.xlu0.b32.cont [9/16] %v1742, 128
        %1799 = vxpose.xlu0.b32.cont [10/16] %v1743, 128
        %1800 = vxpose.xlu0.b32.cont [11/16] %v1744, 128
        %1801 = vxpose.xlu0.b32.cont [12/16] %v1745, 128
        %1802 = vxpose.xlu0.b32.cont [13/16] %v1774, 128
        %1803 = vxpose.xlu0.b32.cont [14/16] %v1775, 128
        %1804 = vxpose.xlu0.b32.cont [15/16] %v1776, 128
        %1805 = vxpose.xlu0.b32.end [16/16] %v1777, 128
        %v1806 = vpop.trf.xlu0
        %v1807 = vpop.trf.xlu0
        %v1808 = vpop.trf.xlu0
        %v1809 = vpop.trf.xlu0
        %v1810 = vpop.trf.xlu0
        %v1811 = vpop.trf.xlu0
        %v1812 = vpop.trf.xlu0
        %v1813 = vpop.trf.xlu0
        %v1814 = vpop.trf.xlu0
        %v1815 = vpop.trf.xlu0
        %v1816 = vpop.trf.xlu0
        %v1817 = vpop.trf.xlu0
        %v1818 = vpop.trf.xlu0
        %v1819 = vpop.trf.xlu0
        %v1820 = vpop.trf.xlu0
        %v1821 = vpop.trf.xlu0
        %v1822 = vpack.c.bf16 %v1806, %v1806
        %v1823 = vld [vmem:[%s481] sm:$0xf]
        %v1824 = vld [vmem:[%s481 + $0x4] sm:$0xf]
        %v1825 = vld [vmem:[%s481 + $0x8] sm:$0xf]
        %v1826 = vld [vmem:[%s481 + $0xc] sm:$0xf]
        %v1827 = vld [vmem:[%s481 + $0x10] sm:$0xf]
        %v1828 = vld [vmem:[%s481 + $0x14] sm:$0xf]
        %v1829 = vld [vmem:[%s481 + $0x18] sm:$0xf]
        %v1830 = vld [vmem:[%s481 + $0x1c] sm:$0xf]
        %v1831 = vld [vmem:[%s481 + $0x20] sm:$0xf]
        %v1832 = vld [vmem:[%s481 + $0x24] sm:$0xf]
        %v1833 = vld [vmem:[%s481 + $0x28] sm:$0xf]
        %v1834 = vld [vmem:[%s481 + $0x2c] sm:$0xf]
        %v1835 = vld [vmem:[%s481 + $0x30] sm:$0xf]
        %v1836 = vld [vmem:[%s481 + $0x34] sm:$0xf]
        %v1837 = vld [vmem:[%s481 + $0x38] sm:$0xf]
        %v1838 = vld [vmem:[%s481 + $0x3c] sm:$0xf]
        %v1855 = vunpack.c.l.b16 %v1823
        %v1856 = vunpack.c.l.b16 %v1824
        %v1857 = vunpack.c.l.b16 %v1825
        %v1858 = vunpack.c.l.b16 %v1826
        %v1859 = vunpack.c.l.b16 %v1827
        %v1860 = vunpack.c.l.b16 %v1828
        %v1861 = vunpack.c.l.b16 %v1829
        %v1862 = vunpack.c.l.b16 %v1830
        %v1863 = vunpack.c.l.b16 %v1831
        %v1864 = vunpack.c.l.b16 %v1832
        %v1865 = vunpack.c.l.b16 %v1833
        %v1866 = vunpack.c.l.b16 %v1834
        %v1867 = vunpack.c.l.b16 %v1835
        %v1868 = vunpack.c.l.b16 %v1836
        %v1869 = vunpack.c.l.b16 %v1837
        %v1870 = vunpack.c.l.b16 %v1838
        %v1871 = vpack.c.b16 %v1856, %v1855
        %v1872 = vpack.c.b16 %v1858, %v1857
        %v1873 = vpack.c.b16 %v1860, %v1859
        %v1874 = vpack.c.b16 %v1862, %v1861
        %v1875 = vpack.c.b16 %v1864, %v1863
        %v1876 = vpack.c.b16 %v1866, %v1865
        %v1877 = vpack.c.b16 %v1868, %v1867
        %v1878 = vpack.c.b16 %v1870, %v1869
        %1887 = vmatprep.subr.bf16.mxu0 0
        %1888 = vmatpush1.bf16.msra.mxu0 %v1871
        %1889 = vmatprep.subr.bf16.mxu0 0
        %1890 = vmatpush1.bf16.msra.mxu0 %v1872
        %1891 = vmatprep.subr.bf16.mxu0 0
        %1892 = vmatpush1.bf16.msra.mxu0 %v1873
        %1893 = vmatprep.subr.bf16.mxu0 0
        %1894 = vmatpush1.bf16.msra.mxu0 %v1874
        %1895 = vmatprep.subr.bf16.mxu0 0
        %1896 = vmatpush1.bf16.msra.mxu0 %v1875
        %1897 = vmatprep.subr.bf16.mxu0 0
        %1898 = vmatpush1.bf16.msra.mxu0 %v1876
        %1899 = vmatprep.subr.bf16.mxu0 0
        %1900 = vmatpush1.bf16.msra.mxu0 %v1877
        %1901 = vmatprep.subr.bf16.mxu0 0
        %1902 = vmatpush1.bf16.msra.mxu0 %v1878
        %1903 = vmatprep.subr.bf16.mxu0 0
        %1904 = vmatpush1.bf16.msra.mxu0 0
        %1905 = vmatprep.subr.bf16.mxu0 0
        %1906 = vmatpush1.bf16.msra.mxu0 0
        %1907 = vmatprep.subr.bf16.mxu0 0
        %1908 = vmatpush1.bf16.msra.mxu0 0
        %1909 = vmatprep.subr.bf16.mxu0 0
        %1910 = vmatpush1.bf16.msra.mxu0 0
        %1911 = vmatprep.subr.bf16.mxu0 0
        %1912 = vmatpush1.bf16.msra.mxu0 0
        %1913 = vmatprep.subr.bf16.mxu0 0
        %1914 = vmatpush1.bf16.msra.mxu0 0
        %1915 = vmatprep.subr.bf16.mxu0 0
        %1916 = vmatpush1.bf16.msra.mxu0 0
        %1917 = vmatprep.subr.bf16.mxu0 0
        %1918 = vmatpush1.bf16.msra.mxu0 0
        %1919 = vmatprep.mubr.bf16.mxu0 0
        %1920 = vmatmul.mubr.bf16.gmra.mrb[0].mxu0 %v1822
        %v1921 = vpop.f32.mrb[0].mxu0
        %v1922 = vadd.f32 0.0, %v1921
        %v1923 = vpop.f32.mrb[0].mxu0
        %v1924 = vpop.f32.mrb[0].mxu0
        %v1925 = vpop.f32.mrb[0].mxu0
        %1926 = vdwg.mxu0
        %v1927 = vadd.f32 %v596, %v1922
        %v1928 = vlaneseq
        %v1929 = vshrl.u32 %v1928, 7
        %v1930 = vsub.s32 2, %v1929
        %v1931 = vrot.slane %v597, %v1930
        %v1932 = vadd.f32 %v1927, %v1931
        %1933 = vadd.xlane.f32.xlu0 %v1932
        %v1934 = vpop.xlane.xlu0 %1933
        %v1935 = vmul.f32 %v1934, %v603
        %v1936 = vsub.f32 %v1932, %v1935
        %v1937 = vmul.f32 %v1936, %v1936
        %1938 = vadd.xlane.f32.xlu0 %v1937
        %v1939 = vpop.xlane.xlu0 %1938
        %v1940 = vmul.f32 %v1939, %v603
        %v1941 = vadd.f32 %v1940, 1e-05
        %v1942 = vrsqrt.pop %v1941
        %v1943 = vmul.f32 %v1936, %v1942
        %v1944 = vlaneseq
        %v1945 = vshrl.u32 %v1944, 7
        %v1946 = vsub.s32 3, %v1945
        %v1947 = vrot.slane %v597, %v1946
        %v1948 = vmul.f32 %v1943, %v1947
        %v1949 = vlaneseq
        %v1950 = vshrl.u32 %v1949, 7
        %v1951 = vsub.s32 4, %v1950
        %v1952 = vrot.slane %v597, %v1951
        %v1953 = vadd.f32 %v1948, %v1952
        %v1954 = vpack.c.bf16 %v1953, %v1953
        %v1955 = vld [vmem:[%s490] sm:$0xff]
        %v1956 = vld [vmem:[%s490 + $0x8] sm:$0xff]
        %v1957 = vld [vmem:[%s490 + $0x10] sm:$0xff]
        %v1958 = vld [vmem:[%s490 + $0x18] sm:$0xff]
        %v1959 = vld [vmem:[%s490 + $0x20] sm:$0xff]
        %v1960 = vld [vmem:[%s490 + $0x28] sm:$0xff]
        %v1961 = vld [vmem:[%s490 + $0x30] sm:$0xff]
        %v1962 = vld [vmem:[%s490 + $0x38] sm:$0xff]
        %v1963 = vld [vmem:[%s490 + $0x40] sm:$0xff]
        %v1964 = vld [vmem:[%s490 + $0x48] sm:$0xff]
        %v1965 = vld [vmem:[%s490 + $0x50] sm:$0xff]
        %v1966 = vld [vmem:[%s490 + $0x58] sm:$0xff]
        %v1967 = vld [vmem:[%s490 + $0x60] sm:$0xff]
        %v1968 = vld [vmem:[%s490 + $0x68] sm:$0xff]
        %v1969 = vld [vmem:[%s490 + $0x70] sm:$0xff]
        %v1970 = vld [vmem:[%s490 + $0x78] sm:$0xff]
        %v1972 = vlaneseq
        %v1973 = vshrl.u32 %v1972, 7
        %v1974 = vsub.s32 0, %v1973
        %v1975 = vrot.slane %v599, %v1974
        %v1976 = vlaneseq
        %v1977 = vshrl.u32 %v1976, 7
        %v1978 = vsub.s32 1, %v1977
        %v1979 = vrot.slane %v599, %v1978
        %v1998 = vunpack.c.l.b16 %v1955
        %v1999 = vunpack.c.h.b16 %v1955
        %v2000 = vunpack.c.l.b16 %v1956
        %v2001 = vunpack.c.h.b16 %v1956
        %v2002 = vunpack.c.l.b16 %v1957
        %v2003 = vunpack.c.h.b16 %v1957
        %v2004 = vunpack.c.l.b16 %v1958
        %v2005 = vunpack.c.h.b16 %v1958
        %v2006 = vunpack.c.l.b16 %v1959
        %v2007 = vunpack.c.h.b16 %v1959
        %v2008 = vunpack.c.l.b16 %v1960
        %v2009 = vunpack.c.h.b16 %v1960
        %v2010 = vunpack.c.l.b16 %v1961
        %v2011 = vunpack.c.h.b16 %v1961
        %v2012 = vunpack.c.l.b16 %v1962
        %v2013 = vunpack.c.h.b16 %v1962
        %v2014 = vunpack.c.l.b16 %v1963
        %v2015 = vunpack.c.h.b16 %v1963
        %v2016 = vunpack.c.l.b16 %v1964
        %v2017 = vunpack.c.h.b16 %v1964
        %v2018 = vunpack.c.l.b16 %v1965
        %v2019 = vunpack.c.h.b16 %v1965
        %v2020 = vunpack.c.l.b16 %v1966
        %v2021 = vunpack.c.h.b16 %v1966
        %v2022 = vunpack.c.l.b16 %v1967
        %v2023 = vunpack.c.h.b16 %v1967
        %v2024 = vunpack.c.l.b16 %v1968
        %v2025 = vunpack.c.h.b16 %v1968
        %v2026 = vunpack.c.l.b16 %v1969
        %v2027 = vunpack.c.h.b16 %v1969
        %v2028 = vunpack.c.l.b16 %v1970
        %v2029 = vunpack.c.h.b16 %v1970
        %v2030 = vpack.c.b16 %v2000, %v1998
        %v2031 = vpack.c.b16 %v2001, %v1999
        %v2032 = vpack.c.b16 %v2004, %v2002
        %v2033 = vpack.c.b16 %v2005, %v2003
        %v2034 = vpack.c.b16 %v2008, %v2006
        %v2035 = vpack.c.b16 %v2009, %v2007
        %v2036 = vpack.c.b16 %v2012, %v2010
        %v2037 = vpack.c.b16 %v2013, %v2011
        %v2038 = vpack.c.b16 %v2016, %v2014
        %v2039 = vpack.c.b16 %v2017, %v2015
        %v2040 = vpack.c.b16 %v2020, %v2018
        %v2041 = vpack.c.b16 %v2021, %v2019
        %v2042 = vpack.c.b16 %v2024, %v2022
        %v2043 = vpack.c.b16 %v2025, %v2023
        %v2044 = vpack.c.b16 %v2028, %v2026
        %v2045 = vpack.c.b16 %v2029, %v2027
        %2062 = vmatprep.subr.bf16.mxu0 %v2031
        %2063 = vmatpush1.bf16.msra.mxu0 %v2030
        %2064 = vmatprep.subr.bf16.mxu0 %v2033
        %2065 = vmatpush1.bf16.msra.mxu0 %v2032
        %2066 = vmatprep.subr.bf16.mxu0 %v2035
        %2067 = vmatpush1.bf16.msra.mxu0 %v2034
        %2068 = vmatprep.subr.bf16.mxu0 %v2037
        %2069 = vmatpush1.bf16.msra.mxu0 %v2036
        %2070 = vmatprep.subr.bf16.mxu0 %v2039
        %2071 = vmatpush1.bf16.msra.mxu0 %v2038
        %2072 = vmatprep.subr.bf16.mxu0 %v2041
        %2073 = vmatpush1.bf16.msra.mxu0 %v2040
        %2074 = vmatprep.subr.bf16.mxu0 %v2043
        %2075 = vmatpush1.bf16.msra.mxu0 %v2042
        %2076 = vmatprep.subr.bf16.mxu0 %v2045
        %2077 = vmatpush1.bf16.msra.mxu0 %v2044
        %2078 = vmatprep.subr.bf16.mxu0 0
        %2079 = vmatpush1.bf16.msra.mxu0 0
        %2080 = vmatprep.subr.bf16.mxu0 0
        %2081 = vmatpush1.bf16.msra.mxu0 0
        %2082 = vmatprep.subr.bf16.mxu0 0
        %2083 = vmatpush1.bf16.msra.mxu0 0
        %2084 = vmatprep.subr.bf16.mxu0 0
        %2085 = vmatpush1.bf16.msra.mxu0 0
        %2086 = vmatprep.subr.bf16.mxu0 0
        %2087 = vmatpush1.bf16.msra.mxu0 0
        %2088 = vmatprep.subr.bf16.mxu0 0
        %2089 = vmatpush1.bf16.msra.mxu0 0
        %2090 = vmatprep.subr.bf16.mxu0 0
        %2091 = vmatpush1.bf16.msra.mxu0 0
        %2092 = vmatprep.subr.bf16.mxu0 0
        %2093 = vmatpush1.bf16.msra.mxu0 0
        %2094 = vmatprep.mubr.bf16.mxu0 0
        %2095 = vmatmul.mubr.bf16.gmra.mrb[0].mxu0 %v1954
        %v2096 = vpop.f32.mrb[0].mxu0
        %v2097 = vadd.f32 %v1975, %v2096
        %v2098 = vpop.f32.mrb[0].mxu0
        %v2099 = vadd.f32 %v1979, %v2098
        %v2100 = vpop.f32.mrb[0].mxu0
        %v2101 = vpop.f32.mrb[0].mxu0
        %2102 = vdwg.mxu0
        %v2103 = vmul.f32 %v2097, %v2097
        %v2104 = vmul.f32 %v2099, %v2099
        %v2105 = vmul.f32 %v2097, %v2103
        %v2106 = vmul.f32 %v2099, %v2104
        %v2107 = vmul.f32 %v2105, 0.044715
        %v2108 = vmul.f32 %v2106, 0.044715
        %v2109 = vadd.f32 %v2097, %v2107
        %v2110 = vadd.f32 %v2099, %v2108
        %v2111 = vmul.f32 %v2109, 0.7978846
        %v2112 = vmul.f32 %v2110, 0.7978846
        %v2113 = vtanh.pop %v2111
        %v2114 = vtanh.pop %v2112
        %v2115 = vadd.f32 %v2113, 1.0
        %v2116 = vadd.f32 %v2114, 1.0
        %v2117 = vmul.f32 %v2115, 0.5
        %v2118 = vmul.f32 %v2116, 0.5
        %v2119 = vmul.f32 %v2097, %v2117
        %v2120 = vmul.f32 %v2099, %v2118
        %v2121 = vpack.c.bf16 %v2119, %v2119
        %v2122 = vpack.c.bf16 %v2120, %v2120
        %v2123 = vld [vmem:[%s499] sm:$0xf]
        %v2124 = vld [vmem:[%s499 + $0x4] sm:$0xf]
        %v2125 = vld [vmem:[%s499 + $0x8] sm:$0xf]
        %v2126 = vld [vmem:[%s499 + $0xc] sm:$0xf]
        %v2127 = vld [vmem:[%s499 + $0x10] sm:$0xf]
        %v2128 = vld [vmem:[%s499 + $0x14] sm:$0xf]
        %v2129 = vld [vmem:[%s499 + $0x18] sm:$0xf]
        %v2130 = vld [vmem:[%s499 + $0x1c] sm:$0xf]
        %v2131 = vld [vmem:[%s499 + $0x20] sm:$0xf]
        %v2132 = vld [vmem:[%s499 + $0x24] sm:$0xf]
        %v2133 = vld [vmem:[%s499 + $0x28] sm:$0xf]
        %v2134 = vld [vmem:[%s499 + $0x2c] sm:$0xf]
        %v2135 = vld [vmem:[%s499 + $0x30] sm:$0xf]
        %v2136 = vld [vmem:[%s499 + $0x34] sm:$0xf]
        %v2137 = vld [vmem:[%s499 + $0x38] sm:$0xf]
        %v2138 = vld [vmem:[%s499 + $0x3c] sm:$0xf]
        %v2139 = vld [vmem:[%s499 + $0x40] sm:$0xf]
        %v2140 = vld [vmem:[%s499 + $0x44] sm:$0xf]
        %v2141 = vld [vmem:[%s499 + $0x48] sm:$0xf]
        %v2142 = vld [vmem:[%s499 + $0x4c] sm:$0xf]
        %v2143 = vld [vmem:[%s499 + $0x50] sm:$0xf]
        %v2144 = vld [vmem:[%s499 + $0x54] sm:$0xf]
        %v2145 = vld [vmem:[%s499 + $0x58] sm:$0xf]
        %v2146 = vld [vmem:[%s499 + $0x5c] sm:$0xf]
        %v2147 = vld [vmem:[%s499 + $0x60] sm:$0xf]
        %v2148 = vld [vmem:[%s499 + $0x64] sm:$0xf]
        %v2149 = vld [vmem:[%s499 + $0x68] sm:$0xf]
        %v2150 = vld [vmem:[%s499 + $0x6c] sm:$0xf]
        %v2151 = vld [vmem:[%s499 + $0x70] sm:$0xf]
        %v2152 = vld [vmem:[%s499 + $0x74] sm:$0xf]
        %v2153 = vld [vmem:[%s499 + $0x78] sm:$0xf]
        %v2154 = vld [vmem:[%s499 + $0x7c] sm:$0xf]
        %v2187 = vunpack.c.l.b16 %v2123
        %v2188 = vunpack.c.l.b16 %v2124
        %v2189 = vunpack.c.l.b16 %v2125
        %v2190 = vunpack.c.l.b16 %v2126
        %v2191 = vunpack.c.l.b16 %v2127
        %v2192 = vunpack.c.l.b16 %v2128
        %v2193 = vunpack.c.l.b16 %v2129
        %v2194 = vunpack.c.l.b16 %v2130
        %v2195 = vunpack.c.l.b16 %v2131
        %v2196 = vunpack.c.l.b16 %v2132
        %v2197 = vunpack.c.l.b16 %v2133
        %v2198 = vunpack.c.l.b16 %v2134
        %v2199 = vunpack.c.l.b16 %v2135
        %v2200 = vunpack.c.l.b16 %v2136
        %v2201 = vunpack.c.l.b16 %v2137
        %v2202 = vunpack.c.l.b16 %v2138
        %v2203 = vunpack.c.l.b16 %v2139
        %v2204 = vunpack.c.l.b16 %v2140
        %v2205 = vunpack.c.l.b16 %v2141
        %v2206 = vunpack.c.l.b16 %v2142
        %v2207 = vunpack.c.l.b16 %v2143
        %v2208 = vunpack.c.l.b16 %v2144
        %v2209 = vunpack.c.l.b16 %v2145
        %v2210 = vunpack.c.l.b16 %v2146
        %v2211 = vunpack.c.l.b16 %v2147
        %v2212 = vunpack.c.l.b16 %v2148
        %v2213 = vunpack.c.l.b16 %v2149
        %v2214 = vunpack.c.l.b16 %v2150
        %v2215 = vunpack.c.l.b16 %v2151
        %v2216 = vunpack.c.l.b16 %v2152
        %v2217 = vunpack.c.l.b16 %v2153
        %v2218 = vunpack.c.l.b16 %v2154
        %v2219 = vpack.c.b16 %v2188, %v2187
        %v2220 = vpack.c.b16 %v2190, %v2189
        %v2221 = vpack.c.b16 %v2192, %v2191
        %v2222 = vpack.c.b16 %v2194, %v2193
        %v2223 = vpack.c.b16 %v2196, %v2195
        %v2224 = vpack.c.b16 %v2198, %v2197
        %v2225 = vpack.c.b16 %v2200, %v2199
        %v2226 = vpack.c.b16 %v2202, %v2201
        %v2227 = vpack.c.b16 %v2204, %v2203
        %v2228 = vpack.c.b16 %v2206, %v2205
        %v2229 = vpack.c.b16 %v2208, %v2207
        %v2230 = vpack.c.b16 %v2210, %v2209
        %v2231 = vpack.c.b16 %v2212, %v2211
        %v2232 = vpack.c.b16 %v2214, %v2213
        %v2233 = vpack.c.b16 %v2216, %v2215
        %v2234 = vpack.c.b16 %v2218, %v2217
        %2251 = vmatprep.subr.bf16.mxu0 0
        %2252 = vmatpush1.bf16.msra.mxu0 %v2219
        %2253 = vmatprep.subr.bf16.mxu0 0
        %2254 = vmatpush1.bf16.msra.mxu0 %v2220
        %2255 = vmatprep.subr.bf16.mxu0 0
        %2256 = vmatpush1.bf16.msra.mxu0 %v2221
        %2257 = vmatprep.subr.bf16.mxu0 0
        %2258 = vmatpush1.bf16.msra.mxu0 %v2222
        %2259 = vmatprep.subr.bf16.mxu0 0
        %2260 = vmatpush1.bf16.msra.mxu0 %v2223
        %2261 = vmatprep.subr.bf16.mxu0 0
        %2262 = vmatpush1.bf16.msra.mxu0 %v2224
        %2263 = vmatprep.subr.bf16.mxu0 0
        %2264 = vmatpush1.bf16.msra.mxu0 %v2225
        %2265 = vmatprep.subr.bf16.mxu0 0
        %2266 = vmatpush1.bf16.msra.mxu0 %v2226
        %2267 = vmatprep.subr.bf16.mxu0 0
        %2268 = vmatpush1.bf16.msra.mxu0 %v2227
        %2269 = vmatprep.subr.bf16.mxu0 0
        %2270 = vmatpush1.bf16.msra.mxu0 %v2228
        %2271 = vmatprep.subr.bf16.mxu0 0
        %2272 = vmatpush1.bf16.msra.mxu0 %v2229
        %2273 = vmatprep.subr.bf16.mxu0 0
        %2274 = vmatpush1.bf16.msra.mxu0 %v2230
        %2275 = vmatprep.subr.bf16.mxu0 0
        %2276 = vmatpush1.bf16.msra.mxu0 %v2231
        %2277 = vmatprep.subr.bf16.mxu0 0
        %2278 = vmatpush1.bf16.msra.mxu0 %v2232
        %2279 = vmatprep.subr.bf16.mxu0 0
        %2280 = vmatpush1.bf16.msra.mxu0 %v2233
        %2281 = vmatprep.subr.bf16.mxu0 0
        %2282 = vmatpush1.bf16.msra.mxu0 %v2234
        %2283 = vmatprep.mubr.bf16.mxu0 %v2122
        %2284 = vmatmul.mubr.bf16.gmra.mrb[0].mxu0 %v2121
        %v2285 = vpop.f32.mrb[0].mxu0
        %v2286 = vadd.f32 0.0, %v2285
        %v2287 = vpop.f32.mrb[0].mxu0
        %v2288 = vpop.f32.mrb[0].mxu0
        %v2289 = vpop.f32.mrb[0].mxu0
        %2290 = vdwg.mxu0
        %v2291 = vadd.f32 %v1932, %v2286
        %v2292 = vlaneseq
        %v2293 = vshrl.u32 %v2292, 7
        %v2294 = vsub.s32 5, %v2293
        %v2295 = vrot.slane %v597, %v2294
        %v2296 = vadd.f32 %v2291, %v2295
        %p2297 = scmp.lt.s32.totalorder %s38, 1
        // Predicated region
        $region81: #{tpu_custom_call.1} parent=59 // pred_check
          %p2298 = pneg %p2297
        $region82: #{tpu_custom_call.1} parent=59 // pred_check_branch
          %2300 = sbr.rel (%p2298) target = $region84
        $region83: #{tpu_custom_call.1} parent=59 // pred_region
          %2301 = vst [vmem:[%s569] sm:$0xff] %v2296
        $region84: #{tpu_custom_call.1} parent=59 // pred_fallthru
          _
        %p2302 = scmp.eq.s32.totalorder %s38, 1
        // Predicated region
        $region85: #{tpu_custom_call.1} parent=59 // pred_check
          %p2303 = pneg %p2302
        $region86: #{tpu_custom_call.1} parent=59 // pred_check_branch
          %2305 = sbr.rel (%p2303) target = $region88
        $region87: #{tpu_custom_call.1} parent=59 // pred_region
          %v2306 = vld [vmem:[%s2] sm:$0x1]
          %v2307 = vld [vmem:[%s2 + $0x1] sm:$0x1]
          %2308 = vadd.xlane.f32.xlu0 %v2296
          %v2309 = vpop.xlane.xlu0 %2308
          %v2310 = vmul.f32 %v2309, %v603
          %v2311 = vsub.f32 %v2296, %v2310
          %v2312 = vmul.f32 %v2311, %v2311
          %2313 = vadd.xlane.f32.xlu0 %v2312
          %v2314 = vpop.xlane.xlu0 %2313
          %v2315 = vmul.f32 %v2314, %v603
          %v2316 = vadd.f32 %v2315, 1e-05
          %v2317 = vrsqrt.pop %v2316
          %v2318 = vmul.f32 %v2311, %v2317
          %v2319 = vlaneseq
          %v2320 = vshrl.u32 %v2319, 7
          %v2321 = vsub.s32 0, %v2320
          %v2322 = vrot.slane %v2306, %v2321
          %v2323 = vmul.f32 %v2318, %v2322
          %v2324 = vlaneseq
          %v2325 = vshrl.u32 %v2324, 7
          %v2326 = vsub.s32 0, %v2325
          %v2327 = vrot.slane %v2307, %v2326
          %v2328 = vadd.f32 %v2323, %v2327
          %2329 = vst [vmem:[%s569] sm:$0xff] %v2328
        $region88: #{tpu_custom_call.1} parent=59 // pred_fallthru
          _
        %s2330 = sand.u32 %s308, 1
        %s2331 = scalar_lea.sflag [#allocation4], %s2330
        %s2332 = sand.u32 %s308, 1
        %s2333 = smul.addr %s2332, 8
        %s2334 = scalar_lea.vmem [#allocation10], %s2333
        // Predicated region
        $region89: #{tpu_custom_call.1} parent=59 // pred_check
          %p2335 = pneg %p318
        $region90: #{tpu_custom_call.1} parent=59 // pred_check_branch
          %2337 = sbr.rel (%p2335) target = $region92
        $region91: #{tpu_custom_call.1} parent=59 // pred_region
          %s2339 = ssub.s32 128, 128
          %2340 = vsyncadd %s2331, %s2339
          %s2341 = smul.addr %s37, 128
          %s2342 = scalar_lea.hbm %s10, %s2341
          %s2344 = sshll.u32 %s2334, 4
          %s2345 = int_to_ptr.vmem [resolvable:$true] %s2344
          %2347 = dma.vmem_to_hbm [thread:$0]  %s2345, 128, %s2342, %s2331
        $region92: #{tpu_custom_call.1} parent=59 // pred_fallthru
          _
      $region60: #{tpu_custom_call.1} parent=5 // pred_fallthru
        _
      %p2348 = scmp.le.s32.totalorder 2, %s28
      // Predicated region
      $region93: #{tpu_custom_call.1} parent=5 // pred_check
        %p2349 = pneg %p2348
      $region94: #{tpu_custom_call.1} parent=5 // pred_check_branch
        %2351 = sbr.rel (%p2349) target = $region96
      $region95: #{tpu_custom_call.1} parent=5 // pred_region
        %s2352 = ssub.s32 %s28, 2
        // Predicated region
        $region97: #{tpu_custom_call.1} parent=95 // pred_check
          %p2353 = pneg %p324
        $region98: #{tpu_custom_call.1} parent=95 // pred_check_branch
          %2355 = sbr.rel (%p2353) target = $region100
        $region99: #{tpu_custom_call.1} parent=95 // pred_region
          %s2356 = sand.u32 %s309, 1
          %s2357 = scalar_lea.sflag [#allocation4], %s2356
          %s2358 = sand.u32 %s309, 1
          %s2359 = smul.addr %s2358, 8
          %s2360 = scalar_lea.vmem [#allocation10], %s2359
          %2361 = dma.done %s2357, 128
        $region100: #{tpu_custom_call.1} parent=95 // pred_fallthru
          _
      $region96: #{tpu_custom_call.1} parent=5 // pred_fallthru
        _
    $region6: #{tpu_custom_call.1} parent=1 // loop_footer
      %s32 = sadd.s32 1, %s28
    $region7: #{tpu_custom_call.1} parent=1 // loop_footer_branch
      %27 = sbr.rel target = $region3
    $region8: #{tpu_custom_call.1} parent=1 // loop_exit
      _
    %2362 = vsyncpa [#allocation3], 1
    %s2363 = scalar_lea.sflag [#allocation3], 1
    %2364 = vsyncpa %s2363, 1
    %2365 = vsyncpa [#allocation6], 1
    %s2366 = scalar_lea.sflag [#allocation6], 1
    %2367 = vsyncpa %s2366, 1
    %2368 = vsyncpa [#allocation9], 1
    %s2369 = scalar_lea.sflag [#allocation9], 1
    %2370 = vsyncpa %s2369, 1
    %2371 = vsyncpa [#allocation4], 1
    %s2372 = scalar_lea.sflag [#allocation4], 1
    %2373 = vsyncpa %s2372, 1

// kernel: tpu_custom_call.1
$region0: #{tpu_custom_call.1}
  #allocation0 [shape = 'u32[]', space=smem, size = 0x4, offset = 0x4, fixed_abs, tag = 'smem constant byte address 0x4 - core index']
  #allocation1 [shape = 'u32[144,128]{1,0:T(1,128)}', space=vmem, size = 0x12000, scoped, tag = 'internal scratch']
  %s0 = inlined_call_operand.vmem [shape: f32[2,8,128], index: 0, kind: input, shape index: {}]
  %s1 = inlined_call_operand.vmem [shape: f32[2,1,8], index: 1, kind: input, shape index: {}]
  %s2 = inlined_call_operand.vmem [shape: f32[2,128], index: 2, kind: input, shape index: {}]
  %s3 = inlined_call_operand.vmem [shape: f32[2,6,128], index: 3, kind: input, shape index: {}]
  %s4 = inlined_call_operand.vmem [shape: f32[2,1,384], index: 4, kind: input, shape index: {}]
  %s5 = inlined_call_operand.vmem [shape: f32[2,1,256], index: 5, kind: input, shape index: {}]
  %s6 = inlined_call_operand.hbm [shape: bf16[2,128,384], index: 6, kind: input, shape index: {}]
  %s7 = inlined_call_operand.hbm [shape: bf16[2,128,128], index: 7, kind: input, shape index: {}]
  %s8 = inlined_call_operand.hbm [shape: bf16[2,128,256], index: 8, kind: input, shape index: {}]
  %s9 = inlined_call_operand.hbm [shape: bf16[2,256,128], index: 9, kind: input, shape index: {}]
  %s10 = inlined_call_operand.hbm [shape: f32[2,8,128], index: 10, kind: output, shape index: {}]
  %s11 = sld [smem:[#allocation0]]
  $region101: #{tpu_custom_call.1} parent=0
    _
  %s13 = ssub.s32 1, %s11
  %s14 = scalar_select 0, %s13, %s11
  $region1: #{tpu_custom_call.1} parent=0
    #allocation2 [shape = 'u8[196608]{0}', space=vmem, size = 0x30000, scoped, tag = 'input window, operand 6']
    #allocation3 [shape = 's32[2]{0}', space=sflag, size = 0x8, scoped, tag = 'scoped memory for tpu_custom_call.1']
    #allocation4 [shape = 's32[2]{0}', space=sflag, size = 0x8, scoped, tag = 'scoped memory for tpu_custom_call.1']
    #allocation5 [shape = 'u8[65536]{0}', space=vmem, size = 0x10000, scoped, tag = 'input window, operand 7']
    #allocation6 [shape = 's32[2]{0}', space=sflag, size = 0x8, scoped, tag = 'scoped memory for tpu_custom_call.1']
    #allocation7 [shape = 'u8[131072]{0}', space=vmem, size = 0x20000, scoped, tag = 'input window, operand 8']
    #allocation8 [shape = 'u8[131072]{0}', space=vmem, size = 0x20000, scoped, tag = 'input window, operand 9']
    #allocation9 [shape = 's32[2]{0}', space=sflag, size = 0x8, scoped, tag = 'scoped memory for tpu_custom_call.1']
    #allocation10 [shape = 'u8[8192]{0}', space=vmem, size = 0x2000, scoped, tag = 'output window, operand 0']
    %15 = vsyncpa [#allocation3], 0
    %s16 = scalar_lea.sflag [#allocation3], 1
    %17 = vsyncpa %s16, 0
    %18 = vsyncpa [#allocation6], 0
    %s19 = scalar_lea.sflag [#allocation6], 1
    %20 = vsyncpa %s19, 0
    %21 = vsyncpa [#allocation9], 0
    %s22 = scalar_lea.sflag [#allocation9], 1
    %23 = vsyncpa %s22, 0
    %24 = vsyncpa [#allocation4], 0
    %s25 = scalar_lea.sflag [#allocation4], 1
    %26 = vsyncpa %s25, 0
    loop: start=0, step=1, limit=6
    $region2: #{tpu_custom_call.1} parent=1 // loop_pre_header
      _
    $region3: #{tpu_custom_call.1} parent=1 // loop_header
      %s28 = sphi 0, %s32
      %p29 = scmp.ge.s32.totalorder %s28, 6
      %s35 = sphi 0, %s47
      %s36 = sphi 0, %s43
      %s37 = sphi 0, %s35
      %s38 = sphi 0, %s36
      %s39 = sphi 0, %s37
      %s40 = sphi 0, %s38
      %s50 = sphi 0, %s52
      %s53 = sphi 0, %s50
      %s54 = sphi 0, %s53
      %s70 = sphi 0, %s54
      %s76 = sphi 0, %s78
      %s79 = sphi 0, %s76
      %s80 = sphi 0, %s79
      %s96 = sphi 0, %s80
      %s100 = sphi 0, %s100
      %s102 = sphi 0, %s100
      %s103 = sphi 0, %s102
      %s117 = sphi 0, %s103
      %s123 = sphi 0, %s125
      %s126 = sphi 0, %s123
      %s127 = sphi 0, %s126
      %s143 = sphi 0, %s127
      %s149 = sphi 0, %s151
      %s152 = sphi 0, %s149
      %s153 = sphi 0, %s152
      %s169 = sphi 0, %s153
      %s175 = sphi 0, %s177
      %s178 = sphi 0, %s175
      %s179 = sphi 0, %s178
      %s195 = sphi 0, %s179
      %s201 = sphi 0, %s203
      %s204 = sphi 0, %s201
      %s205 = sphi 0, %s204
      %s221 = sphi 0, %s205
      %s227 = sphi 0, %s229
      %s230 = sphi 0, %s227
      %s231 = sphi 0, %s230
      %s247 = sphi 0, %s231
      %s253 = sphi 0, %s255
      %s256 = sphi 0, %s253
      %s257 = sphi 0, %s256
      %s273 = sphi 0, %s257
      %s279 = sphi 0, %s281
      %s282 = sphi 0, %s279
      %s283 = sphi 0, %s282
      %s299 = sphi 0, %s283
      %s305 = sphi 0, %s307
      %s308 = sphi 0, %s305
      %s309 = sphi 0, %s308
      %s325 = sphi 0, %s309
    $region4: #{tpu_custom_call.1} parent=1 // loop_header_branch
      %31 = sbr.rel (%p29) target = $region8
    $region5: #{tpu_custom_call.1} parent=1 // loop_body
      %s33 = ssub.s32 %s28, 1
      %s34 = ssub.s32 %s28, 2
      %s41 = sadd.s32 1, %s36
      %p42 = scmp.ge.s32.totalorder %s41, 2
      %s43 = scalar_select %p42, 0, %s41
      %s44 = sadd.s32 1, %s35
      %s45 = scalar_select %p42, %s44, %s35
      %p46 = scmp.ge.s32.totalorder %s45, 2
      %s47 = scalar_select %p46, 0, %s45
      %s48 = ssub.s32 %s35, %s47
      %p49 = scmp.eq.s32.totalorder %s48, 0
      %s51 = sadd.s32 %s50, 1
      %s52 = scalar_select %p49, %s50, %s51
      %p55 = pneg %p49
      %p56 = scmp.eq.s32.totalorder %s28, 3
      %p57 = por %p55, %p56
      %p58 = scmp.ne.s32.totalorder %s50, %s53
      %p59 = scmp.eq.s32.totalorder %s28, 0
      %p60 = por %p58, %p59
      %p61 = scmp.ne.s32.totalorder %s50, %s53
      %p62 = scmp.eq.s32.totalorder %s33, 3
      %p63 = por %p61, %p62
      %p64 = scmp.ne.s32.totalorder %s53, %s54
      %p65 = scmp.eq.s32.totalorder %s33, 0
      %p66 = por %p64, %p65
      %p67 = scmp.ne.s32.totalorder %s53, %s54
      %p68 = scmp.eq.s32.totalorder %s34, 3
      %p69 = por %p67, %p68
      %p71 = scmp.ne.s32.totalorder %s54, %s70
      %p72 = scmp.eq.s32.totalorder %s34, 0
      %p73 = por %p71, %p72
      %s74 = ssub.s32 %s35, %s47
      %p75 = scmp.eq.s32.totalorder %s74, 0
      %s77 = sadd.s32 %s76, 1
      %s78 = scalar_select %p75, %s76, %s77
      %p81 = pneg %p75
      %p82 = scmp.eq.s32.totalorder %s28, 3
      %p83 = por %p81, %p82
      %p84 = scmp.ne.s32.totalorder %s76, %s79
      %p85 = scmp.eq.s32.totalorder %s28, 0
      %p86 = por %p84, %p85
      %p87 = scmp.ne.s32.totalorder %s76, %s79
      %p88 = scmp.eq.s32.totalorder %s33, 3
      %p89 = por %p87, %p88
      %p90 = scmp.ne.s32.totalorder %s79, %s80
      %p91 = scmp.eq.s32.totalorder %s33, 0
      %p92 = por %p90, %p91
      %p93 = scmp.ne.s32.totalorder %s79, %s80
      %p94 = scmp.eq.s32.totalorder %s34, 3
      %p95 = por %p93, %p94
      %p97 = scmp.ne.s32.totalorder %s80, %s96
      %p98 = scmp.eq.s32.totalorder %s34, 0
      %p99 = por %p97, %p98
      %s101 = sadd.s32 %s100, 1
      %p104 = scmp.eq.s32.totalorder %s28, 3
      %p105 = scmp.ne.s32.totalorder %s100, %s102
      %p106 = scmp.eq.s32.totalorder %s28, 0
      %p107 = por %p105, %p106
      %p108 = scmp.ne.s32.totalorder %s100, %s102
      %p109 = scmp.eq.s32.totalorder %s33, 3
      %p110 = por %p108, %p109
      %p111 = scmp.ne.s32.totalorder %s102, %s103
      %p112 = scmp.eq.s32.totalorder %s33, 0
      %p113 = por %p111, %p112
      %p114 = scmp.ne.s32.totalorder %s102, %s103
      %p115 = scmp.eq.s32.totalorder %s34, 3
      %p116 = por %p114, %p115
      %p118 = scmp.ne.s32.totalorder %s103, %s117
      %p119 = scmp.eq.s32.totalorder %s34, 0
      %p120 = por %p118, %p119
      %s121 = ssub.s32 %s36, %s43
      %p122 = scmp.eq.s32.totalorder %s121, 0
      %s124 = sadd.s32 %s123, 1
      %s125 = scalar_select %p122, %s123, %s124
      %p128 = pneg %p122
      %p129 = scmp.eq.s32.totalorder %s28, 3
      %p130 = por %p128, %p129
      %p131 = scmp.ne.s32.totalorder %s123, %s126
      %p132 = scmp.eq.s32.totalorder %s28, 0
      %p133 = por %p131, %p132
      %p134 = scmp.ne.s32.totalorder %s123, %s126
      %p135 = scmp.eq.s32.totalorder %s33, 3
      %p136 = por %p134, %p135
      %p137 = scmp.ne.s32.totalorder %s126, %s127
      %p138 = scmp.eq.s32.totalorder %s33, 0
      %p139 = por %p137, %p138
      %p140 = scmp.ne.s32.totalorder %s126, %s127
      %p141 = scmp.eq.s32.totalorder %s34, 3
      %p142 = por %p140, %p141
      %p144 = scmp.ne.s32.totalorder %s127, %s143
      %p145 = scmp.eq.s32.totalorder %s34, 0
      %p146 = por %p144, %p145
      %s147 = ssub.s32 %s36, %s43
      %p148 = scmp.eq.s32.totalorder %s147, 0
      %s150 = sadd.s32 %s149, 1
      %s151 = scalar_select %p148, %s149, %s150
      %p154 = pneg %p148
      %p155 = scmp.eq.s32.totalorder %s28, 3
      %p156 = por %p154, %p155
      %p157 = scmp.ne.s32.totalorder %s149, %s152
      %p158 = scmp.eq.s32.totalorder %s28, 0
      %p159 = por %p157, %p158
      %p160 = scmp.ne.s32.totalorder %s149, %s152
      %p161 = scmp.eq.s32.totalorder %s33, 3
      %p162 = por %p160, %p161
      %p163 = scmp.ne.s32.totalorder %s152, %s153
      %p164 = scmp.eq.s32.totalorder %s33, 0
      %p165 = por %p163, %p164
      %p166 = scmp.ne.s32.totalorder %s152, %s153
      %p167 = scmp.eq.s32.totalorder %s34, 3
      %p168 = por %p166, %p167
      %p170 = scmp.ne.s32.totalorder %s153, %s169
      %p171 = scmp.eq.s32.totalorder %s34, 0
      %p172 = por %p170, %p171
      %s173 = ssub.s32 %s36, %s43
      %p174 = scmp.eq.s32.totalorder %s173, 0
      %s176 = sadd.s32 %s175, 1
      %s177 = scalar_select %p174, %s175, %s176
      %p180 = pneg %p174
      %p181 = scmp.eq.s32.totalorder %s28, 3
      %p182 = por %p180, %p181
      %p183 = scmp.ne.s32.totalorder %s175, %s178
      %p184 = scmp.eq.s32.totalorder %s28, 0
      %p185 = por %p183, %p184
      %p186 = scmp.ne.s32.totalorder %s175, %s178
      %p187 = scmp.eq.s32.totalorder %s33, 3
      %p188 = por %p186, %p187
      %p189 = scmp.ne.s32.totalorder %s178, %s179
      %p190 = scmp.eq.s32.totalorder %s33, 0
      %p191 = por %p189, %p190
      %p192 = scmp.ne.s32.totalorder %s178, %s179
      %p193 = scmp.eq.s32.totalorder %s34, 3
      %p194 = por %p192, %p193
      %p196 = scmp.ne.s32.totalorder %s179, %s195
      %p197 = scmp.eq.s32.totalorder %s34, 0
      %p198 = por %p196, %p197
      %s199 = ssub.s32 %s36, %s43
      %p200 = scmp.eq.s32.totalorder %s199, 0
      %s202 = sadd.s32 %s201, 1
      %s203 = scalar_select %p200, %s201, %s202
      %p206 = pneg %p200
      %p207 = scmp.eq.s32.totalorder %s28, 3
      %p208 = por %p206, %p207
      %p209 = scmp.ne.s32.totalorder %s201, %s204
      %p210 = scmp.eq.s32.totalorder %s28, 0
      %p211 = por %p209, %p210
      %p212 = scmp.ne.s32.totalorder %s201, %s204
      %p213 = scmp.eq.s32.totalorder %s33, 3
      %p214 = por %p212, %p213
      %p215 = scmp.ne.s32.totalorder %s204, %s205
      %p216 = scmp.eq.s32.totalorder %s33, 0
      %p217 = por %p215, %p216
      %p218 = scmp.ne.s32.totalorder %s204, %s205
      %p219 = scmp.eq.s32.totalorder %s34, 3
      %p220 = por %p218, %p219
      %p222 = scmp.ne.s32.totalorder %s205, %s221
      %p223 = scmp.eq.s32.totalorder %s34, 0
      %p224 = por %p222, %p223
      %s225 = ssub.s32 %s36, %s43
      %p226 = scmp.eq.s32.totalorder %s225, 0
      %s228 = sadd.s32 %s227, 1
      %s229 = scalar_select %p226, %s227, %s228
      %p232 = pneg %p226
      %p233 = scmp.eq.s32.totalorder %s28, 3
      %p234 = por %p232, %p233
      %p235 = scmp.ne.s32.totalorder %s227, %s230
      %p236 = scmp.eq.s32.totalorder %s28, 0
      %p237 = por %p235, %p236
      %p238 = scmp.ne.s32.totalorder %s227, %s230
      %p239 = scmp.eq.s32.totalorder %s33, 3
      %p240 = por %p238, %p239
      %p241 = scmp.ne.s32.totalorder %s230, %s231
      %p242 = scmp.eq.s32.totalorder %s33, 0
      %p243 = por %p241, %p242
      %p244 = scmp.ne.s32.totalorder %s230, %s231
      %p245 = scmp.eq.s32.totalorder %s34, 3
      %p246 = por %p244, %p245
      %p248 = scmp.ne.s32.totalorder %s231, %s247
      %p249 = scmp.eq.s32.totalorder %s34, 0
      %p250 = por %p248, %p249
      %s251 = ssub.s32 %s36, %s43
      %p252 = scmp.eq.s32.totalorder %s251, 0
      %s254 = sadd.s32 %s253, 1
      %s255 = scalar_select %p252, %s253, %s254
      %p258 = pneg %p252
      %p259 = scmp.eq.s32.totalorder %s28, 3
      %p260 = por %p258, %p259
      %p261 = scmp.ne.s32.totalorder %s253, %s256
      %p262 = scmp.eq.s32.totalorder %s28, 0
      %p263 = por %p261, %p262
      %p264 = scmp.ne.s32.totalorder %s253, %s256
      %p265 = scmp.eq.s32.totalorder %s33, 3
      %p266 = por %p264, %p265
      %p267 = scmp.ne.s32.totalorder %s256, %s257
      %p268 = scmp.eq.s32.totalorder %s33, 0
      %p269 = por %p267, %p268
      %p270 = scmp.ne.s32.totalorder %s256, %s257
      %p271 = scmp.eq.s32.totalorder %s34, 3
      %p272 = por %p270, %p271
      %p274 = scmp.ne.s32.totalorder %s257, %s273
      %p275 = scmp.eq.s32.totalorder %s34, 0
      %p276 = por %p274, %p275
      %s277 = ssub.s32 %s36, %s43
      %p278 = scmp.eq.s32.totalorder %s277, 0
      %s280 = sadd.s32 %s279, 1
      %s281 = scalar_select %p278, %s279, %s280
      %p284 = pneg %p278
      %p285 = scmp.eq.s32.totalorder %s28, 3
      %p286 = por %p284, %p285
      %p287 = scmp.ne.s32.totalorder %s279, %s282
      %p288 = scmp.eq.s32.totalorder %s28, 0
      %p289 = por %p287, %p288
      %p290 = scmp.ne.s32.totalorder %s279, %s282
      %p291 = scmp.eq.s32.totalorder %s33, 3
      %p292 = por %p290, %p291
      %p293 = scmp.ne.s32.totalorder %s282, %s283
      %p294 = scmp.eq.s32.totalorder %s33, 0
      %p295 = por %p293, %p294
      %p296 = scmp.ne.s32.totalorder %s282, %s283
      %p297 = scmp.eq.s32.totalorder %s34, 3
      %p298 = por %p296, %p297
      %p300 = scmp.ne.s32.totalorder %s283, %s299
      %p301 = scmp.eq.s32.totalorder %s34, 0
      %p302 = por %p300, %p301
      %s303 = ssub.s32 %s35, %s47
      %p304 = scmp.eq.s32.totalorder %s303, 0
      %s306 = sadd.s32 %s305, 1
      %s307 = scalar_select %p304, %s305, %s306
      %p310 = pneg %p304
      %p311 = scmp.eq.s32.totalorder %s28, 3
      %p312 = por %p310, %p311
      %p313 = scmp.ne.s32.totalorder %s305, %s308
      %p314 = scmp.eq.s32.totalorder %s28, 0
      %p315 = por %p313, %p314
      %p316 = scmp.ne.s32.totalorder %s305, %s308
      %p317 = scmp.eq.s32.totalorder %s33, 3
      %p318 = por %p316, %p317
      %p319 = scmp.ne.s32.totalorder %s308, %s309
      %p320 = scmp.eq.s32.totalorder %s33, 0
      %p321 = por %p319, %p320
      %p322 = scmp.ne.s32.totalorder %s308, %s309
      %p323 = scmp.eq.s32.totalorder %s34, 3
      %p324 = por %p322, %p323
      %p326 = scmp.ne.s32.totalorder %s309, %s325
      %p327 = scmp.eq.s32.totalorder %s34, 0
      %p328 = por %p326, %p327
      %p329 = scmp.le.s32.totalorder 1, %s28
      %p330 = scmp.lt.s32.totalorder %s28, 5
      %p331 = pnand %p329, %p330
      %p332 = pneg %p331
      // Predicated region
      $region9: #{tpu_custom_call.1} parent=5 // pred_check
        _
      $region10: #{tpu_custom_call.1} parent=5 // pred_check_branch
        %334 = sbr.rel (%p331) target = $region12
      $region11: #{tpu_custom_call.1} parent=5 // pred_region
        %s335 = ssub.s32 %s28, 1
        // Predicated region
        $region13: #{tpu_custom_call.1} parent=11 // pred_check
          %p336 = pneg %p113
        $region14: #{tpu_custom_call.1} parent=11 // pred_check_branch
          %338 = sbr.rel (%p336) target = $region16
        $region15: #{tpu_custom_call.1} parent=11 // pred_region
          _
        $region16: #{tpu_custom_call.1} parent=11 // pred_fallthru
          _
      $region12: #{tpu_custom_call.1} parent=5 // pred_fallthru
        _
      %p339 = scmp.lt.s32.totalorder %s28, 4
      // Predicated region
      $region17: #{tpu_custom_call.1} parent=5 // pred_check
        %p340 = pneg %p339
      $region18: #{tpu_custom_call.1} parent=5 // pred_check_branch
        %342 = sbr.rel (%p340) target = $region20
      $region19: #{tpu_custom_call.1} parent=5 // pred_region
        // Predicated region
        $region21: #{tpu_custom_call.1} parent=19 // pred_check
          %p343 = pneg %p60
        $region22: #{tpu_custom_call.1} parent=19 // pred_check_branch
          %345 = sbr.rel (%p343) target = $region24
        $region23: #{tpu_custom_call.1} parent=19 // pred_region
          %p346 = scmp.lt.s32.totalorder %s35, 1
          %s347 = scalar_select %p346, %s35, 1
          %s348 = smul.addr %s347, 8
          %s349 = scalar_lea.vmem %s0, %s348
        $region24: #{tpu_custom_call.1} parent=19 // pred_fallthru
          _
        // Predicated region
        $region25: #{tpu_custom_call.1} parent=19 // pred_check
          %p350 = pneg %p86
        $region26: #{tpu_custom_call.1} parent=19 // pred_check_branch
          %352 = sbr.rel (%p350) target = $region28
        $region27: #{tpu_custom_call.1} parent=19 // pred_region
          %p353 = scmp.lt.s32.totalorder %s35, 1
          %s354 = scalar_select %p353, %s35, 1
          %s355 = scalar_lea.vmem %s1, %s354
        $region28: #{tpu_custom_call.1} parent=19 // pred_fallthru
          _
        // Predicated region
        $region29: #{tpu_custom_call.1} parent=19 // pred_check
          %p356 = pneg %p133
        $region30: #{tpu_custom_call.1} parent=19 // pred_check_branch
          %358 = sbr.rel (%p356) target = $region32
        $region31: #{tpu_custom_call.1} parent=19 // pred_region
          %p359 = scmp.lt.s32.totalorder %s36, 1
          %s360 = scalar_select %p359, %s36, 1
          %s361 = smul.addr %s360, 8
          %s362 = scalar_lea.vmem %s3, %s361
        $region32: #{tpu_custom_call.1} parent=19 // pred_fallthru
          _
        // Predicated region
        $region33: #{tpu_custom_call.1} parent=19 // pred_check
          %p363 = pneg %p159
        $region34: #{tpu_custom_call.1} parent=19 // pred_check_branch
          %365 = sbr.rel (%p363) target = $region36
        $region35: #{tpu_custom_call.1} parent=19 // pred_region
          %p366 = scmp.lt.s32.totalorder %s36, 1
          %s367 = scalar_select %p366, %s36, 1
          %s368 = smul.addr %s367, 3
          %s369 = scalar_lea.vmem %s4, %s368
        $region36: #{tpu_custom_call.1} parent=19 // pred_fallthru
          _
        // Predicated region
        $region37: #{tpu_custom_call.1} parent=19 // pred_check
          %p370 = pneg %p185
        $region38: #{tpu_custom_call.1} parent=19 // pred_check_branch
          %372 = sbr.rel (%p370) target = $region40
        $region39: #{tpu_custom_call.1} parent=19 // pred_region
          %p373 = scmp.lt.s32.totalorder %s36, 1
          %s374 = scalar_select %p373, %s36, 1
          %s375 = smul.addr %s374, 2
          %s376 = scalar_lea.vmem %s5, %s375
        $region40: #{tpu_custom_call.1} parent=19 // pred_fallthru
          _
        // Predicated region
        $region41: #{tpu_custom_call.1} parent=19 // pred_check
          %p377 = pneg %p211
        $region42: #{tpu_custom_call.1} parent=19 // pred_check_branch
          %379 = sbr.rel (%p377) target = $region44
        $region43: #{tpu_custom_call.1} parent=19 // pred_region
          %s380 = sand.u32 %s201, 1
          %s381 = scalar_lea.sflag [#allocation3], %s380
          %s382 = sand.u32 %s201, 1
          %s383 = smul.addr %s382, 192
          %s384 = scalar_lea.vmem [#allocation2], %s383
          %s386 = ssub.s32 3072, 3072
          %387 = vsyncadd %s381, %s386
          %s388 = smul.addr %s36, 48
          %s389 = smul.addr %s388, 64
          %s390 = scalar_lea.hbm %s6, %s389
          %s391 = sshll.u32 %s384, 4
          %s392 = int_to_ptr.vmem [resolvable:$true] %s391
          %397 = dma.hbm_to_vmem [thread:$0]  %s390, 3072, %s392, %s381, 192, 192, 12
        $region44: #{tpu_custom_call.1} parent=19 // pred_fallthru
          _
        // Predicated region
        $region45: #{tpu_custom_call.1} parent=19 // pred_check
          %p398 = pneg %p237
        $region46: #{tpu_custom_call.1} parent=19 // pred_check_branch
          %400 = sbr.rel (%p398) target = $region48
        $region47: #{tpu_custom_call.1} parent=19 // pred_region
          %s401 = sand.u32 %s28, 1
          %s402 = scalar_lea.sflag [#allocation6], %s401
          %s403 = sand.u32 %s227, 1
          %s404 = smul.addr %s403, 64
          %s405 = scalar_lea.vmem [#allocation5], %s404
          %s407 = ssub.s32 1024, 1024
          %408 = vsyncadd %s402, %s407
          %s409 = smul.addr %s36, 16
          %s410 = smul.addr %s409, 64
          %s411 = scalar_lea.hbm %s7, %s410
          %s412 = sshll.u32 %s405, 4
          %s413 = int_to_ptr.vmem [resolvable:$true] %s412
          %418 = dma.hbm_to_vmem [thread:$0]  %s411, 1024, %s413, %s402, 64, 64, 4
        $region48: #{tpu_custom_call.1} parent=19 // pred_fallthru
          _
        // Predicated region
        $region49: #{tpu_custom_call.1} parent=19 // pred_check
          %p419 = pneg %p263
        $region50: #{tpu_custom_call.1} parent=19 // pred_check_branch
          %421 = sbr.rel (%p419) target = $region52
        $region51: #{tpu_custom_call.1} parent=19 // pred_region
          %s422 = sand.u32 %s28, 1
          %s423 = scalar_lea.sflag [#allocation6], %s422
          %s424 = sand.u32 %s253, 1
          %s425 = smul.addr %s424, 128
          %s426 = scalar_lea.vmem [#allocation7], %s425
          %s428 = ssub.s32 2048, 2048
          %429 = vsyncadd %s423, %s428
          %s430 = smul.addr %s36, 32
          %s431 = smul.addr %s430, 64
          %s432 = scalar_lea.hbm %s8, %s431
          %s433 = sshll.u32 %s426, 4
          %s434 = int_to_ptr.vmem [resolvable:$true] %s433
          %439 = dma.hbm_to_vmem [thread:$0]  %s432, 2048, %s434, %s423, 128, 128, 8
        $region52: #{tpu_custom_call.1} parent=19 // pred_fallthru
          _
        // Predicated region
        $region53: #{tpu_custom_call.1} parent=19 // pred_check
          %p440 = pneg %p289
        $region54: #{tpu_custom_call.1} parent=19 // pred_check_branch
          %442 = sbr.rel (%p440) target = $region56
        $region55: #{tpu_custom_call.1} parent=19 // pred_region
          %s443 = sand.u32 %s279, 1
          %s444 = scalar_lea.sflag [#allocation9], %s443
          %s445 = sand.u32 %s279, 1
          %s446 = smul.addr %s445, 128
          %s447 = scalar_lea.vmem [#allocation8], %s446
          %s449 = ssub.s32 2048, 2048
          %450 = vsyncadd %s444, %s449
          %s451 = smul.addr %s36, 32
          %s452 = smul.addr %s451, 64
          %s453 = scalar_lea.hbm %s9, %s452
          %s454 = sshll.u32 %s447, 4
          %s455 = int_to_ptr.vmem [resolvable:$true] %s454
          %460 = dma.hbm_to_vmem [thread:$0]  %s453, 2048, %s455, %s444, 64, 64, 4
        $region56: #{tpu_custom_call.1} parent=19 // pred_fallthru
          _
      $region20: #{tpu_custom_call.1} parent=5 // pred_fallthru
        _
      %p461 = scmp.le.s32.totalorder 1, %s28
      %p462 = scmp.lt.s32.totalorder %s28, 5
      %p463 = pnand %p461, %p462
      %p464 = pneg %p463
      // Predicated region
      $region57: #{tpu_custom_call.1} parent=5 // pred_check
        _
      $region58: #{tpu_custom_call.1} parent=5 // pred_check_branch
        %466 = sbr.rel (%p463) target = $region60
      $region59: #{tpu_custom_call.1} parent=5 // pred_region
        %s467 = ssub.s32 %s28, 1
        %s468 = sand.u32 %s204, 1
        %s469 = scalar_lea.sflag [#allocation3], %s468
        %s470 = sand.u32 %s204, 1
        %s471 = smul.addr %s470, 192
        %s472 = scalar_lea.vmem [#allocation2], %s471
        // Predicated region
        $region61: #{tpu_custom_call.1} parent=59 // pred_check
          %p473 = pneg %p217
        $region62: #{tpu_custom_call.1} parent=59 // pred_check_branch
          %475 = sbr.rel (%p473) target = $region64
        $region63: #{tpu_custom_call.1} parent=59 // pred_region
          %476 = dma.done %s469, 3072
        $region64: #{tpu_custom_call.1} parent=59 // pred_fallthru
          _
        %s477 = sand.u32 %s33, 1
        %s478 = scalar_lea.sflag [#allocation6], %s477
        %s479 = sand.u32 %s230, 1
        %s480 = smul.addr %s479, 64
        %s481 = scalar_lea.vmem [#allocation5], %s480
        // Predicated region
        $region65: #{tpu_custom_call.1} parent=59 // pred_check
          %p482 = pneg %p243
        $region66: #{tpu_custom_call.1} parent=59 // pred_check_branch
          %484 = sbr.rel (%p482) target = $region68
        $region67: #{tpu_custom_call.1} parent=59 // pred_region
          %485 = dma.done %s478, 1024
        $region68: #{tpu_custom_call.1} parent=59 // pred_fallthru
          _
        %s486 = sand.u32 %s33, 1
        %s487 = scalar_lea.sflag [#allocation6], %s486
        %s488 = sand.u32 %s256, 1
        %s489 = smul.addr %s488, 128
        %s490 = scalar_lea.vmem [#allocation7], %s489
        // Predicated region
        $region69: #{tpu_custom_call.1} parent=59 // pred_check
          %p491 = pneg %p269
        $region70: #{tpu_custom_call.1} parent=59 // pred_check_branch
          %493 = sbr.rel (%p491) target = $region72
        $region71: #{tpu_custom_call.1} parent=59 // pred_region
          %494 = dma.done %s487, 2048
        $region72: #{tpu_custom_call.1} parent=59 // pred_fallthru
          _
        %s495 = sand.u32 %s282, 1
        %s496 = scalar_lea.sflag [#allocation9], %s495
        %s497 = sand.u32 %s282, 1
        %s498 = smul.addr %s497, 128
        %s499 = scalar_lea.vmem [#allocation8], %s498
        // Predicated region
        $region73: #{tpu_custom_call.1} parent=59 // pred_check
          %p500 = pneg %p295
        $region74: #{tpu_custom_call.1} parent=59 // pred_check_branch
          %502 = sbr.rel (%p500) target = $region76
        $region75: #{tpu_custom_call.1} parent=59 // pred_region
          %503 = dma.done %s496, 2048
        $region76: #{tpu_custom_call.1} parent=59 // pred_fallthru
          _
        %p504 = scmp.lt.s32.totalorder %s37, 1
        %s505 = scalar_select %p504, %s37, 1
        %s506 = smul.addr %s505, 8
        %s507 = scalar_lea.vmem %s0, %s506
        %p508 = pneg %p66
        %p509 = pneg %p63
        %p510 = scmp.lt.s32.totalorder %s37, 1
        %s511 = scalar_select %p510, %s37, 1
        %s512 = scalar_lea.vmem %s1, %s511
        %p513 = pneg %p92
        %p514 = pneg %p89
        %p515 = pneg %p113
        %p516 = pneg %p110
        %p517 = scmp.lt.s32.totalorder %s38, 1
        %s518 = scalar_select %p517, %s38, 1
        %s519 = smul.addr %s518, 8
        %s520 = scalar_lea.vmem %s3, %s519
        %p521 = pneg %p139
        %p522 = pneg %p136
        %p523 = scmp.lt.s32.totalorder %s38, 1
        %s524 = scalar_select %p523, %s38, 1
        %s525 = smul.addr %s524, 3
        %s526 = scalar_lea.vmem %s4, %s525
        %p527 = pneg %p165
        %p528 = pneg %p162
        %p529 = scmp.lt.s32.totalorder %s38, 1
        %s530 = scalar_select %p529, %s38, 1
        %s531 = smul.addr %s530, 2
        %s532 = scalar_lea.vmem %s5, %s531
        %p533 = pneg %p191
        %p534 = pneg %p188
        %s535 = sand.u32 %s204, 1
        %s536 = scalar_lea.sflag [#allocation3], %s535
        %s537 = sand.u32 %s204, 1
        %s538 = smul.addr %s537, 192
        %s539 = scalar_lea.vmem [#allocation2], %s538
        %p540 = pneg %p217
        %p541 = pneg %p214
        %s542 = sand.u32 %s33, 1
        %s543 = scalar_lea.sflag [#allocation6], %s542
        %s544 = sand.u32 %s230, 1
        %s545 = smul.addr %s544, 64
        %s546 = scalar_lea.vmem [#allocation5], %s545
        %p547 = pneg %p243
        %p548 = pneg %p240
        %s549 = sand.u32 %s33, 1
        %s550 = scalar_lea.sflag [#allocation6], %s549
        %s551 = sand.u32 %s256, 1
        %s552 = smul.addr %s551, 128
        %s553 = scalar_lea.vmem [#allocation7], %s552
        %p554 = pneg %p269
        %p555 = pneg %p266
        %s556 = sand.u32 %s282, 1
        %s557 = scalar_lea.sflag [#allocation9], %s556
        %s558 = sand.u32 %s282, 1
        %s559 = smul.addr %s558, 128
        %s560 = scalar_lea.vmem [#allocation8], %s559
        %p561 = pneg %p295
        %p562 = pneg %p292
        %p563 = pneg %p321
        %p564 = pneg %p318
        %s565 = sand.u32 %s308, 1
        %s566 = scalar_lea.sflag [#allocation4], %s565
        %s567 = sand.u32 %s308, 1
        %s568 = smul.addr %s567, 8
        %s569 = scalar_lea.vmem [#allocation10], %s568
        %p570 = scmp.lt.s32.totalorder %s37, 1
        %s571 = scalar_select %p570, %s37, 1
        %s572 = smul.addr %s571, 8
        %s573 = scalar_lea.vmem %s0, %s572
        %p574 = scmp.lt.s32.totalorder %s37, 1
        %s575 = scalar_select %p574, %s37, 1
        %s576 = scalar_lea.vmem %s1, %s575
        %p577 = scmp.lt.s32.totalorder %s38, 1
        %s578 = scalar_select %p577, %s38, 1
        %s579 = smul.addr %s578, 8
        %s580 = scalar_lea.vmem %s3, %s579
        %p581 = scmp.lt.s32.totalorder %s38, 1
        %s582 = scalar_select %p581, %s38, 1
        %s583 = smul.addr %s582, 3
        %s584 = scalar_lea.vmem %s4, %s583
        %p585 = scmp.lt.s32.totalorder %s38, 1
        %s586 = scalar_select %p585, %s38, 1
        %s587 = smul.addr %s586, 2
        %s588 = scalar_lea.vmem %s5, %s587
        %p590 = scmp.eq.s32.totalorder %s38, 0
        // Predicated region
        $region77: #{tpu_custom_call.1} parent=59 // pred_check
          %p591 = pneg %p590
        $region78: #{tpu_custom_call.1} parent=59 // pred_check_branch
          %593 = sbr.rel (%p591) target = $region80
        $region79: #{tpu_custom_call.1} parent=59 // pred_region
          %v594 = vld [vmem:[%s573] sm:$0xff]
          %595 = vst [vmem:[%s569] sm:$0xff] %v594
        $region80: #{tpu_custom_call.1} parent=59 // pred_fallthru
          _
        %v596 = vld [vmem:[%s569] sm:$0xff]
        %v597 = vld [vmem:[%s580] sm:$0x3f]
        %v598 = vld [vmem:[%s584] sm:$0x7]
        %v599 = vld [vmem:[%s588] sm:$0x3]
        %v600 = vld [vmem:[%s576] sm:$0x1]
        %601 = vadd.xlane.f32.xlu0 %v596
        %v602 = vpop.xlane.xlu0 %601
        %v603 = vrcp.pop 128.0
        %v604 = vmul.f32 %v602, %v603
        %v605 = vsub.f32 %v596, %v604
        %v606 = vmul.f32 %v605, %v605
        %607 = vadd.xlane.f32.xlu0 %v606
        %v608 = vpop.xlane.xlu0 %607
        %v609 = vmul.f32 %v608, %v603
        %v610 = vadd.f32 %v609, 1e-05
        %v611 = vrsqrt.pop %v610
        %v612 = vmul.f32 %v605, %v611
        %v613 = vlaneseq
        %v614 = vshrl.u32 %v613, 7
        %v615 = vsub.s32 0, %v614
        %v616 = vrot.slane %v597, %v615
        %v617 = vmul.f32 %v612, %v616
        %v618 = vlaneseq
        %v619 = vshrl.u32 %v618, 7
        %v620 = vsub.s32 1, %v619
        %v621 = vrot.slane %v597, %v620
        %v622 = vadd.f32 %v617, %v621
        %v623 = vpack.c.bf16 %v622, %v622
        %v624 = vld [vmem:[%s472] sm:$0xff]
        %v625 = vld [vmem:[%s472 + $0x8] sm:$0xf]
        %v626 = vld [vmem:[%s472 + $0xc] sm:$0xff]
        %v627 = vld [vmem:[%s472 + $0x14] sm:$0xf]
        %v628 = vld [vmem:[%s472 + $0x18] sm:$0xff]
        %v629 = vld [vmem:[%s472 + $0x20] sm:$0xf]
        %v630 = vld [vmem:[%s472 + $0x24] sm:$0xff]
        %v631 = vld [vmem:[%s472 + $0x2c] sm:$0xf]
        %v632 = vld [vmem:[%s472 + $0x30] sm:$0xff]
        %v633 = vld [vmem:[%s472 + $0x38] sm:$0xf]
        %v634 = vld [vmem:[%s472 + $0x3c] sm:$0xff]
        %v635 = vld [vmem:[%s472 + $0x44] sm:$0xf]
        %v636 = vld [vmem:[%s472 + $0x48] sm:$0xff]
        %v637 = vld [vmem:[%s472 + $0x50] sm:$0xf]
        %v638 = vld [vmem:[%s472 + $0x54] sm:$0xff]
        %v639 = vld [vmem:[%s472 + $0x5c] sm:$0xf]
        %v640 = vld [vmem:[%s472 + $0x60] sm:$0xff]
        %v641 = vld [vmem:[%s472 + $0x68] sm:$0xf]
        %v642 = vld [vmem:[%s472 + $0x6c] sm:$0xff]
        %v643 = vld [vmem:[%s472 + $0x74] sm:$0xf]
        %v644 = vld [vmem:[%s472 + $0x78] sm:$0xff]
        %v645 = vld [vmem:[%s472 + $0x80] sm:$0xf]
        %v646 = vld [vmem:[%s472 + $0x84] sm:$0xff]
        %v647 = vld [vmem:[%s472 + $0x8c] sm:$0xf]
        %v648 = vld [vmem:[%s472 + $0x90] sm:$0xff]
        %v649 = vld [vmem:[%s472 + $0x98] sm:$0xf]
        %v650 = vld [vmem:[%s472 + $0x9c] sm:$0xff]
        %v651 = vld [vmem:[%s472 + $0xa4] sm:$0xf]
        %v652 = vld [vmem:[%s472 + $0xa8] sm:$0xff]
        %v653 = vld [vmem:[%s472 + $0xb0] sm:$0xf]
        %v654 = vld [vmem:[%s472 + $0xb4] sm:$0xff]
        %v655 = vld [vmem:[%s472 + $0xbc] sm:$0xf]
        %v657 = vlaneseq
        %v658 = vshrl.u32 %v657, 7
        %v659 = vsub.s32 0, %v658
        %v660 = vrot.slane %v598, %v659
        %v661 = vlaneseq
        %v662 = vshrl.u32 %v661, 7
        %v663 = vsub.s32 1, %v662
        %v664 = vrot.slane %v598, %v663
        %v665 = vlaneseq
        %v666 = vshrl.u32 %v665, 7
        %v667 = vsub.s32 2, %v666
        %v668 = vrot.slane %v598, %v667
        %v704 = vunpack.c.l.b16 %v624
        %v705 = vunpack.c.h.b16 %v624
        %v706 = vunpack.c.l.b16 %v625
        %v707 = vunpack.c.l.b16 %v626
        %v708 = vunpack.c.h.b16 %v626
        %v709 = vunpack.c.l.b16 %v627
        %v710 = vunpack.c.l.b16 %v628
        %v711 = vunpack.c.h.b16 %v628
        %v712 = vunpack.c.l.b16 %v629
        %v713 = vunpack.c.l.b16 %v630
        %v714 = vunpack.c.h.b16 %v630
        %v715 = vunpack.c.l.b16 %v631
        %v716 = vunpack.c.l.b16 %v632
        %v717 = vunpack.c.h.b16 %v632
        %v718 = vunpack.c.l.b16 %v633
        %v719 = vunpack.c.l.b16 %v634
        %v720 = vunpack.c.h.b16 %v634
        %v721 = vunpack.c.l.b16 %v635
        %v722 = vunpack.c.l.b16 %v636
        %v723 = vunpack.c.h.b16 %v636
        %v724 = vunpack.c.l.b16 %v637
        %v725 = vunpack.c.l.b16 %v638
        %v726 = vunpack.c.h.b16 %v638
        %v727 = vunpack.c.l.b16 %v639
        %v728 = vunpack.c.l.b16 %v640
        %v729 = vunpack.c.h.b16 %v640
        %v730 = vunpack.c.l.b16 %v641
        %v731 = vunpack.c.l.b16 %v642
        %v732 = vunpack.c.h.b16 %v642
        %v733 = vunpack.c.l.b16 %v643
        %v734 = vunpack.c.l.b16 %v644
        %v735 = vunpack.c.h.b16 %v644
        %v736 = vunpack.c.l.b16 %v645
        %v737 = vunpack.c.l.b16 %v646
        %v738 = vunpack.c.h.b16 %v646
        %v739 = vunpack.c.l.b16 %v647
        %v740 = vunpack.c.l.b16 %v648
        %v741 = vunpack.c.h.b16 %v648
        %v742 = vunpack.c.l.b16 %v649
        %v743 = vunpack.c.l.b16 %v650
        %v744 = vunpack.c.h.b16 %v650
        %v745 = vunpack.c.l.b16 %v651
        %v746 = vunpack.c.l.b16 %v652
        %v747 = vunpack.c.h.b16 %v652
        %v748 = vunpack.c.l.b16 %v653
        %v749 = vunpack.c.l.b16 %v654
        %v750 = vunpack.c.h.b16 %v654
        %v751 = vunpack.c.l.b16 %v655
        %v752 = vpack.c.b16 %v707, %v704
        %v753 = vpack.c.b16 %v708, %v705
        %v754 = vpack.c.b16 %v709, %v706
        %v755 = vpack.c.b16 %v713, %v710
        %v756 = vpack.c.b16 %v714, %v711
        %v757 = vpack.c.b16 %v715, %v712
        %v758 = vpack.c.b16 %v719, %v716
        %v759 = vpack.c.b16 %v720, %v717
        %v760 = vpack.c.b16 %v721, %v718
        %v761 = vpack.c.b16 %v725, %v722
        %v762 = vpack.c.b16 %v726, %v723
        %v763 = vpack.c.b16 %v727, %v724
        %v764 = vpack.c.b16 %v731, %v728
        %v765 = vpack.c.b16 %v732, %v729
        %v766 = vpack.c.b16 %v733, %v730
        %v767 = vpack.c.b16 %v737, %v734
        %v768 = vpack.c.b16 %v738, %v735
        %v769 = vpack.c.b16 %v739, %v736
        %v770 = vpack.c.b16 %v743, %v740
        %v771 = vpack.c.b16 %v744, %v741
        %v772 = vpack.c.b16 %v745, %v742
        %v773 = vpack.c.b16 %v749, %v746
        %v774 = vpack.c.b16 %v750, %v747
        %v775 = vpack.c.b16 %v751, %v748
        %800 = vmatprep.subr.bf16.mxu0 %v753
        %801 = vmatpush1.bf16.msra.mxu0 %v752
        %802 = vmatprep.subr.bf16.mxu0 %v756
        %803 = vmatpush1.bf16.msra.mxu0 %v755
        %804 = vmatprep.subr.bf16.mxu0 %v759
        %805 = vmatpush1.bf16.msra.mxu0 %v758
        %806 = vmatprep.subr.bf16.mxu0 %v762
        %807 = vmatpush1.bf16.msra.mxu0 %v761
        %808 = vmatprep.subr.bf16.mxu0 %v765
        %809 = vmatpush1.bf16.msra.mxu0 %v764
        %810 = vmatprep.subr.bf16.mxu0 %v768
        %811 = vmatpush1.bf16.msra.mxu0 %v767
        %812 = vmatprep.subr.bf16.mxu0 %v771
        %813 = vmatpush1.bf16.msra.mxu0 %v770
        %814 = vmatprep.subr.bf16.mxu0 %v774
        %815 = vmatpush1.bf16.msra.mxu0 %v773
        %816 = vmatprep.subr.bf16.mxu0 0
        %817 = vmatpush1.bf16.msra.mxu0 0
        %818 = vmatprep.subr.bf16.mxu0 0
        %819 = vmatpush1.bf16.msra.mxu0 0
        %820 = vmatprep.subr.bf16.mxu0 0
        %821 = vmatpush1.bf16.msra.mxu0 0
        %822 = vmatprep.subr.bf16.mxu0 0
        %823 = vmatpush1.bf16.msra.mxu0 0
        %824 = vmatprep.subr.bf16.mxu0 0
        %825 = vmatpush1.bf16.msra.mxu0 0
        %826 = vmatprep.subr.bf16.mxu0 0
        %827 = vmatpush1.bf16.msra.mxu0 0
        %828 = vmatprep.subr.bf16.mxu0 0
        %829 = vmatpush1.bf16.msra.mxu0 0
        %830 = vmatprep.subr.bf16.mxu0 0
        %831 = vmatpush1.bf16.msra.mxu0 0
        %832 = vmatprep.mubr.bf16.mxu0 0
        %833 = vmatmul.mubr.bf16.gmra.mrb[0].mxu0 %v623
        %v834 = vpop.f32.mrb[0].mxu0
        %v835 = vadd.f32 %v660, %v834
        %v836 = vpop.f32.mrb[0].mxu0
        %v837 = vadd.f32 %v664, %v836
        %v838 = vpop.f32.mrb[0].mxu0
        %v839 = vpop.f32.mrb[0].mxu0
        %840 = vdwg.mxu0
        %841 = vmatprep.subr.bf16.mxu0 0
        %842 = vmatpush1.bf16.msra.mxu0 %v754
        %843 = vmatprep.subr.bf16.mxu0 0
        %844 = vmatpush1.bf16.msra.mxu0 %v757
        %845 = vmatprep.subr.bf16.mxu0 0
        %846 = vmatpush1.bf16.msra.mxu0 %v760
        %847 = vmatprep.subr.bf16.mxu0 0
        %848 = vmatpush1.bf16.msra.mxu0 %v763
        %849 = vmatprep.subr.bf16.mxu0 0
        %850 = vmatpush1.bf16.msra.mxu0 %v766
        %851 = vmatprep.subr.bf16.mxu0 0
        %852 = vmatpush1.bf16.msra.mxu0 %v769
        %853 = vmatprep.subr.bf16.mxu0 0
        %854 = vmatpush1.bf16.msra.mxu0 %v772
        %855 = vmatprep.subr.bf16.mxu0 0
        %856 = vmatpush1.bf16.msra.mxu0 %v775
        %857 = vmatprep.subr.bf16.mxu0 0
        %858 = vmatpush1.bf16.msra.mxu0 0
        %859 = vmatprep.subr.bf16.mxu0 0
        %860 = vmatpush1.bf16.msra.mxu0 0
        %861 = vmatprep.subr.bf16.mxu0 0
        %862 = vmatpush1.bf16.msra.mxu0 0
        %863 = vmatprep.subr.bf16.mxu0 0
        %864 = vmatpush1.bf16.msra.mxu0 0
        %865 = vmatprep.subr.bf16.mxu0 0
        %866 = vmatpush1.bf16.msra.mxu0 0
        %867 = vmatprep.subr.bf16.mxu0 0
        %868 = vmatpush1.bf16.msra.mxu0 0
        %869 = vmatprep.subr.bf16.mxu0 0
        %870 = vmatpush1.bf16.msra.mxu0 0
        %871 = vmatprep.subr.bf16.mxu0 0
        %872 = vmatpush1.bf16.msra.mxu0 0
        %873 = vmatprep.mubr.bf16.mxu0 0
        %874 = vmatmul.mubr.bf16.gmra.mrb[0].mxu0 %v623
        %v875 = vpop.f32.mrb[0].mxu0
        %v876 = vadd.f32 %v668, %v875
        %v877 = vpop.f32.mrb[0].mxu0
        %v878 = vpop.f32.mrb[0].mxu0
        %v879 = vpop.f32.mrb[0].mxu0
        %880 = vdwg.mxu0
        %881 = vxpose.xlu0.b32.start [1/16] %v835, 128
        %882 = vxpose.xlu0.b32.cont [2/16] 0.0, 128
        %883 = vxpose.xlu0.b32.cont [3/16] 0.0, 128
        %884 = vxpose.xlu0.b32.cont [4/16] 0.0, 128
        %885 = vxpose.xlu0.b32.cont [5/16] 0.0, 128
        %886 = vxpose.xlu0.b32.cont [6/16] 0.0, 128
        %887 = vxpose.xlu0.b32.cont [7/16] 0.0, 128
        %888 = vxpose.xlu0.b32.cont [8/16] 0.0, 128
        %889 = vxpose.xlu0.b32.cont [9/16] 0.0, 128
        %890 = vxpose.xlu0.b32.cont [10/16] 0.0, 128
        %891 = vxpose.xlu0.b32.cont [11/16] 0.0, 128
        %892 = vxpose.xlu0.b32.cont [12/16] 0.0, 128
        %893 = vxpose.xlu0.b32.cont [13/16] 0.0, 128
        %894 = vxpose.xlu0.b32.cont [14/16] 0.0, 128
        %895 = vxpose.xlu0.b32.cont [15/16] 0.0, 128
        %896 = vxpose.xlu0.b32.end [16/16] 0.0, 128
        %v897 = vpop.trf.xlu0
        %v898 = vpop.trf.xlu0
        %v899 = vpop.trf.xlu0
        %v900 = vpop.trf.xlu0
        %v901 = vpop.trf.xlu0
        %v902 = vpop.trf.xlu0
        %v903 = vpop.trf.xlu0
        %v904 = vpop.trf.xlu0
        %v905 = vpop.trf.xlu0
        %v906 = vpop.trf.xlu0
        %v907 = vpop.trf.xlu0
        %v908 = vpop.trf.xlu0
        %v909 = vpop.trf.xlu0
        %v910 = vpop.trf.xlu0
        %v911 = vpop.trf.xlu0
        %v912 = vpop.trf.xlu0
        %913 = vxpose.xlu0.b32.start [1/16] %v897, 128
        %914 = vxpose.xlu0.b32.cont [2/16] %v898, 128
        %915 = vxpose.xlu0.b32.cont [3/16] %v899, 128
        %916 = vxpose.xlu0.b32.cont [4/16] %v900, 128
        %917 = vxpose.xlu0.b32.cont [5/16] 0.0, 128
        %918 = vxpose.xlu0.b32.cont [6/16] 0.0, 128
        %919 = vxpose.xlu0.b32.cont [7/16] 0.0, 128
        %920 = vxpose.xlu0.b32.cont [8/16] 0.0, 128
        %921 = vxpose.xlu0.b32.cont [9/16] 0.0, 128
        %922 = vxpose.xlu0.b32.cont [10/16] 0.0, 128
        %923 = vxpose.xlu0.b32.cont [11/16] 0.0, 128
        %924 = vxpose.xlu0.b32.cont [12/16] 0.0, 128
        %925 = vxpose.xlu0.b32.cont [13/16] 0.0, 128
        %926 = vxpose.xlu0.b32.cont [14/16] 0.0, 128
        %927 = vxpose.xlu0.b32.cont [15/16] 0.0, 128
        %928 = vxpose.xlu0.b32.end [16/16] 0.0, 128
        %v929 = vpop.trf.xlu0
        %v930 = vpop.trf.xlu0
        %v931 = vpop.trf.xlu0
        %v932 = vpop.trf.xlu0
        %v933 = vpop.trf.xlu0
        %v934 = vpop.trf.xlu0
        %v935 = vpop.trf.xlu0
        %v936 = vpop.trf.xlu0
        %v937 = vpop.trf.xlu0
        %v938 = vpop.trf.xlu0
        %v939 = vpop.trf.xlu0
        %v940 = vpop.trf.xlu0
        %v941 = vpop.trf.xlu0
        %v942 = vpop.trf.xlu0
        %v943 = vpop.trf.xlu0
        %v944 = vpop.trf.xlu0
        %945 = vxpose.xlu0.b32.start [1/16] %v901, 128
        %946 = vxpose.xlu0.b32.cont [2/16] %v902, 128
        %947 = vxpose.xlu0.b32.cont [3/16] %v903, 128
        %948 = vxpose.xlu0.b32.cont [4/16] %v904, 128
        %949 = vxpose.xlu0.b32.cont [5/16] 0.0, 128
        %950 = vxpose.xlu0.b32.cont [6/16] 0.0, 128
        %951 = vxpose.xlu0.b32.cont [7/16] 0.0, 128
        %952 = vxpose.xlu0.b32.cont [8/16] 0.0, 128
        %953 = vxpose.xlu0.b32.cont [9/16] 0.0, 128
        %954 = vxpose.xlu0.b32.cont [10/16] 0.0, 128
        %955 = vxpose.xlu0.b32.cont [11/16] 0.0, 128
        %956 = vxpose.xlu0.b32.cont [12/16] 0.0, 128
        %957 = vxpose.xlu0.b32.cont [13/16] 0.0, 128
        %958 = vxpose.xlu0.b32.cont [14/16] 0.0, 128
        %959 = vxpose.xlu0.b32.cont [15/16] 0.0, 128
        %960 = vxpose.xlu0.b32.end [16/16] 0.0, 128
        %v961 = vpop.trf.xlu0
        %v962 = vpop.trf.xlu0
        %v963 = vpop.trf.xlu0
        %v964 = vpop.trf.xlu0
        %v965 = vpop.trf.xlu0
        %v966 = vpop.trf.xlu0
        %v967 = vpop.trf.xlu0
        %v968 = vpop.trf.xlu0
        %v969 = vpop.trf.xlu0
        %v970 = vpop.trf.xlu0
        %v971 = vpop.trf.xlu0
        %v972 = vpop.trf.xlu0
        %v973 = vpop.trf.xlu0
        %v974 = vpop.trf.xlu0
        %v975 = vpop.trf.xlu0
        %v976 = vpop.trf.xlu0
        %977 = vxpose.xlu0.b32.start [1/16] %v905, 128
        %978 = vxpose.xlu0.b32.cont [2/16] %v906, 128
        %979 = vxpose.xlu0.b32.cont [3/16] %v907, 128
        %980 = vxpose.xlu0.b32.cont [4/16] %v908, 128
        %981 = vxpose.xlu0.b32.cont [5/16] 0.0, 128
        %982 = vxpose.xlu0.b32.cont [6/16] 0.0, 128
        %983 = vxpose.xlu0.b32.cont [7/16] 0.0, 128
        %984 = vxpose.xlu0.b32.cont [8/16] 0.0, 128
        %985 = vxpose.xlu0.b32.cont [9/16] 0.0, 128
        %986 = vxpose.xlu0.b32.cont [10/16] 0.0, 128
        %987 = vxpose.xlu0.b32.cont [11/16] 0.0, 128
        %988 = vxpose.xlu0.b32.cont [12/16] 0.0, 128
        %989 = vxpose.xlu0.b32.cont [13/16] 0.0, 128
        %990 = vxpose.xlu0.b32.cont [14/16] 0.0, 128
        %991 = vxpose.xlu0.b32.cont [15/16] 0.0, 128
        %992 = vxpose.xlu0.b32.end [16/16] 0.0, 128
        %v993 = vpop.trf.xlu0
        %v994 = vpop.trf.xlu0
        %v995 = vpop.trf.xlu0
        %v996 = vpop.trf.xlu0
        %v997 = vpop.trf.xlu0
        %v998 = vpop.trf.xlu0
        %v999 = vpop.trf.xlu0
        %v1000 = vpop.trf.xlu0
        %v1001 = vpop.trf.xlu0
        %v1002 = vpop.trf.xlu0
        %v1003 = vpop.trf.xlu0
        %v1004 = vpop.trf.xlu0
        %v1005 = vpop.trf.xlu0
        %v1006 = vpop.trf.xlu0
        %v1007 = vpop.trf.xlu0
        %v1008 = vpop.trf.xlu0
        %1009 = vxpose.xlu0.b32.start [1/16] %v909, 128
        %1010 = vxpose.xlu0.b32.cont [2/16] %v910, 128
        %1011 = vxpose.xlu0.b32.cont [3/16] %v911, 128
        %1012 = vxpose.xlu0.b32.cont [4/16] %v912, 128
        %1013 = vxpose.xlu0.b32.cont [5/16] 0.0, 128
        %1014 = vxpose.xlu0.b32.cont [6/16] 0.0, 128
        %1015 = vxpose.xlu0.b32.cont [7/16] 0.0, 128
        %1016 = vxpose.xlu0.b32.cont [8/16] 0.0, 128
        %1017 = vxpose.xlu0.b32.cont [9/16] 0.0, 128
        %1018 = vxpose.xlu0.b32.cont [10/16] 0.0, 128
        %1019 = vxpose.xlu0.b32.cont [11/16] 0.0, 128
        %1020 = vxpose.xlu0.b32.cont [12/16] 0.0, 128
        %1021 = vxpose.xlu0.b32.cont [13/16] 0.0, 128
        %1022 = vxpose.xlu0.b32.cont [14/16] 0.0, 128
        %1023 = vxpose.xlu0.b32.cont [15/16] 0.0, 128
        %1024 = vxpose.xlu0.b32.end [16/16] 0.0, 128
        %v1025 = vpop.trf.xlu0
        %v1026 = vpop.trf.xlu0
        %v1027 = vpop.trf.xlu0
        %v1028 = vpop.trf.xlu0
        %v1029 = vpop.trf.xlu0
        %v1030 = vpop.trf.xlu0
        %v1031 = vpop.trf.xlu0
        %v1032 = vpop.trf.xlu0
        %v1033 = vpop.trf.xlu0
        %v1034 = vpop.trf.xlu0
        %v1035 = vpop.trf.xlu0
        %v1036 = vpop.trf.xlu0
        %v1037 = vpop.trf.xlu0
        %v1038 = vpop.trf.xlu0
        %v1039 = vpop.trf.xlu0
        %v1040 = vpop.trf.xlu0
        %1041 = vxpose.xlu0.b32.start [1/16] %v837, 128
        %1042 = vxpose.xlu0.b32.cont [2/16] 0.0, 128
        %1043 = vxpose.xlu0.b32.cont [3/16] 0.0, 128
        %1044 = vxpose.xlu0.b32.cont [4/16] 0.0, 128
        %1045 = vxpose.xlu0.b32.cont [5/16] 0.0, 128
        %1046 = vxpose.xlu0.b32.cont [6/16] 0.0, 128
        %1047 = vxpose.xlu0.b32.cont [7/16] 0.0, 128
        %1048 = vxpose.xlu0.b32.cont [8/16] 0.0, 128
        %1049 = vxpose.xlu0.b32.cont [9/16] 0.0, 128
        %1050 = vxpose.xlu0.b32.cont [10/16] 0.0, 128
        %1051 = vxpose.xlu0.b32.cont [11/16] 0.0, 128
        %1052 = vxpose.xlu0.b32.cont [12/16] 0.0, 128
        %1053 = vxpose.xlu0.b32.cont [13/16] 0.0, 128
        %1054 = vxpose.xlu0.b32.cont [14/16] 0.0, 128
        %1055 = vxpose.xlu0.b32.cont [15/16] 0.0, 128
        %1056 = vxpose.xlu0.b32.end [16/16] 0.0, 128
        %v1057 = vpop.trf.xlu0
        %v1058 = vpop.trf.xlu0
        %v1059 = vpop.trf.xlu0
        %v1060 = vpop.trf.xlu0
        %v1061 = vpop.trf.xlu0
        %v1062 = vpop.trf.xlu0
        %v1063 = vpop.trf.xlu0
        %v1064 = vpop.trf.xlu0
        %v1065 = vpop.trf.xlu0
        %v1066 = vpop.trf.xlu0
        %v1067 = vpop.trf.xlu0
        %v1068 = vpop.trf.xlu0
        %v1069 = vpop.trf.xlu0
        %v1070 = vpop.trf.xlu0
        %v1071 = vpop.trf.xlu0
        %v1072 = vpop.trf.xlu0
        %1073 = vxpose.xlu0.b32.start [1/16] %v876, 128
        %1074 = vxpose.xlu0.b32.cont [2/16] 0.0, 128
        %1075 = vxpose.xlu0.b32.cont [3/16] 0.0, 128
        %1076 = vxpose.xlu0.b32.cont [4/16] 0.0, 128
        %1077 = vxpose.xlu0.b32.cont [5/16] 0.0, 128
        %1078 = vxpose.xlu0.b32.cont [6/16] 0.0, 128
        %1079 = vxpose.xlu0.b32.cont [7/16] 0.0, 128
        %1080 = vxpose.xlu0.b32.cont [8/16] 0.0, 128
        %1081 = vxpose.xlu0.b32.cont [9/16] 0.0, 128
        %1082 = vxpose.xlu0.b32.cont [10/16] 0.0, 128
        %1083 = vxpose.xlu0.b32.cont [11/16] 0.0, 128
        %1084 = vxpose.xlu0.b32.cont [12/16] 0.0, 128
        %1085 = vxpose.xlu0.b32.cont [13/16] 0.0, 128
        %1086 = vxpose.xlu0.b32.cont [14/16] 0.0, 128
        %1087 = vxpose.xlu0.b32.cont [15/16] 0.0, 128
        %1088 = vxpose.xlu0.b32.end [16/16] 0.0, 128
        %v1089 = vpop.trf.xlu0
        %v1090 = vpop.trf.xlu0
        %v1091 = vpop.trf.xlu0
        %v1092 = vpop.trf.xlu0
        %v1093 = vpop.trf.xlu0
        %v1094 = vpop.trf.xlu0
        %v1095 = vpop.trf.xlu0
        %v1096 = vpop.trf.xlu0
        %v1097 = vpop.trf.xlu0
        %v1098 = vpop.trf.xlu0
        %v1099 = vpop.trf.xlu0
        %v1100 = vpop.trf.xlu0
        %v1101 = vpop.trf.xlu0
        %v1102 = vpop.trf.xlu0
        %v1103 = vpop.trf.xlu0
        %v1104 = vpop.trf.xlu0
        %1105 = vxpose.xlu0.b32.start [1/16] %v1089, 128
        %1106 = vxpose.xlu0.b32.cont [2/16] %v1090, 128
        %1107 = vxpose.xlu0.b32.cont [3/16] %v1091, 128
        %1108 = vxpose.xlu0.b32.cont [4/16] %v1092, 128
        %1109 = vxpose.xlu0.b32.cont [5/16] 0.0, 128
        %1110 = vxpose.xlu0.b32.cont [6/16] 0.0, 128
        %1111 = vxpose.xlu0.b32.cont [7/16] 0.0, 128
        %1112 = vxpose.xlu0.b32.cont [8/16] 0.0, 128
        %1113 = vxpose.xlu0.b32.cont [9/16] 0.0, 128
        %1114 = vxpose.xlu0.b32.cont [10/16] 0.0, 128
        %1115 = vxpose.xlu0.b32.cont [11/16] 0.0, 128
        %1116 = vxpose.xlu0.b32.cont [12/16] 0.0, 128
        %1117 = vxpose.xlu0.b32.cont [13/16] 0.0, 128
        %1118 = vxpose.xlu0.b32.cont [14/16] 0.0, 128
        %1119 = vxpose.xlu0.b32.cont [15/16] 0.0, 128
        %1120 = vxpose.xlu0.b32.end [16/16] 0.0, 128
        %v1121 = vpop.trf.xlu0
        %v1122 = vpop.trf.xlu0
        %v1123 = vpop.trf.xlu0
        %v1124 = vpop.trf.xlu0
        %v1125 = vpop.trf.xlu0
        %v1126 = vpop.trf.xlu0
        %v1127 = vpop.trf.xlu0
        %v1128 = vpop.trf.xlu0
        %v1129 = vpop.trf.xlu0
        %v1130 = vpop.trf.xlu0
        %v1131 = vpop.trf.xlu0
        %v1132 = vpop.trf.xlu0
        %v1133 = vpop.trf.xlu0
        %v1134 = vpop.trf.xlu0
        %v1135 = vpop.trf.xlu0
        %v1136 = vpop.trf.xlu0
        %1137 = vxpose.xlu0.b32.start [1/16] %v1093, 128
        %1138 = vxpose.xlu0.b32.cont [2/16] %v1094, 128
        %1139 = vxpose.xlu0.b32.cont [3/16] %v1095, 128
        %1140 = vxpose.xlu0.b32.cont [4/16] %v1096, 128
        %1141 = vxpose.xlu0.b32.cont [5/16] 0.0, 128
        %1142 = vxpose.xlu0.b32.cont [6/16] 0.0, 128
        %1143 = vxpose.xlu0.b32.cont [7/16] 0.0, 128
        %1144 = vxpose.xlu0.b32.cont [8/16] 0.0, 128
        %1145 = vxpose.xlu0.b32.cont [9/16] 0.0, 128
        %1146 = vxpose.xlu0.b32.cont [10/16] 0.0, 128
        %1147 = vxpose.xlu0.b32.cont [11/16] 0.0, 128
        %1148 = vxpose.xlu0.b32.cont [12/16] 0.0, 128
        %1149 = vxpose.xlu0.b32.cont [13/16] 0.0, 128
        %1150 = vxpose.xlu0.b32.cont [14/16] 0.0, 128
        %1151 = vxpose.xlu0.b32.cont [15/16] 0.0, 128
        %1152 = vxpose.xlu0.b32.end [16/16] 0.0, 128
        %v1153 = vpop.trf.xlu0
        %v1154 = vpop.trf.xlu0
        %v1155 = vpop.trf.xlu0
        %v1156 = vpop.trf.xlu0
        %v1157 = vpop.trf.xlu0
        %v1158 = vpop.trf.xlu0
        %v1159 = vpop.trf.xlu0
        %v1160 = vpop.trf.xlu0
        %v1161 = vpop.trf.xlu0
        %v1162 = vpop.trf.xlu0
        %v1163 = vpop.trf.xlu0
        %v1164 = vpop.trf.xlu0
        %v1165 = vpop.trf.xlu0
        %v1166 = vpop.trf.xlu0
        %v1167 = vpop.trf.xlu0
        %v1168 = vpop.trf.xlu0
        %1169 = vxpose.xlu0.b32.start [1/16] %v1097, 128
        %1170 = vxpose.xlu0.b32.cont [2/16] %v1098, 128
        %1171 = vxpose.xlu0.b32.cont [3/16] %v1099, 128
        %1172 = vxpose.xlu0.b32.cont [4/16] %v1100, 128
        %1173 = vxpose.xlu0.b32.cont [5/16] 0.0, 128
        %1174 = vxpose.xlu0.b32.cont [6/16] 0.0, 128
        %1175 = vxpose.xlu0.b32.cont [7/16] 0.0, 128
        %1176 = vxpose.xlu0.b32.cont [8/16] 0.0, 128
        %1177 = vxpose.xlu0.b32.cont [9/16] 0.0, 128
        %1178 = vxpose.xlu0.b32.cont [10/16] 0.0, 128
        %1179 = vxpose.xlu0.b32.cont [11/16] 0.0, 128
        %1180 = vxpose.xlu0.b32.cont [12/16] 0.0, 128
        %1181 = vxpose.xlu0.b32.cont [13/16] 0.0, 128
        %1182 = vxpose.xlu0.b32.cont [14/16] 0.0, 128
        %1183 = vxpose.xlu0.b32.cont [15/16] 0.0, 128
        %1184 = vxpose.xlu0.b32.end [16/16] 0.0, 128
        %v1185 = vpop.trf.xlu0
        %v1186 = vpop.trf.xlu0
        %v1187 = vpop.trf.xlu0
        %v1188 = vpop.trf.xlu0
        %v1189 = vpop.trf.xlu0
        %v1190 = vpop.trf.xlu0
        %v1191 = vpop.trf.xlu0
        %v1192 = vpop.trf.xlu0
        %v1193 = vpop.trf.xlu0
        %v1194 = vpop.trf.xlu0
        %v1195 = vpop.trf.xlu0
        %v1196 = vpop.trf.xlu0
        %v1197 = vpop.trf.xlu0
        %v1198 = vpop.trf.xlu0
        %v1199 = vpop.trf.xlu0
        %v1200 = vpop.trf.xlu0
        %1201 = vxpose.xlu0.b32.start [1/16] %v1101, 128
        %1202 = vxpose.xlu0.b32.cont [2/16] %v1102, 128
        %1203 = vxpose.xlu0.b32.cont [3/16] %v1103, 128
        %1204 = vxpose.xlu0.b32.cont [4/16] %v1104, 128
        %1205 = vxpose.xlu0.b32.cont [5/16] 0.0, 128
        %1206 = vxpose.xlu0.b32.cont [6/16] 0.0, 128
        %1207 = vxpose.xlu0.b32.cont [7/16] 0.0, 128
        %1208 = vxpose.xlu0.b32.cont [8/16] 0.0, 128
        %1209 = vxpose.xlu0.b32.cont [9/16] 0.0, 128
        %1210 = vxpose.xlu0.b32.cont [10/16] 0.0, 128
        %1211 = vxpose.xlu0.b32.cont [11/16] 0.0, 128
        %1212 = vxpose.xlu0.b32.cont [12/16] 0.0, 128
        %1213 = vxpose.xlu0.b32.cont [13/16] 0.0, 128
        %1214 = vxpose.xlu0.b32.cont [14/16] 0.0, 128
        %1215 = vxpose.xlu0.b32.cont [15/16] 0.0, 128
        %1216 = vxpose.xlu0.b32.end [16/16] 0.0, 128
        %v1217 = vpop.trf.xlu0
        %v1218 = vpop.trf.xlu0
        %v1219 = vpop.trf.xlu0
        %v1220 = vpop.trf.xlu0
        %v1221 = vpop.trf.xlu0
        %v1222 = vpop.trf.xlu0
        %v1223 = vpop.trf.xlu0
        %v1224 = vpop.trf.xlu0
        %v1225 = vpop.trf.xlu0
        %v1226 = vpop.trf.xlu0
        %v1227 = vpop.trf.xlu0
        %v1228 = vpop.trf.xlu0
        %v1229 = vpop.trf.xlu0
        %v1230 = vpop.trf.xlu0
        %v1231 = vpop.trf.xlu0
        %v1232 = vpop.trf.xlu0
        %v1233 = vpack.c.bf16 %v929, %v929
        %v1234 = vpack.c.bf16 %v961, %v961
        %v1235 = vpack.c.bf16 %v993, %v993
        %v1236 = vpack.c.bf16 %v1025, %v1025
        %v1237 = vpack.c.bf16 %v1058, %v1057
        %v1238 = vpack.c.bf16 %v1060, %v1059
        %v1239 = vpack.c.bf16 %v1062, %v1061
        %v1240 = vpack.c.bf16 %v1064, %v1063
        %v1241 = vpack.c.bf16 %v1066, %v1065
        %v1242 = vpack.c.bf16 %v1068, %v1067
        %v1243 = vpack.c.bf16 %v1070, %v1069
        %v1244 = vpack.c.bf16 %v1072, %v1071
        %v1246 = vlaneseq
        %v1247 = vshrl.u32 %v1246, 7
        %v1248 = vsub.s32 0, %v1247
        %v1249 = vrot.slane %v600, %v1248
        %vm1251 = vcmask 261120
        %v1253 = vsel %vm1251, %v1233, 0
        %1255 = vmatprep.subr.bf16.mxu0 0
        %1256 = vmatpush1.bf16.msra.mxu0 %v1237
        %1257 = vmatprep.subr.bf16.mxu0 0
        %1258 = vmatpush1.bf16.msra.mxu0 %v1238
        %1259 = vmatprep.subr.bf16.mxu0 0
        %1260 = vmatpush1.bf16.msra.mxu0 0
        %1261 = vmatprep.subr.bf16.mxu0 0
        %1262 = vmatpush1.bf16.msra.mxu0 0
        %1263 = vmatprep.subr.bf16.mxu0 0
        %1264 = vmatpush1.bf16.msra.mxu0 0
        %1265 = vmatprep.subr.bf16.mxu0 0
        %1266 = vmatpush1.bf16.msra.mxu0 0
        %1267 = vmatprep.subr.bf16.mxu0 0
        %1268 = vmatpush1.bf16.msra.mxu0 0
        %1269 = vmatprep.subr.bf16.mxu0 0
        %1270 = vmatpush1.bf16.msra.mxu0 0
        %1271 = vmatprep.subr.bf16.mxu0 0
        %1272 = vmatpush1.bf16.msra.mxu0 0
        %1273 = vmatprep.subr.bf16.mxu0 0
        %1274 = vmatpush1.bf16.msra.mxu0 0
        %1275 = vmatprep.subr.bf16.mxu0 0
        %1276 = vmatpush1.bf16.msra.mxu0 0
        %1277 = vmatprep.subr.bf16.mxu0 0
        %1278 = vmatpush1.bf16.msra.mxu0 0
        %1279 = vmatprep.subr.bf16.mxu0 0
        %1280 = vmatpush1.bf16.msra.mxu0 0
        %1281 = vmatprep.subr.bf16.mxu0 0
        %1282 = vmatpush1.bf16.msra.mxu0 0
        %1283 = vmatprep.subr.bf16.mxu0 0
        %1284 = vmatpush1.bf16.msra.mxu0 0
        %1285 = vmatprep.subr.bf16.mxu0 0
        %1286 = vmatpush1.bf16.msra.mxu0 0
        %1287 = vmatprep.mubr.bf16.mxu0 0
        %1288 = vmatmul.mubr.bf16.gmra.mrb[0].mxu0 %v1253
        %v1289 = vpop.f32.mrb[0].mxu0
        %v1290 = vadd.f32 %v1249, %v1289
        %v1291 = vpop.f32.mrb[0].mxu0
        %v1292 = vpop.f32.mrb[0].mxu0
        %v1293 = vpop.f32.mrb[0].mxu0
        %1294 = vdwg.mxu0
        %v1296 = vsel %vm1251, %v1234, 0
        %1298 = vmatprep.subr.bf16.mxu0 0
        %1299 = vmatpush1.bf16.msra.mxu0 %v1239
        %1300 = vmatprep.subr.bf16.mxu0 0
        %1301 = vmatpush1.bf16.msra.mxu0 %v1240
        %1302 = vmatprep.subr.bf16.mxu0 0
        %1303 = vmatpush1.bf16.msra.mxu0 0
        %1304 = vmatprep.subr.bf16.mxu0 0
        %1305 = vmatpush1.bf16.msra.mxu0 0
        %1306 = vmatprep.subr.bf16.mxu0 0
        %1307 = vmatpush1.bf16.msra.mxu0 0
        %1308 = vmatprep.subr.bf16.mxu0 0
        %1309 = vmatpush1.bf16.msra.mxu0 0
        %1310 = vmatprep.subr.bf16.mxu0 0
        %1311 = vmatpush1.bf16.msra.mxu0 0
        %1312 = vmatprep.subr.bf16.mxu0 0
        %1313 = vmatpush1.bf16.msra.mxu0 0
        %1314 = vmatprep.subr.bf16.mxu0 0
        %1315 = vmatpush1.bf16.msra.mxu0 0
        %1316 = vmatprep.subr.bf16.mxu0 0
        %1317 = vmatpush1.bf16.msra.mxu0 0
        %1318 = vmatprep.subr.bf16.mxu0 0
        %1319 = vmatpush1.bf16.msra.mxu0 0
        %1320 = vmatprep.subr.bf16.mxu0 0
        %1321 = vmatpush1.bf16.msra.mxu0 0
        %1322 = vmatprep.subr.bf16.mxu0 0
        %1323 = vmatpush1.bf16.msra.mxu0 0
        %1324 = vmatprep.subr.bf16.mxu0 0
        %1325 = vmatpush1.bf16.msra.mxu0 0
        %1326 = vmatprep.subr.bf16.mxu0 0
        %1327 = vmatpush1.bf16.msra.mxu0 0
        %1328 = vmatprep.subr.bf16.mxu0 0
        %1329 = vmatpush1.bf16.msra.mxu0 0
        %1330 = vmatprep.mubr.bf16.mxu0 0
        %1331 = vmatmul.mubr.bf16.gmra.mrb[0].mxu0 %v1296
        %v1332 = vpop.f32.mrb[0].mxu0
        %v1333 = vadd.f32 %v1249, %v1332
        %v1334 = vpop.f32.mrb[0].mxu0
        %v1335 = vpop.f32.mrb[0].mxu0
        %v1336 = vpop.f32.mrb[0].mxu0
        %1337 = vdwg.mxu0
        %v1339 = vsel %vm1251, %v1235, 0
        %1341 = vmatprep.subr.bf16.mxu0 0
        %1342 = vmatpush1.bf16.msra.mxu0 %v1241
        %1343 = vmatprep.subr.bf16.mxu0 0
        %1344 = vmatpush1.bf16.msra.mxu0 %v1242
        %1345 = vmatprep.subr.bf16.mxu0 0
        %1346 = vmatpush1.bf16.msra.mxu0 0
        %1347 = vmatprep.subr.bf16.mxu0 0
        %1348 = vmatpush1.bf16.msra.mxu0 0
        %1349 = vmatprep.subr.bf16.mxu0 0
        %1350 = vmatpush1.bf16.msra.mxu0 0
        %1351 = vmatprep.subr.bf16.mxu0 0
        %1352 = vmatpush1.bf16.msra.mxu0 0
        %1353 = vmatprep.subr.bf16.mxu0 0
        %1354 = vmatpush1.bf16.msra.mxu0 0
        %1355 = vmatprep.subr.bf16.mxu0 0
        %1356 = vmatpush1.bf16.msra.mxu0 0
        %1357 = vmatprep.subr.bf16.mxu0 0
        %1358 = vmatpush1.bf16.msra.mxu0 0
        %1359 = vmatprep.subr.bf16.mxu0 0
        %1360 = vmatpush1.bf16.msra.mxu0 0
        %1361 = vmatprep.subr.bf16.mxu0 0
        %1362 = vmatpush1.bf16.msra.mxu0 0
        %1363 = vmatprep.subr.bf16.mxu0 0
        %1364 = vmatpush1.bf16.msra.mxu0 0
        %1365 = vmatprep.subr.bf16.mxu0 0
        %1366 = vmatpush1.bf16.msra.mxu0 0
        %1367 = vmatprep.subr.bf16.mxu0 0
        %1368 = vmatpush1.bf16.msra.mxu0 0
        %1369 = vmatprep.subr.bf16.mxu0 0
        %1370 = vmatpush1.bf16.msra.mxu0 0
        %1371 = vmatprep.subr.bf16.mxu0 0
        %1372 = vmatpush1.bf16.msra.mxu0 0
        %1373 = vmatprep.mubr.bf16.mxu0 0
        %1374 = vmatmul.mubr.bf16.gmra.mrb[0].mxu0 %v1339
        %v1375 = vpop.f32.mrb[0].mxu0
        %v1376 = vadd.f32 %v1249, %v1375
        %v1377 = vpop.f32.mrb[0].mxu0
        %v1378 = vpop.f32.mrb[0].mxu0
        %v1379 = vpop.f32.mrb[0].mxu0
        %1380 = vdwg.mxu0
        %v1382 = vsel %vm1251, %v1236, 0
        %1384 = vmatprep.subr.bf16.mxu0 0
        %1385 = vmatpush1.bf16.msra.mxu0 %v1243
        %1386 = vmatprep.subr.bf16.mxu0 0
        %1387 = vmatpush1.bf16.msra.mxu0 %v1244
        %1388 = vmatprep.subr.bf16.mxu0 0
        %1389 = vmatpush1.bf16.msra.mxu0 0
        %1390 = vmatprep.subr.bf16.mxu0 0
        %1391 = vmatpush1.bf16.msra.mxu0 0
        %1392 = vmatprep.subr.bf16.mxu0 0
        %1393 = vmatpush1.bf16.msra.mxu0 0
        %1394 = vmatprep.subr.bf16.mxu0 0
        %1395 = vmatpush1.bf16.msra.mxu0 0
        %1396 = vmatprep.subr.bf16.mxu0 0
        %1397 = vmatpush1.bf16.msra.mxu0 0
        %1398 = vmatprep.subr.bf16.mxu0 0
        %1399 = vmatpush1.bf16.msra.mxu0 0
        %1400 = vmatprep.subr.bf16.mxu0 0
        %1401 = vmatpush1.bf16.msra.mxu0 0
        %1402 = vmatprep.subr.bf16.mxu0 0
        %1403 = vmatpush1.bf16.msra.mxu0 0
        %1404 = vmatprep.subr.bf16.mxu0 0
        %1405 = vmatpush1.bf16.msra.mxu0 0
        %1406 = vmatprep.subr.bf16.mxu0 0
        %1407 = vmatpush1.bf16.msra.mxu0 0
        %1408 = vmatprep.subr.bf16.mxu0 0
        %1409 = vmatpush1.bf16.msra.mxu0 0
        %1410 = vmatprep.subr.bf16.mxu0 0
        %1411 = vmatpush1.bf16.msra.mxu0 0
        %1412 = vmatprep.subr.bf16.mxu0 0
        %1413 = vmatpush1.bf16.msra.mxu0 0
        %1414 = vmatprep.subr.bf16.mxu0 0
        %1415 = vmatpush1.bf16.msra.mxu0 0
        %1416 = vmatprep.mubr.bf16.mxu0 0
        %1417 = vmatmul.mubr.bf16.gmra.mrb[0].mxu0 %v1382
        %v1418 = vpop.f32.mrb[0].mxu0
        %v1419 = vadd.f32 %v1249, %v1418
        %v1420 = vpop.f32.mrb[0].mxu0
        %v1421 = vpop.f32.mrb[0].mxu0
        %v1422 = vpop.f32.mrb[0].mxu0
        %1423 = vdwg.mxu0
        %vm1424 = vcmask 64512
        %v1425 = vsel %vm1424, %v1290, -inf
        %1426 = vmax.xlane.f32.xlu0 %v1425
        %v1427 = vpop.xlane.xlu0 %1426
        %v1428 = vsel %vm1424, %v1333, -inf
        %1429 = vmax.xlane.f32.xlu0 %v1428
        %v1430 = vpop.xlane.xlu0 %1429
        %v1431 = vsel %vm1424, %v1376, -inf
        %1432 = vmax.xlane.f32.xlu0 %v1431
        %v1433 = vpop.xlane.xlu0 %1432
        %v1434 = vsel %vm1424, %v1419, -inf
        %1435 = vmax.xlane.f32.xlu0 %v1434
        %v1436 = vpop.xlane.xlu0 %1435
        %v1437 = vsub.f32 %v1290, %v1427
        %v1438 = vsub.f32 %v1333, %v1430
        %v1439 = vsub.f32 %v1376, %v1433
        %v1440 = vsub.f32 %v1419, %v1436
        %v1441 = vmul.f32 %v1437, 1.442695
        %v1442 = vpow.pop %v1441
        %v1443 = vmul.f32 %v1438, 1.442695
        %v1444 = vpow.pop %v1443
        %v1445 = vmul.f32 %v1439, 1.442695
        %v1446 = vpow.pop %v1445
        %v1447 = vmul.f32 %v1440, 1.442695
        %v1448 = vpow.pop %v1447
        %v1449 = vsel %vm1424, %v1442, 0.0
        %1450 = vadd.xlane.f32.xlu0 %v1449
        %v1451 = vpop.xlane.xlu0 %1450
        %v1452 = vsel %vm1424, %v1444, 0.0
        %1453 = vadd.xlane.f32.xlu0 %v1452
        %v1454 = vpop.xlane.xlu0 %1453
        %v1455 = vsel %vm1424, %v1446, 0.0
        %1456 = vadd.xlane.f32.xlu0 %v1455
        %v1457 = vpop.xlane.xlu0 %1456
        %v1458 = vsel %vm1424, %v1448, 0.0
        %1459 = vadd.xlane.f32.xlu0 %v1458
        %v1460 = vpop.xlane.xlu0 %1459
        %v1461 = vrcp.pop %v1451
        %v1462 = vrcp.pop %v1454
        %v1463 = vrcp.pop %v1457
        %v1464 = vrcp.pop %v1460
        %v1465 = vmul.f32 %v1442, %v1461
        %v1466 = vmul.f32 %v1444, %v1462
        %v1467 = vmul.f32 %v1446, %v1463
        %v1468 = vmul.f32 %v1448, %v1464
        %v1469 = vpack.c.bf16 %v1465, %v1465
        %v1470 = vpack.c.bf16 %v1466, %v1466
        %v1471 = vpack.c.bf16 %v1467, %v1467
        %v1472 = vpack.c.bf16 %v1468, %v1468
        %v1473 = vpack.c.bf16 %v1121, %v1121
        %v1474 = vpack.c.bf16 %v1153, %v1153
        %v1475 = vpack.c.bf16 %v1185, %v1185
        %v1476 = vpack.c.bf16 %v1217, %v1217
        %v1478 = vsel %vm1424, %v1469, 0
        %vm1480 = vcmask 1043456
        %v1482 = vsel %vm1480, %v1473, 0
        %1484 = vmatprep.subr.bf16.mxu0 0
        %1485 = vmatpush1.bf16.msra.mxu0 %v1482
        %1486 = vmatprep.subr.bf16.mxu0 0
        %1487 = vmatpush1.bf16.msra.mxu0 0
        %1488 = vmatprep.subr.bf16.mxu0 0
        %1489 = vmatpush1.bf16.msra.mxu0 0
        %1490 = vmatprep.subr.bf16.mxu0 0
        %1491 = vmatpush1.bf16.msra.mxu0 0
        %1492 = vmatprep.subr.bf16.mxu0 0
        %1493 = vmatpush1.bf16.msra.mxu0 0
        %1494 = vmatprep.subr.bf16.mxu0 0
        %1495 = vmatpush1.bf16.msra.mxu0 0
        %1496 = vmatprep.subr.bf16.mxu0 0
        %1497 = vmatpush1.bf16.msra.mxu0 0
        %1498 = vmatprep.subr.bf16.mxu0 0
        %1499 = vmatpush1.bf16.msra.mxu0 0
        %1500 = vmatprep.subr.bf16.mxu0 0
        %1501 = vmatpush1.bf16.msra.mxu0 0
        %1502 = vmatprep.subr.bf16.mxu0 0
        %1503 = vmatpush1.bf16.msra.mxu0 0
        %1504 = vmatprep.subr.bf16.mxu0 0
        %1505 = vmatpush1.bf16.msra.mxu0 0
        %1506 = vmatprep.subr.bf16.mxu0 0
        %1507 = vmatpush1.bf16.msra.mxu0 0
        %1508 = vmatprep.subr.bf16.mxu0 0
        %1509 = vmatpush1.bf16.msra.mxu0 0
        %1510 = vmatprep.subr.bf16.mxu0 0
        %1511 = vmatpush1.bf16.msra.mxu0 0
        %1512 = vmatprep.subr.bf16.mxu0 0
        %1513 = vmatpush1.bf16.msra.mxu0 0
        %1514 = vmatprep.subr.bf16.mxu0 0
        %1515 = vmatpush1.bf16.msra.mxu0 0
        %1516 = vmatprep.mubr.bf16.mxu0 0
        %1517 = vmatmul.mubr.bf16.gmra.mrb[0].mxu0 %v1478
        %v1518 = vpop.f32.mrb[0].mxu0
        %v1519 = vadd.f32 0.0, %v1518
        %v1520 = vpop.f32.mrb[0].mxu0
        %v1521 = vpop.f32.mrb[0].mxu0
        %v1522 = vpop.f32.mrb[0].mxu0
        %1523 = vdwg.mxu0
        %v1525 = vsel %vm1424, %v1470, 0
        %v1528 = vsel %vm1480, %v1474, 0
        %1530 = vmatprep.subr.bf16.mxu0 0
        %1531 = vmatpush1.bf16.msra.mxu0 %v1528
        %1532 = vmatprep.subr.bf16.mxu0 0
        %1533 = vmatpush1.bf16.msra.mxu0 0
        %1534 = vmatprep.subr.bf16.mxu0 0
        %1535 = vmatpush1.bf16.msra.mxu0 0
        %1536 = vmatprep.subr.bf16.mxu0 0
        %1537 = vmatpush1.bf16.msra.mxu0 0
        %1538 = vmatprep.subr.bf16.mxu0 0
        %1539 = vmatpush1.bf16.msra.mxu0 0
        %1540 = vmatprep.subr.bf16.mxu0 0
        %1541 = vmatpush1.bf16.msra.mxu0 0
        %1542 = vmatprep.subr.bf16.mxu0 0
        %1543 = vmatpush1.bf16.msra.mxu0 0
        %1544 = vmatprep.subr.bf16.mxu0 0
        %1545 = vmatpush1.bf16.msra.mxu0 0
        %1546 = vmatprep.subr.bf16.mxu0 0
        %1547 = vmatpush1.bf16.msra.mxu0 0
        %1548 = vmatprep.subr.bf16.mxu0 0
        %1549 = vmatpush1.bf16.msra.mxu0 0
        %1550 = vmatprep.subr.bf16.mxu0 0
        %1551 = vmatpush1.bf16.msra.mxu0 0
        %1552 = vmatprep.subr.bf16.mxu0 0
        %1553 = vmatpush1.bf16.msra.mxu0 0
        %1554 = vmatprep.subr.bf16.mxu0 0
        %1555 = vmatpush1.bf16.msra.mxu0 0
        %1556 = vmatprep.subr.bf16.mxu0 0
        %1557 = vmatpush1.bf16.msra.mxu0 0
        %1558 = vmatprep.subr.bf16.mxu0 0
        %1559 = vmatpush1.bf16.msra.mxu0 0
        %1560 = vmatprep.subr.bf16.mxu0 0
        %1561 = vmatpush1.bf16.msra.mxu0 0
        %1562 = vmatprep.mubr.bf16.mxu0 0
        %1563 = vmatmul.mubr.bf16.gmra.mrb[0].mxu0 %v1525
        %v1564 = vpop.f32.mrb[0].mxu0
        %v1565 = vadd.f32 0.0, %v1564
        %v1566 = vpop.f32.mrb[0].mxu0
        %v1567 = vpop.f32.mrb[0].mxu0
        %v1568 = vpop.f32.mrb[0].mxu0
        %1569 = vdwg.mxu0
        %v1571 = vsel %vm1424, %v1471, 0
        %v1574 = vsel %vm1480, %v1475, 0
        %1576 = vmatprep.subr.bf16.mxu0 0
        %1577 = vmatpush1.bf16.msra.mxu0 %v1574
        %1578 = vmatprep.subr.bf16.mxu0 0
        %1579 = vmatpush1.bf16.msra.mxu0 0
        %1580 = vmatprep.subr.bf16.mxu0 0
        %1581 = vmatpush1.bf16.msra.mxu0 0
        %1582 = vmatprep.subr.bf16.mxu0 0
        %1583 = vmatpush1.bf16.msra.mxu0 0
        %1584 = vmatprep.subr.bf16.mxu0 0
        %1585 = vmatpush1.bf16.msra.mxu0 0
        %1586 = vmatprep.subr.bf16.mxu0 0
        %1587 = vmatpush1.bf16.msra.mxu0 0
        %1588 = vmatprep.subr.bf16.mxu0 0
        %1589 = vmatpush1.bf16.msra.mxu0 0
        %1590 = vmatprep.subr.bf16.mxu0 0
        %1591 = vmatpush1.bf16.msra.mxu0 0
        %1592 = vmatprep.subr.bf16.mxu0 0
        %1593 = vmatpush1.bf16.msra.mxu0 0
        %1594 = vmatprep.subr.bf16.mxu0 0
        %1595 = vmatpush1.bf16.msra.mxu0 0
        %1596 = vmatprep.subr.bf16.mxu0 0
        %1597 = vmatpush1.bf16.msra.mxu0 0
        %1598 = vmatprep.subr.bf16.mxu0 0
        %1599 = vmatpush1.bf16.msra.mxu0 0
        %1600 = vmatprep.subr.bf16.mxu0 0
        %1601 = vmatpush1.bf16.msra.mxu0 0
        %1602 = vmatprep.subr.bf16.mxu0 0
        %1603 = vmatpush1.bf16.msra.mxu0 0
        %1604 = vmatprep.subr.bf16.mxu0 0
        %1605 = vmatpush1.bf16.msra.mxu0 0
        %1606 = vmatprep.subr.bf16.mxu0 0
        %1607 = vmatpush1.bf16.msra.mxu0 0
        %1608 = vmatprep.mubr.bf16.mxu0 0
        %1609 = vmatmul.mubr.bf16.gmra.mrb[0].mxu0 %v1571
        %v1610 = vpop.f32.mrb[0].mxu0
        %v1611 = vadd.f32 0.0, %v1610
        %v1612 = vpop.f32.mrb[0].mxu0
        %v1613 = vpop.f32.mrb[0].mxu0
        %v1614 = vpop.f32.mrb[0].mxu0
        %1615 = vdwg.mxu0
        %v1617 = vsel %vm1424, %v1472, 0
        %v1620 = vsel %vm1480, %v1476, 0
        %1622 = vmatprep.subr.bf16.mxu0 0
        %1623 = vmatpush1.bf16.msra.mxu0 %v1620
        %1624 = vmatprep.subr.bf16.mxu0 0
        %1625 = vmatpush1.bf16.msra.mxu0 0
        %1626 = vmatprep.subr.bf16.mxu0 0
        %1627 = vmatpush1.bf16.msra.mxu0 0
        %1628 = vmatprep.subr.bf16.mxu0 0
        %1629 = vmatpush1.bf16.msra.mxu0 0
        %1630 = vmatprep.subr.bf16.mxu0 0
        %1631 = vmatpush1.bf16.msra.mxu0 0
        %1632 = vmatprep.subr.bf16.mxu0 0
        %1633 = vmatpush1.bf16.msra.mxu0 0
        %1634 = vmatprep.subr.bf16.mxu0 0
        %1635 = vmatpush1.bf16.msra.mxu0 0
        %1636 = vmatprep.subr.bf16.mxu0 0
        %1637 = vmatpush1.bf16.msra.mxu0 0
        %1638 = vmatprep.subr.bf16.mxu0 0
        %1639 = vmatpush1.bf16.msra.mxu0 0
        %1640 = vmatprep.subr.bf16.mxu0 0
        %1641 = vmatpush1.bf16.msra.mxu0 0
        %1642 = vmatprep.subr.bf16.mxu0 0
        %1643 = vmatpush1.bf16.msra.mxu0 0
        %1644 = vmatprep.subr.bf16.mxu0 0
        %1645 = vmatpush1.bf16.msra.mxu0 0
        %1646 = vmatprep.subr.bf16.mxu0 0
        %1647 = vmatpush1.bf16.msra.mxu0 0
        %1648 = vmatprep.subr.bf16.mxu0 0
        %1649 = vmatpush1.bf16.msra.mxu0 0
        %1650 = vmatprep.subr.bf16.mxu0 0
        %1651 = vmatpush1.bf16.msra.mxu0 0
        %1652 = vmatprep.subr.bf16.mxu0 0
        %1653 = vmatpush1.bf16.msra.mxu0 0
        %1654 = vmatprep.mubr.bf16.mxu0 0
        %1655 = vmatmul.mubr.bf16.gmra.mrb[0].mxu0 %v1617
        %v1656 = vpop.f32.mrb[0].mxu0
        %v1657 = vadd.f32 0.0, %v1656
        %v1658 = vpop.f32.mrb[0].mxu0
        %v1659 = vpop.f32.mrb[0].mxu0
        %v1660 = vpop.f32.mrb[0].mxu0
        %1661 = vdwg.mxu0
        %1662 = vxpose.xlu0.b32.start [1/16] %v1519, 128
        %1663 = vxpose.xlu0.b32.cont [2/16] 0.0, 128
        %1664 = vxpose.xlu0.b32.cont [3/16] 0.0, 128
        %1665 = vxpose.xlu0.b32.cont [4/16] 0.0, 128
        %1666 = vxpose.xlu0.b32.cont [5/16] 0.0, 128
        %1667 = vxpose.xlu0.b32.cont [6/16] 0.0, 128
        %1668 = vxpose.xlu0.b32.cont [7/16] 0.0, 128
        %1669 = vxpose.xlu0.b32.cont [8/16] 0.0, 128
        %1670 = vxpose.xlu0.b32.cont [9/16] 0.0, 128
        %1671 = vxpose.xlu0.b32.cont [10/16] 0.0, 128
        %1672 = vxpose.xlu0.b32.cont [11/16] 0.0, 128
        %1673 = vxpose.xlu0.b32.cont [12/16] 0.0, 128
        %1674 = vxpose.xlu0.b32.cont [13/16] 0.0, 128
        %1675 = vxpose.xlu0.b32.cont [14/16] 0.0, 128
        %1676 = vxpose.xlu0.b32.cont [15/16] 0.0, 128
        %1677 = vxpose.xlu0.b32.end [16/16] 0.0, 128
        %v1678 = vpop.trf.xlu0
        %v1679 = vpop.trf.xlu0
        %v1680 = vpop.trf.xlu0
        %v1681 = vpop.trf.xlu0
        %v1682 = vpop.trf.xlu0
        %v1683 = vpop.trf.xlu0
        %v1684 = vpop.trf.xlu0
        %v1685 = vpop.trf.xlu0
        %v1686 = vpop.trf.xlu0
        %v1687 = vpop.trf.xlu0
        %v1688 = vpop.trf.xlu0
        %v1689 = vpop.trf.xlu0
        %v1690 = vpop.trf.xlu0
        %v1691 = vpop.trf.xlu0
        %v1692 = vpop.trf.xlu0
        %v1693 = vpop.trf.xlu0
        %1694 = vxpose.xlu0.b32.start [1/16] %v1565, 128
        %1695 = vxpose.xlu0.b32.cont [2/16] 0.0, 128
        %1696 = vxpose.xlu0.b32.cont [3/16] 0.0, 128
        %1697 = vxpose.xlu0.b32.cont [4/16] 0.0, 128
        %1698 = vxpose.xlu0.b32.cont [5/16] 0.0, 128
        %1699 = vxpose.xlu0.b32.cont [6/16] 0.0, 128
        %1700 = vxpose.xlu0.b32.cont [7/16] 0.0, 128
        %1701 = vxpose.xlu0.b32.cont [8/16] 0.0, 128
        %1702 = vxpose.xlu0.b32.cont [9/16] 0.0, 128
        %1703 = vxpose.xlu0.b32.cont [10/16] 0.0, 128
        %1704 = vxpose.xlu0.b32.cont [11/16] 0.0, 128
        %1705 = vxpose.xlu0.b32.cont [12/16] 0.0, 128
        %1706 = vxpose.xlu0.b32.cont [13/16] 0.0, 128
        %1707 = vxpose.xlu0.b32.cont [14/16] 0.0, 128
        %1708 = vxpose.xlu0.b32.cont [15/16] 0.0, 128
        %1709 = vxpose.xlu0.b32.end [16/16] 0.0, 128
        %v1710 = vpop.trf.xlu0
        %v1711 = vpop.trf.xlu0
        %v1712 = vpop.trf.xlu0
        %v1713 = vpop.trf.xlu0
        %v1714 = vpop.trf.xlu0
        %v1715 = vpop.trf.xlu0
        %v1716 = vpop.trf.xlu0
        %v1717 = vpop.trf.xlu0
        %v1718 = vpop.trf.xlu0
        %v1719 = vpop.trf.xlu0
        %v1720 = vpop.trf.xlu0
        %v1721 = vpop.trf.xlu0
        %v1722 = vpop.trf.xlu0
        %v1723 = vpop.trf.xlu0
        %v1724 = vpop.trf.xlu0
        %v1725 = vpop.trf.xlu0
        %1726 = vxpose.xlu0.b32.start [1/16] %v1611, 128
        %1727 = vxpose.xlu0.b32.cont [2/16] 0.0, 128
        %1728 = vxpose.xlu0.b32.cont [3/16] 0.0, 128
        %1729 = vxpose.xlu0.b32.cont [4/16] 0.0, 128
        %1730 = vxpose.xlu0.b32.cont [5/16] 0.0, 128
        %1731 = vxpose.xlu0.b32.cont [6/16] 0.0, 128
        %1732 = vxpose.xlu0.b32.cont [7/16] 0.0, 128
        %1733 = vxpose.xlu0.b32.cont [8/16] 0.0, 128
        %1734 = vxpose.xlu0.b32.cont [9/16] 0.0, 128
        %1735 = vxpose.xlu0.b32.cont [10/16] 0.0, 128
        %1736 = vxpose.xlu0.b32.cont [11/16] 0.0, 128
        %1737 = vxpose.xlu0.b32.cont [12/16] 0.0, 128
        %1738 = vxpose.xlu0.b32.cont [13/16] 0.0, 128
        %1739 = vxpose.xlu0.b32.cont [14/16] 0.0, 128
        %1740 = vxpose.xlu0.b32.cont [15/16] 0.0, 128
        %1741 = vxpose.xlu0.b32.end [16/16] 0.0, 128
        %v1742 = vpop.trf.xlu0
        %v1743 = vpop.trf.xlu0
        %v1744 = vpop.trf.xlu0
        %v1745 = vpop.trf.xlu0
        %v1746 = vpop.trf.xlu0
        %v1747 = vpop.trf.xlu0
        %v1748 = vpop.trf.xlu0
        %v1749 = vpop.trf.xlu0
        %v1750 = vpop.trf.xlu0
        %v1751 = vpop.trf.xlu0
        %v1752 = vpop.trf.xlu0
        %v1753 = vpop.trf.xlu0
        %v1754 = vpop.trf.xlu0
        %v1755 = vpop.trf.xlu0
        %v1756 = vpop.trf.xlu0
        %v1757 = vpop.trf.xlu0
        %1758 = vxpose.xlu0.b32.start [1/16] %v1657, 128
        %1759 = vxpose.xlu0.b32.cont [2/16] 0.0, 128
        %1760 = vxpose.xlu0.b32.cont [3/16] 0.0, 128
        %1761 = vxpose.xlu0.b32.cont [4/16] 0.0, 128
        %1762 = vxpose.xlu0.b32.cont [5/16] 0.0, 128
        %1763 = vxpose.xlu0.b32.cont [6/16] 0.0, 128
        %1764 = vxpose.xlu0.b32.cont [7/16] 0.0, 128
        %1765 = vxpose.xlu0.b32.cont [8/16] 0.0, 128
        %1766 = vxpose.xlu0.b32.cont [9/16] 0.0, 128
        %1767 = vxpose.xlu0.b32.cont [10/16] 0.0, 128
        %1768 = vxpose.xlu0.b32.cont [11/16] 0.0, 128
        %1769 = vxpose.xlu0.b32.cont [12/16] 0.0, 128
        %1770 = vxpose.xlu0.b32.cont [13/16] 0.0, 128
        %1771 = vxpose.xlu0.b32.cont [14/16] 0.0, 128
        %1772 = vxpose.xlu0.b32.cont [15/16] 0.0, 128
        %1773 = vxpose.xlu0.b32.end [16/16] 0.0, 128
        %v1774 = vpop.trf.xlu0
        %v1775 = vpop.trf.xlu0
        %v1776 = vpop.trf.xlu0
        %v1777 = vpop.trf.xlu0
        %v1778 = vpop.trf.xlu0
        %v1779 = vpop.trf.xlu0
        %v1780 = vpop.trf.xlu0
        %v1781 = vpop.trf.xlu0
        %v1782 = vpop.trf.xlu0
        %v1783 = vpop.trf.xlu0
        %v1784 = vpop.trf.xlu0
        %v1785 = vpop.trf.xlu0
        %v1786 = vpop.trf.xlu0
        %v1787 = vpop.trf.xlu0
        %v1788 = vpop.trf.xlu0
        %v1789 = vpop.trf.xlu0
        %1790 = vxpose.xlu0.b32.start [1/16] %v1678, 128
        %1791 = vxpose.xlu0.b32.cont [2/16] %v1679, 128
        %1792 = vxpose.xlu0.b32.cont [3/16] %v1680, 128
        %1793 = vxpose.xlu0.b32.cont [4/16] %v1681, 128
        %1794 = vxpose.xlu0.b32.cont [5/16] %v1710, 128
        %1795 = vxpose.xlu0.b32.cont [6/16] %v1711, 128
        %1796 = vxpose.xlu0.b32.cont [7/16] %v1712, 128
        %1797 = vxpose.xlu0.b32.cont [8/16] %v1713, 128
        %1798 = vxpose.xlu0.b32.cont [9/16] %v1742, 128
        %1799 = vxpose.xlu0.b32.cont [10/16] %v1743, 128
        %1800 = vxpose.xlu0.b32.cont [11/16] %v1744, 128
        %1801 = vxpose.xlu0.b32.cont [12/16] %v1745, 128
        %1802 = vxpose.xlu0.b32.cont [13/16] %v1774, 128
        %1803 = vxpose.xlu0.b32.cont [14/16] %v1775, 128
        %1804 = vxpose.xlu0.b32.cont [15/16] %v1776, 128
        %1805 = vxpose.xlu0.b32.end [16/16] %v1777, 128
        %v1806 = vpop.trf.xlu0
        %v1807 = vpop.trf.xlu0
        %v1808 = vpop.trf.xlu0
        %v1809 = vpop.trf.xlu0
        %v1810 = vpop.trf.xlu0
        %v1811 = vpop.trf.xlu0
        %v1812 = vpop.trf.xlu0
        %v1813 = vpop.trf.xlu0
        %v1814 = vpop.trf.xlu0
        %v1815 = vpop.trf.xlu0
        %v1816 = vpop.trf.xlu0
        %v1817 = vpop.trf.xlu0
        %v1818 = vpop.trf.xlu0
        %v1819 = vpop.trf.xlu0
        %v1820 = vpop.trf.xlu0
        %v1821 = vpop.trf.xlu0
        %v1822 = vpack.c.bf16 %v1806, %v1806
        %v1823 = vld [vmem:[%s481] sm:$0xf]
        %v1824 = vld [vmem:[%s481 + $0x4] sm:$0xf]
        %v1825 = vld [vmem:[%s481 + $0x8] sm:$0xf]
        %v1826 = vld [vmem:[%s481 + $0xc] sm:$0xf]
        %v1827 = vld [vmem:[%s481 + $0x10] sm:$0xf]
        %v1828 = vld [vmem:[%s481 + $0x14] sm:$0xf]
        %v1829 = vld [vmem:[%s481 + $0x18] sm:$0xf]
        %v1830 = vld [vmem:[%s481 + $0x1c] sm:$0xf]
        %v1831 = vld [vmem:[%s481 + $0x20] sm:$0xf]
        %v1832 = vld [vmem:[%s481 + $0x24] sm:$0xf]
        %v1833 = vld [vmem:[%s481 + $0x28] sm:$0xf]
        %v1834 = vld [vmem:[%s481 + $0x2c] sm:$0xf]
        %v1835 = vld [vmem:[%s481 + $0x30] sm:$0xf]
        %v1836 = vld [vmem:[%s481 + $0x34] sm:$0xf]
        %v1837 = vld [vmem:[%s481 + $0x38] sm:$0xf]
        %v1838 = vld [vmem:[%s481 + $0x3c] sm:$0xf]
        %v1855 = vunpack.c.l.b16 %v1823
        %v1856 = vunpack.c.l.b16 %v1824
        %v1857 = vunpack.c.l.b16 %v1825
        %v1858 = vunpack.c.l.b16 %v1826
        %v1859 = vunpack.c.l.b16 %v1827
        %v1860 = vunpack.c.l.b16 %v1828
        %v1861 = vunpack.c.l.b16 %v1829
        %v1862 = vunpack.c.l.b16 %v1830
        %v1863 = vunpack.c.l.b16 %v1831
        %v1864 = vunpack.c.l.b16 %v1832
        %v1865 = vunpack.c.l.b16 %v1833
        %v1866 = vunpack.c.l.b16 %v1834
        %v1867 = vunpack.c.l.b16 %v1835
        %v1868 = vunpack.c.l.b16 %v1836
        %v1869 = vunpack.c.l.b16 %v1837
        %v1870 = vunpack.c.l.b16 %v1838
        %v1871 = vpack.c.b16 %v1856, %v1855
        %v1872 = vpack.c.b16 %v1858, %v1857
        %v1873 = vpack.c.b16 %v1860, %v1859
        %v1874 = vpack.c.b16 %v1862, %v1861
        %v1875 = vpack.c.b16 %v1864, %v1863
        %v1876 = vpack.c.b16 %v1866, %v1865
        %v1877 = vpack.c.b16 %v1868, %v1867
        %v1878 = vpack.c.b16 %v1870, %v1869
        %1887 = vmatprep.subr.bf16.mxu0 0
        %1888 = vmatpush1.bf16.msra.mxu0 %v1871
        %1889 = vmatprep.subr.bf16.mxu0 0
        %1890 = vmatpush1.bf16.msra.mxu0 %v1872
        %1891 = vmatprep.subr.bf16.mxu0 0
        %1892 = vmatpush1.bf16.msra.mxu0 %v1873
        %1893 = vmatprep.subr.bf16.mxu0 0
        %1894 = vmatpush1.bf16.msra.mxu0 %v1874
        %1895 = vmatprep.subr.bf16.mxu0 0
        %1896 = vmatpush1.bf16.msra.mxu0 %v1875
        %1897 = vmatprep.subr.bf16.mxu0 0
        %1898 = vmatpush1.bf16.msra.mxu0 %v1876
        %1899 = vmatprep.subr.bf16.mxu0 0
        %1900 = vmatpush1.bf16.msra.mxu0 %v1877
        %1901 = vmatprep.subr.bf16.mxu0 0
        %1902 = vmatpush1.bf16.msra.mxu0 %v1878
        %1903 = vmatprep.subr.bf16.mxu0 0
        %1904 = vmatpush1.bf16.msra.mxu0 0
        %1905 = vmatprep.subr.bf16.mxu0 0
        %1906 = vmatpush1.bf16.msra.mxu0 0
        %1907 = vmatprep.subr.bf16.mxu0 0
        %1908 = vmatpush1.bf16.msra.mxu0 0
        %1909 = vmatprep.subr.bf16.mxu0 0
        %1910 = vmatpush1.bf16.msra.mxu0 0
        %1911 = vmatprep.subr.bf16.mxu0 0
        %1912 = vmatpush1.bf16.msra.mxu0 0
        %1913 = vmatprep.subr.bf16.mxu0 0
        %1914 = vmatpush1.bf16.msra.mxu0 0
        %1915 = vmatprep.subr.bf16.mxu0 0
        %1916 = vmatpush1.bf16.msra.mxu0 0
        %1917 = vmatprep.subr.bf16.mxu0 0
        %1918 = vmatpush1.bf16.msra.mxu0 0
        %1919 = vmatprep.mubr.bf16.mxu0 0
        %1920 = vmatmul.mubr.bf16.gmra.mrb[0].mxu0 %v1822
        %v1921 = vpop.f32.mrb[0].mxu0
        %v1922 = vadd.f32 0.0, %v1921
        %v1923 = vpop.f32.mrb[0].mxu0
        %v1924 = vpop.f32.mrb[0].mxu0
        %v1925 = vpop.f32.mrb[0].mxu0
        %1926 = vdwg.mxu0
        %v1927 = vadd.f32 %v596, %v1922
        %v1928 = vlaneseq
        %v1929 = vshrl.u32 %v1928, 7
        %v1930 = vsub.s32 2, %v1929
        %v1931 = vrot.slane %v597, %v1930
        %v1932 = vadd.f32 %v1927, %v1931
        %1933 = vadd.xlane.f32.xlu0 %v1932
        %v1934 = vpop.xlane.xlu0 %1933
        %v1935 = vmul.f32 %v1934, %v603
        %v1936 = vsub.f32 %v1932, %v1935
        %v1937 = vmul.f32 %v1936, %v1936
        %1938 = vadd.xlane.f32.xlu0 %v1937
        %v1939 = vpop.xlane.xlu0 %1938
        %v1940 = vmul.f32 %v1939, %v603
        %v1941 = vadd.f32 %v1940, 1e-05
        %v1942 = vrsqrt.pop %v1941
        %v1943 = vmul.f32 %v1936, %v1942
        %v1944 = vlaneseq
        %v1945 = vshrl.u32 %v1944, 7
        %v1946 = vsub.s32 3, %v1945
        %v1947 = vrot.slane %v597, %v1946
        %v1948 = vmul.f32 %v1943, %v1947
        %v1949 = vlaneseq
        %v1950 = vshrl.u32 %v1949, 7
        %v1951 = vsub.s32 4, %v1950
        %v1952 = vrot.slane %v597, %v1951
        %v1953 = vadd.f32 %v1948, %v1952
        %v1954 = vpack.c.bf16 %v1953, %v1953
        %v1955 = vld [vmem:[%s490] sm:$0xff]
        %v1956 = vld [vmem:[%s490 + $0x8] sm:$0xff]
        %v1957 = vld [vmem:[%s490 + $0x10] sm:$0xff]
        %v1958 = vld [vmem:[%s490 + $0x18] sm:$0xff]
        %v1959 = vld [vmem:[%s490 + $0x20] sm:$0xff]
        %v1960 = vld [vmem:[%s490 + $0x28] sm:$0xff]
        %v1961 = vld [vmem:[%s490 + $0x30] sm:$0xff]
        %v1962 = vld [vmem:[%s490 + $0x38] sm:$0xff]
        %v1963 = vld [vmem:[%s490 + $0x40] sm:$0xff]
        %v1964 = vld [vmem:[%s490 + $0x48] sm:$0xff]
        %v1965 = vld [vmem:[%s490 + $0x50] sm:$0xff]
        %v1966 = vld [vmem:[%s490 + $0x58] sm:$0xff]
        %v1967 = vld [vmem:[%s490 + $0x60] sm:$0xff]
        %v1968 = vld [vmem:[%s490 + $0x68] sm:$0xff]
        %v1969 = vld [vmem:[%s490 + $0x70] sm:$0xff]
        %v1970 = vld [vmem:[%s490 + $0x78] sm:$0xff]
        %v1972 = vlaneseq
        %v1973 = vshrl.u32 %v1972, 7
        %v1974 = vsub.s32 0, %v1973
        %v1975 = vrot.slane %v599, %v1974
        %v1976 = vlaneseq
        %v1977 = vshrl.u32 %v1976, 7
        %v1978 = vsub.s32 1, %v1977
        %v1979 = vrot.slane %v599, %v1978
        %v1998 = vunpack.c.l.b16 %v1955
        %v1999 = vunpack.c.h.b16 %v1955
        %v2000 = vunpack.c.l.b16 %v1956
        %v2001 = vunpack.c.h.b16 %v1956
        %v2002 = vunpack.c.l.b16 %v1957
        %v2003 = vunpack.c.h.b16 %v1957
        %v2004 = vunpack.c.l.b16 %v1958
        %v2005 = vunpack.c.h.b16 %v1958
        %v2006 = vunpack.c.l.b16 %v1959
        %v2007 = vunpack.c.h.b16 %v1959
        %v2008 = vunpack.c.l.b16 %v1960
        %v2009 = vunpack.c.h.b16 %v1960
        %v2010 = vunpack.c.l.b16 %v1961
        %v2011 = vunpack.c.h.b16 %v1961
        %v2012 = vunpack.c.l.b16 %v1962
        %v2013 = vunpack.c.h.b16 %v1962
        %v2014 = vunpack.c.l.b16 %v1963
        %v2015 = vunpack.c.h.b16 %v1963
        %v2016 = vunpack.c.l.b16 %v1964
        %v2017 = vunpack.c.h.b16 %v1964
        %v2018 = vunpack.c.l.b16 %v1965
        %v2019 = vunpack.c.h.b16 %v1965
        %v2020 = vunpack.c.l.b16 %v1966
        %v2021 = vunpack.c.h.b16 %v1966
        %v2022 = vunpack.c.l.b16 %v1967
        %v2023 = vunpack.c.h.b16 %v1967
        %v2024 = vunpack.c.l.b16 %v1968
        %v2025 = vunpack.c.h.b16 %v1968
        %v2026 = vunpack.c.l.b16 %v1969
        %v2027 = vunpack.c.h.b16 %v1969
        %v2028 = vunpack.c.l.b16 %v1970
        %v2029 = vunpack.c.h.b16 %v1970
        %v2030 = vpack.c.b16 %v2000, %v1998
        %v2031 = vpack.c.b16 %v2001, %v1999
        %v2032 = vpack.c.b16 %v2004, %v2002
        %v2033 = vpack.c.b16 %v2005, %v2003
        %v2034 = vpack.c.b16 %v2008, %v2006
        %v2035 = vpack.c.b16 %v2009, %v2007
        %v2036 = vpack.c.b16 %v2012, %v2010
        %v2037 = vpack.c.b16 %v2013, %v2011
        %v2038 = vpack.c.b16 %v2016, %v2014
        %v2039 = vpack.c.b16 %v2017, %v2015
        %v2040 = vpack.c.b16 %v2020, %v2018
        %v2041 = vpack.c.b16 %v2021, %v2019
        %v2042 = vpack.c.b16 %v2024, %v2022
        %v2043 = vpack.c.b16 %v2025, %v2023
        %v2044 = vpack.c.b16 %v2028, %v2026
        %v2045 = vpack.c.b16 %v2029, %v2027
        %2062 = vmatprep.subr.bf16.mxu0 %v2031
        %2063 = vmatpush1.bf16.msra.mxu0 %v2030
        %2064 = vmatprep.subr.bf16.mxu0 %v2033
        %2065 = vmatpush1.bf16.msra.mxu0 %v2032
        %2066 = vmatprep.subr.bf16.mxu0 %v2035
        %2067 = vmatpush1.bf16.msra.mxu0 %v2034
        %2068 = vmatprep.subr.bf16.mxu0 %v2037
        %2069 = vmatpush1.bf16.msra.mxu0 %v2036
        %2070 = vmatprep.subr.bf16.mxu0 %v2039
        %2071 = vmatpush1.bf16.msra.mxu0 %v2038
        %2072 = vmatprep.subr.bf16.mxu0 %v2041
        %2073 = vmatpush1.bf16.msra.mxu0 %v2040
        %2074 = vmatprep.subr.bf16.mxu0 %v2043
        %2075 = vmatpush1.bf16.msra.mxu0 %v2042
        %2076 = vmatprep.subr.bf16.mxu0 %v2045
        %2077 = vmatpush1.bf16.msra.mxu0 %v2044
        %2078 = vmatprep.subr.bf16.mxu0 0
        %2079 = vmatpush1.bf16.msra.mxu0 0
        %2080 = vmatprep.subr.bf16.mxu0 0
        %2081 = vmatpush1.bf16.msra.mxu0 0
        %2082 = vmatprep.subr.bf16.mxu0 0
        %2083 = vmatpush1.bf16.msra.mxu0 0
        %2084 = vmatprep.subr.bf16.mxu0 0
        %2085 = vmatpush1.bf16.msra.mxu0 0
        %2086 = vmatprep.subr.bf16.mxu0 0
        %2087 = vmatpush1.bf16.msra.mxu0 0
        %2088 = vmatprep.subr.bf16.mxu0 0
        %2089 = vmatpush1.bf16.msra.mxu0 0
        %2090 = vmatprep.subr.bf16.mxu0 0
        %2091 = vmatpush1.bf16.msra.mxu0 0
        %2092 = vmatprep.subr.bf16.mxu0 0
        %2093 = vmatpush1.bf16.msra.mxu0 0
        %2094 = vmatprep.mubr.bf16.mxu0 0
        %2095 = vmatmul.mubr.bf16.gmra.mrb[0].mxu0 %v1954
        %v2096 = vpop.f32.mrb[0].mxu0
        %v2097 = vadd.f32 %v1975, %v2096
        %v2098 = vpop.f32.mrb[0].mxu0
        %v2099 = vadd.f32 %v1979, %v2098
        %v2100 = vpop.f32.mrb[0].mxu0
        %v2101 = vpop.f32.mrb[0].mxu0
        %2102 = vdwg.mxu0
        %v2103 = vmul.f32 %v2097, %v2097
        %v2104 = vmul.f32 %v2099, %v2099
        %v2105 = vmul.f32 %v2097, %v2103
        %v2106 = vmul.f32 %v2099, %v2104
        %v2107 = vmul.f32 %v2105, 0.044715
        %v2108 = vmul.f32 %v2106, 0.044715
        %v2109 = vadd.f32 %v2097, %v2107
        %v2110 = vadd.f32 %v2099, %v2108
        %v2111 = vmul.f32 %v2109, 0.7978846
        %v2112 = vmul.f32 %v2110, 0.7978846
        %v2113 = vtanh.pop %v2111
        %v2114 = vtanh.pop %v2112
        %v2115 = vadd.f32 %v2113, 1.0
        %v2116 = vadd.f32 %v2114, 1.0
        %v2117 = vmul.f32 %v2115, 0.5
        %v2118 = vmul.f32 %v2116, 0.5
        %v2119 = vmul.f32 %v2097, %v2117
        %v2120 = vmul.f32 %v2099, %v2118
        %v2121 = vpack.c.bf16 %v2119, %v2119
        %v2122 = vpack.c.bf16 %v2120, %v2120
        %v2123 = vld [vmem:[%s499] sm:$0xf]
        %v2124 = vld [vmem:[%s499 + $0x4] sm:$0xf]
        %v2125 = vld [vmem:[%s499 + $0x8] sm:$0xf]
        %v2126 = vld [vmem:[%s499 + $0xc] sm:$0xf]
        %v2127 = vld [vmem:[%s499 + $0x10] sm:$0xf]
        %v2128 = vld [vmem:[%s499 + $0x14] sm:$0xf]
        %v2129 = vld [vmem:[%s499 + $0x18] sm:$0xf]
        %v2130 = vld [vmem:[%s499 + $0x1c] sm:$0xf]
        %v2131 = vld [vmem:[%s499 + $0x20] sm:$0xf]
        %v2132 = vld [vmem:[%s499 + $0x24] sm:$0xf]
        %v2133 = vld [vmem:[%s499 + $0x28] sm:$0xf]
        %v2134 = vld [vmem:[%s499 + $0x2c] sm:$0xf]
        %v2135 = vld [vmem:[%s499 + $0x30] sm:$0xf]
        %v2136 = vld [vmem:[%s499 + $0x34] sm:$0xf]
        %v2137 = vld [vmem:[%s499 + $0x38] sm:$0xf]
        %v2138 = vld [vmem:[%s499 + $0x3c] sm:$0xf]
        %v2139 = vld [vmem:[%s499 + $0x40] sm:$0xf]
        %v2140 = vld [vmem:[%s499 + $0x44] sm:$0xf]
        %v2141 = vld [vmem:[%s499 + $0x48] sm:$0xf]
        %v2142 = vld [vmem:[%s499 + $0x4c] sm:$0xf]
        %v2143 = vld [vmem:[%s499 + $0x50] sm:$0xf]
        %v2144 = vld [vmem:[%s499 + $0x54] sm:$0xf]
        %v2145 = vld [vmem:[%s499 + $0x58] sm:$0xf]
        %v2146 = vld [vmem:[%s499 + $0x5c] sm:$0xf]
        %v2147 = vld [vmem:[%s499 + $0x60] sm:$0xf]
        %v2148 = vld [vmem:[%s499 + $0x64] sm:$0xf]
        %v2149 = vld [vmem:[%s499 + $0x68] sm:$0xf]
        %v2150 = vld [vmem:[%s499 + $0x6c] sm:$0xf]
        %v2151 = vld [vmem:[%s499 + $0x70] sm:$0xf]
        %v2152 = vld [vmem:[%s499 + $0x74] sm:$0xf]
        %v2153 = vld [vmem:[%s499 + $0x78] sm:$0xf]
        %v2154 = vld [vmem:[%s499 + $0x7c] sm:$0xf]
        %v2187 = vunpack.c.l.b16 %v2123
        %v2188 = vunpack.c.l.b16 %v2124
        %v2189 = vunpack.c.l.b16 %v2125
        %v2190 = vunpack.c.l.b16 %v2126
        %v2191 = vunpack.c.l.b16 %v2127
        %v2192 = vunpack.c.l.b16 %v2128
        %v2193 = vunpack.c.l.b16 %v2129
        %v2194 = vunpack.c.l.b16 %v2130
        %v2195 = vunpack.c.l.b16 %v2131
        %v2196 = vunpack.c.l.b16 %v2132
        %v2197 = vunpack.c.l.b16 %v2133
        %v2198 = vunpack.c.l.b16 %v2134
        %v2199 = vunpack.c.l.b16 %v2135
        %v2200 = vunpack.c.l.b16 %v2136
        %v2201 = vunpack.c.l.b16 %v2137
        %v2202 = vunpack.c.l.b16 %v2138
        %v2203 = vunpack.c.l.b16 %v2139
        %v2204 = vunpack.c.l.b16 %v2140
        %v2205 = vunpack.c.l.b16 %v2141
        %v2206 = vunpack.c.l.b16 %v2142
        %v2207 = vunpack.c.l.b16 %v2143
        %v2208 = vunpack.c.l.b16 %v2144
        %v2209 = vunpack.c.l.b16 %v2145
        %v2210 = vunpack.c.l.b16 %v2146
        %v2211 = vunpack.c.l.b16 %v2147
        %v2212 = vunpack.c.l.b16 %v2148
        %v2213 = vunpack.c.l.b16 %v2149
        %v2214 = vunpack.c.l.b16 %v2150
        %v2215 = vunpack.c.l.b16 %v2151
        %v2216 = vunpack.c.l.b16 %v2152
        %v2217 = vunpack.c.l.b16 %v2153
        %v2218 = vunpack.c.l.b16 %v2154
        %v2219 = vpack.c.b16 %v2188, %v2187
        %v2220 = vpack.c.b16 %v2190, %v2189
        %v2221 = vpack.c.b16 %v2192, %v2191
        %v2222 = vpack.c.b16 %v2194, %v2193
        %v2223 = vpack.c.b16 %v2196, %v2195
        %v2224 = vpack.c.b16 %v2198, %v2197
        %v2225 = vpack.c.b16 %v2200, %v2199
        %v2226 = vpack.c.b16 %v2202, %v2201
        %v2227 = vpack.c.b16 %v2204, %v2203
        %v2228 = vpack.c.b16 %v2206, %v2205
        %v2229 = vpack.c.b16 %v2208, %v2207
        %v2230 = vpack.c.b16 %v2210, %v2209
        %v2231 = vpack.c.b16 %v2212, %v2211
        %v2232 = vpack.c.b16 %v2214, %v2213
        %v2233 = vpack.c.b16 %v2216, %v2215
        %v2234 = vpack.c.b16 %v2218, %v2217
        %2251 = vmatprep.subr.bf16.mxu0 0
        %2252 = vmatpush1.bf16.msra.mxu0 %v2219
        %2253 = vmatprep.subr.bf16.mxu0 0
        %2254 = vmatpush1.bf16.msra.mxu0 %v2220
        %2255 = vmatprep.subr.bf16.mxu0 0
        %2256 = vmatpush1.bf16.msra.mxu0 %v2221
        %2257 = vmatprep.subr.bf16.mxu0 0
        %2258 = vmatpush1.bf16.msra.mxu0 %v2222
        %2259 = vmatprep.subr.bf16.mxu0 0
        %2260 = vmatpush1.bf16.msra.mxu0 %v2223
        %2261 = vmatprep.subr.bf16.mxu0 0
        %2262 = vmatpush1.bf16.msra.mxu0 %v2224
        %2263 = vmatprep.subr.bf16.mxu0 0
        %2264 = vmatpush1.bf16.msra.mxu0 %v2225
        %2265 = vmatprep.subr.bf16.mxu0 0
        %2266 = vmatpush1.bf16.msra.mxu0 %v2226
        %2267 = vmatprep.subr.bf16.mxu0 0
        %2268 = vmatpush1.bf16.msra.mxu0 %v2227
        %2269 = vmatprep.subr.bf16.mxu0 0
        %2270 = vmatpush1.bf16.msra.mxu0 %v2228
        %2271 = vmatprep.subr.bf16.mxu0 0
        %2272 = vmatpush1.bf16.msra.mxu0 %v2229
        %2273 = vmatprep.subr.bf16.mxu0 0
        %2274 = vmatpush1.bf16.msra.mxu0 %v2230
        %2275 = vmatprep.subr.bf16.mxu0 0
        %2276 = vmatpush1.bf16.msra.mxu0 %v2231
        %2277 = vmatprep.subr.bf16.mxu0 0
        %2278 = vmatpush1.bf16.msra.mxu0 %v2232
        %2279 = vmatprep.subr.bf16.mxu0 0
        %2280 = vmatpush1.bf16.msra.mxu0 %v2233
        %2281 = vmatprep.subr.bf16.mxu0 0
        %2282 = vmatpush1.bf16.msra.mxu0 %v2234
        %2283 = vmatprep.mubr.bf16.mxu0 %v2122
        %2284 = vmatmul.mubr.bf16.gmra.mrb[0].mxu0 %v2121
        %v2285 = vpop.f32.mrb[0].mxu0
        %v2286 = vadd.f32 0.0, %v2285
        %v2287 = vpop.f32.mrb[0].mxu0
        %v2288 = vpop.f32.mrb[0].mxu0
        %v2289 = vpop.f32.mrb[0].mxu0
        %2290 = vdwg.mxu0
        %v2291 = vadd.f32 %v1932, %v2286
        %v2292 = vlaneseq
        %v2293 = vshrl.u32 %v2292, 7
        %v2294 = vsub.s32 5, %v2293
        %v2295 = vrot.slane %v597, %v2294
        %v2296 = vadd.f32 %v2291, %v2295
        %p2297 = scmp.lt.s32.totalorder %s38, 1
        // Predicated region
        $region81: #{tpu_custom_call.1} parent=59 // pred_check
          %p2298 = pneg %p2297
        $region82: #{tpu_custom_call.1} parent=59 // pred_check_branch
          %2300 = sbr.rel (%p2298) target = $region84
        $region83: #{tpu_custom_call.1} parent=59 // pred_region
          %2301 = vst [vmem:[%s569] sm:$0xff] %v2296
        $region84: #{tpu_custom_call.1} parent=59 // pred_fallthru
          _
        %p2302 = scmp.eq.s32.totalorder %s38, 1
        // Predicated region
        $region85: #{tpu_custom_call.1} parent=59 // pred_check
          %p2303 = pneg %p2302
        $region86: #{tpu_custom_call.1} parent=59 // pred_check_branch
          %2305 = sbr.rel (%p2303) target = $region88
        $region87: #{tpu_custom_call.1} parent=59 // pred_region
          %v2306 = vld [vmem:[%s2] sm:$0x1]
          %v2307 = vld [vmem:[%s2 + $0x1] sm:$0x1]
          %2308 = vadd.xlane.f32.xlu0 %v2296
          %v2309 = vpop.xlane.xlu0 %2308
          %v2310 = vmul.f32 %v2309, %v603
          %v2311 = vsub.f32 %v2296, %v2310
          %v2312 = vmul.f32 %v2311, %v2311
          %2313 = vadd.xlane.f32.xlu0 %v2312
          %v2314 = vpop.xlane.xlu0 %2313
          %v2315 = vmul.f32 %v2314, %v603
          %v2316 = vadd.f32 %v2315, 1e-05
          %v2317 = vrsqrt.pop %v2316
          %v2318 = vmul.f32 %v2311, %v2317
          %v2319 = vlaneseq
          %v2320 = vshrl.u32 %v2319, 7
          %v2321 = vsub.s32 0, %v2320
          %v2322 = vrot.slane %v2306, %v2321
          %v2323 = vmul.f32 %v2318, %v2322
          %v2324 = vlaneseq
          %v2325 = vshrl.u32 %v2324, 7
          %v2326 = vsub.s32 0, %v2325
          %v2327 = vrot.slane %v2307, %v2326
          %v2328 = vadd.f32 %v2323, %v2327
          %2329 = vst [vmem:[%s569] sm:$0xff] %v2328
        $region88: #{tpu_custom_call.1} parent=59 // pred_fallthru
          _
        %s2330 = sand.u32 %s308, 1
        %s2331 = scalar_lea.sflag [#allocation4], %s2330
        %s2332 = sand.u32 %s308, 1
        %s2333 = smul.addr %s2332, 8
        %s2334 = scalar_lea.vmem [#allocation10], %s2333
        // Predicated region
        $region89: #{tpu_custom_call.1} parent=59 // pred_check
          %p2335 = pneg %p318
        $region90: #{tpu_custom_call.1} parent=59 // pred_check_branch
          %2337 = sbr.rel (%p2335) target = $region92
        $region91: #{tpu_custom_call.1} parent=59 // pred_region
          %s2339 = ssub.s32 128, 128
          %2340 = vsyncadd %s2331, %s2339
          %s2341 = smul.addr %s37, 128
          %s2342 = scalar_lea.hbm %s10, %s2341
          %s2344 = sshll.u32 %s2334, 4
          %s2345 = int_to_ptr.vmem [resolvable:$true] %s2344
          %2347 = dma.vmem_to_hbm [thread:$0]  %s2345, 128, %s2342, %s2331
        $region92: #{tpu_custom_call.1} parent=59 // pred_fallthru
          _
      $region60: #{tpu_custom_call.1} parent=5 // pred_fallthru
        _
      %p2348 = scmp.le.s32.totalorder 2, %s28
      // Predicated region
      $region93: #{tpu_custom_call.1} parent=5 // pred_check
        %p2349 = pneg %p2348
      $region94: #{tpu_custom_call.1} parent=5 // pred_check_branch
        %2351 = sbr.rel (%p2349) target = $region96
      $region95: #{tpu_custom_call.1} parent=5 // pred_region
        %s2352 = ssub.s32 %s28, 2
        // Predicated region
        $region97: #{tpu_custom_call.1} parent=95 // pred_check
          %p2353 = pneg %p324
        $region98: #{tpu_custom_call.1} parent=95 // pred_check_branch
          %2355 = sbr.rel (%p2353) target = $region100
        $region99: #{tpu_custom_call.1} parent=95 // pred_region
          %s2356 = sand.u32 %s309, 1
          %s2357 = scalar_lea.sflag [#allocation4], %s2356
          %s2358 = sand.u32 %s309, 1
          %s2359 = smul.addr %s2358, 8
          %s2360 = scalar_lea.vmem [#allocation10], %s2359
          %2361 = dma.done %s2357, 128
        $region100: #{tpu_custom_call.1} parent=95 // pred_fallthru
          _
      $region96: #{tpu_custom_call.1} parent=5 // pred_fallthru
        _
    $region6: #{tpu_custom_call.1} parent=1 // loop_footer
      %s32 = sadd.s32 1, %s28
    $region7: #{tpu_custom_call.1} parent=1 // loop_footer_branch
      %27 = sbr.rel target = $region3
    $region8: #{tpu_custom_call.1} parent=1 // loop_exit
      _
    %2362 = vsyncpa [#allocation3], 1
    %s2363 = scalar_lea.sflag [#allocation3], 1
    %2364 = vsyncpa %s2363, 1
    %2365 = vsyncpa [#allocation6], 1
    %s2366 = scalar_lea.sflag [#allocation6], 1
    %2367 = vsyncpa %s2366, 1
    %2368 = vsyncpa [#allocation9], 1
    %s2369 = scalar_lea.sflag [#allocation9], 1
    %2370 = vsyncpa %s2369, 1
    %2371 = vsyncpa [#allocation4], 1
    %s2372 = scalar_lea.sflag [#allocation4], 1
    %2373 = vsyncpa %s2372, 1

</llo_original>
